<compile_context>
chip_gen: v7x
topology: tpu7x:2x2x1
jax: 0.10.0
libtpu: 0.0.40
codegen_flags: <defaults>
</compile_context>

<pallas_src>
import jax
import jax.numpy as jnp
from jax.experimental import pallas as pl
from jax.experimental.pallas import tpu as pltpu

INPUT_SIZE = 64 + 64 + 64 + 1     # 193, as in the PyTorch module
L1 = L2 = L3 = 384                # small synthetic widths (module default 16000);
                                  # multiple of 128 (lane-dense) and of K
K = 3                             # GroupSum groups
TAU = 100.0
OUT_PAD = 128                     # lane-dense padded GroupSum output width
BATCH = 16
BATCH_TILE = 8                    # >= 8 f32 rows => full sublane occupancy

# Each of the 16 soft logic ops is affine in {1, a, b, a*b}:
#   op_i(a, b) = C[i,0] + C[i,1]*a + C[i,2]*b + C[i,3]*(a*b)
_OP_AFFINE = jnp.array(
    [
        [0.0, 0.0, 0.0, 0.0],    # 0  False
        [0.0, 0.0, 0.0, 1.0],    # 1  a AND b
        [0.0, 1.0, 0.0, -1.0],   # 2  a AND NOT b
        [0.0, 1.0, 0.0, 0.0],    # 3  a
        [0.0, 0.0, 1.0, -1.0],   # 4  NOT a AND b
        [0.0, 0.0, 1.0, 0.0],    # 5  b
        [0.0, 1.0, 1.0, -2.0],   # 6  XOR
        [0.0, 1.0, 1.0, -1.0],   # 7  OR
        [1.0, -1.0, -1.0, 1.0],  # 8  NOR
        [1.0, -1.0, -1.0, 2.0],  # 9  XNOR
        [1.0, 0.0, -1.0, 0.0],   # 10 NOT b
        [1.0, 0.0, -1.0, 1.0],   # 11 a OR NOT b
        [1.0, -1.0, 0.0, 0.0],   # 12 NOT a
        [1.0, -1.0, 0.0, 1.0],   # 13 NOT a OR b
        [1.0, 0.0, 0.0, -1.0],   # 14 NAND
        [1.0, 0.0, 0.0, 0.0],    # 15 True
    ],
    dtype=jnp.float32,
)  # (16, 4)


def _logic_layer(h, sel_ref, coef_ref, out_dim):
    """One differentiable LogicLayer (affine mixture form).

    h:        (TB, in)        activations in [0, 1], f32
    sel_ref:  (in, 2*out)     bf16 one-hot [sel_a | sel_b] (values 0/1)
    coef_ref: (4, out)        precomputed affine mixture coefficients
    """
    sel = sel_ref[...].astype(jnp.float32)            # 0/1 -> exact upcast
    ab = jnp.dot(h, sel, preferred_element_type=jnp.float32)   # (TB, 2*out)
    a = ab[:, :out_dim]                               # lane-tile aligned slice
    b = ab[:, out_dim:]
    c = coef_ref[...]
    return c[0:1, :] + c[1:2, :] * a + c[2:3, :] * b + c[3:4, :] * (a * b)


def net_kernel(x_ref,
               sel1_ref, c1_ref,
               sel2_ref, c2_ref,
               sel3_ref, c3_ref,
               g_ref, out_ref):
    h = x_ref[...]
    h = _logic_layer(h, sel1_ref, c1_ref, L1)
    h = _logic_layer(h, sel2_ref, c2_ref, L2)
    h = _logic_layer(h, sel3_ref, c3_ref, L3)
    # GroupSum(k=3, tau=100): 0/1 group-assignment matrix with 1/tau folded
    # in, zero-padded to 128 lanes -> unmasked stores. Wrapper slices [:, :K].
    out_ref[...] = jnp.dot(h, g_ref[...], preferred_element_type=jnp.float32)


def make_layer_params(key, in_dim, out_dim):
    k_a, k_b, k_w = jax.random.split(key, 3)
    idx_a = jax.random.randint(k_a, (out_dim,), 0, in_dim)
    idx_b = jax.random.randint(k_b, (out_dim,), 0, in_dim)
    w = jax.random.normal(k_w, (out_dim, 16), dtype=jnp.float32)  # ~ torch.randn
    sel_a = jax.nn.one_hot(idx_a, in_dim, dtype=jnp.float32).T    # (in, out)
    sel_b = jax.nn.one_hot(idx_b, in_dim, dtype=jnp.float32).T
    # Fused selection matrix (bf16 storage of exact 0/1 values).
    sel = jnp.concatenate([sel_a, sel_b], axis=1).astype(jnp.bfloat16)  # (in, 2*out)
    # Hoisted softmax + affine-coefficient projection (independent of x).
    p = jax.nn.softmax(w.T, axis=0)                               # (16, out)
    coef = jnp.dot(_OP_AFFINE.T, p)                               # (4, out)
    raw = (sel_a, sel_b, w.T)                                     # for the reference
    return sel, coef, raw


def build_net():
    root = jax.random.PRNGKey(0)
    k1, k2, k3 = jax.random.split(root, 3)
    sel1, c1, raw1 = make_layer_params(k1, INPUT_SIZE, L1)
    sel2, c2, raw2 = make_layer_params(k2, L1, L2)
    sel3, c3, raw3 = make_layer_params(k3, L2, L3)
    # GroupSum matrix: contiguous chunks of L3 // K, with 1/tau folded in,
    # zero-padded to OUT_PAD lanes for an unmasked output store.
    group = (jnp.arange(L3) // (L3 // K))[:, None] == jnp.arange(K)[None, :]
    g_mat = jnp.zeros((L3, OUT_PAD), jnp.float32)
    g_mat = g_mat.at[:, :K].set(group.astype(jnp.float32) / TAU)
    kernel_params = (sel1, c1, sel2, c2, sel3, c3, g_mat)
    raw_params = (raw1, raw2, raw3)
    return kernel_params, raw_params


def net_forward(x, kernel_params):
    sel1, c1, sel2, c2, sel3, c3, g_mat = kernel_params
    batch = x.shape[0]
    assert batch % BATCH_TILE == 0
    grid = (batch // BATCH_TILE,)

    def full_spec(arr):
        return pl.BlockSpec(arr.shape, lambda i: (0, 0))

    in_specs = [
        pl.BlockSpec((BATCH_TILE, INPUT_SIZE), lambda i: (i, 0)),
        full_spec(sel1), full_spec(c1),
        full_spec(sel2), full_spec(c2),
        full_spec(sel3), full_spec(c3),
        full_spec(g_mat),
    ]
    fn = pl.pallas_call(
        net_kernel,
        out_shape=jax.ShapeDtypeStruct((batch, OUT_PAD), jnp.float32),
        grid=grid,
        in_specs=in_specs,
        out_specs=pl.BlockSpec((BATCH_TILE, OUT_PAD), lambda i: (i, 0)),
        compiler_params=pltpu.CompilerParams(
            dimension_semantics=("parallel",)),
    )
    out_padded = fn(x, sel1, c1, sel2, c2, sel3, c3, g_mat)
    return out_padded[:, :K]


def net_reference(x, raw_params):
    """Pure-JAX reference with the original 16-op mixture + reshape GroupSum."""
    h = x
    for sel_a, sel_b, w_t in raw_params:
        a = h @ sel_a
        b = h @ sel_b
        p = jax.nn.softmax(w_t, axis=0)
        ab = a * b
        ops = [jnp.zeros_like(a), ab, a - ab, a, b - ab, b,
               a + b - 2 * ab, a + b - ab, 1 - (a + b - ab),
               1 - (a + b - 2 * ab), 1 - b, 1 - b + ab, 1 - a,
               1 - a + ab, 1 - ab, jnp.ones_like(a)]
        h = sum(p[i:i + 1, :] * ops[i] for i in range(16))
    return h.reshape(h.shape[0], K, -1).sum(-1) / TAU


if __name__ == "__main__":
    kernel_params, raw_params = build_net()
    x = jax.random.uniform(jax.random.PRNGKey(0), (BATCH, INPUT_SIZE),
                           dtype=jnp.float32)

    out = net_forward(x, kernel_params)
    out = jax.block_until_ready(out)

    ref = net_reference(x, raw_params)
    assert out.shape == (BATCH, K), out.shape
    assert jnp.allclose(out, ref, rtol=1e-5, atol=1e-5), (out, ref)
    print("KERNEL_OK")
</pallas_src>

<mosaic_0001>
module attributes {stable_mosaic.version = 11 : i64} {
  func.func @net_kernel(%arg0: i32, %arg1: memref<8x193xf32, #tpu.memory_space<vmem>>, %arg2: memref<193x768xbf16, #tpu.memory_space<vmem>>, %arg3: memref<4x384xf32, #tpu.memory_space<vmem>>, %arg4: memref<384x768xbf16, #tpu.memory_space<vmem>>, %arg5: memref<4x384xf32, #tpu.memory_space<vmem>>, %arg6: memref<384x768xbf16, #tpu.memory_space<vmem>>, %arg7: memref<4x384xf32, #tpu.memory_space<vmem>>, %arg8: memref<384x128xf32, #tpu.memory_space<vmem>>, %arg9: memref<8x128xf32, #tpu.memory_space<vmem>>) attributes {dimension_semantics = [#tpu.dimension_semantics<parallel>], iteration_bounds = array<i64: 2>, scalar_prefetch = 0 : i64, scratch_operands = 0 : i64, tpu.core_type = #tpu.core_type<tc>, window_params = [{transform_indices = @transform_0, window_bounds = array<i64: 8, 193>}, {pipeline_mode = #tpu.pipeline_mode<synchronous>, transform_indices = @transform_1, window_bounds = array<i64: 193, 768>}, {pipeline_mode = #tpu.pipeline_mode<synchronous>, transform_indices = @transform_2, window_bounds = array<i64: 4, 384>}, {pipeline_mode = #tpu.pipeline_mode<synchronous>, transform_indices = @transform_3, window_bounds = array<i64: 384, 768>}, {pipeline_mode = #tpu.pipeline_mode<synchronous>, transform_indices = @transform_4, window_bounds = array<i64: 4, 384>}, {pipeline_mode = #tpu.pipeline_mode<synchronous>, transform_indices = @transform_5, window_bounds = array<i64: 384, 768>}, {pipeline_mode = #tpu.pipeline_mode<synchronous>, transform_indices = @transform_6, window_bounds = array<i64: 4, 384>}, {pipeline_mode = #tpu.pipeline_mode<synchronous>, transform_indices = @transform_7, window_bounds = array<i64: 384, 128>}, {transform_indices = @transform_8, window_bounds = array<i64: 8, 128>}]} {
    %c0 = arith.constant 0 : index
    %c0_0 = arith.constant 0 : index
    %0 = vector.load %arg1[%c0, %c0_0] : memref<8x193xf32, #tpu.memory_space<vmem>>, vector<8x193xf32>
    %c0_1 = arith.constant 0 : index
    %c0_2 = arith.constant 0 : index
    %1 = vector.load %arg2[%c0_1, %c0_2] : memref<193x768xbf16, #tpu.memory_space<vmem>>, vector<193x768xbf16>
    %2 = arith.extf %1 : vector<193x768xbf16> to vector<193x768xf32>
    %cst = arith.constant dense<0.000000e+00> : vector<8x768xf32>
    %3 = tpu.matmul %0, %2, %cst {dimension_numbers = #tpu.dot_dimension_numbers<[1], [0], [0], [1], [0, 0, 1, 1], [], []>} : vector<8x193xf32>, vector<193x768xf32>, vector<8x768xf32> -> vector<8x768xf32>
    %4 = vector.extract_strided_slice %3 {offsets = [0, 0], sizes = [8, 384], strides = [1, 1]} : vector<8x768xf32> to vector<8x384xf32>
    %5 = vector.extract_strided_slice %3 {offsets = [0, 384], sizes = [8, 384], strides = [1, 1]} : vector<8x768xf32> to vector<8x384xf32>
    %c0_3 = arith.constant 0 : index
    %c0_4 = arith.constant 0 : index
    %6 = vector.load %arg3[%c0_3, %c0_4] : memref<4x384xf32, #tpu.memory_space<vmem>>, vector<4x384xf32>
    %7 = vector.extract_strided_slice %6 {offsets = [0, 0], sizes = [1, 384], strides = [1, 1]} : vector<4x384xf32> to vector<1x384xf32>
    %8 = vector.extract_strided_slice %6 {offsets = [1, 0], sizes = [1, 384], strides = [1, 1]} : vector<4x384xf32> to vector<1x384xf32>
    %9 = vector.broadcast %8 : vector<1x384xf32> to vector<8x384xf32>
    %10 = arith.mulf %9, %4 : vector<8x384xf32>
    %11 = vector.broadcast %7 : vector<1x384xf32> to vector<8x384xf32>
    %12 = arith.addf %11, %10 : vector<8x384xf32>
    %13 = vector.extract_strided_slice %6 {offsets = [2, 0], sizes = [1, 384], strides = [1, 1]} : vector<4x384xf32> to vector<1x384xf32>
    %14 = vector.broadcast %13 : vector<1x384xf32> to vector<8x384xf32>
    %15 = arith.mulf %14, %5 : vector<8x384xf32>
    %16 = arith.addf %12, %15 : vector<8x384xf32>
    %17 = vector.extract_strided_slice %6 {offsets = [3, 0], sizes = [1, 384], strides = [1, 1]} : vector<4x384xf32> to vector<1x384xf32>
    %18 = arith.mulf %4, %5 : vector<8x384xf32>
    %19 = vector.broadcast %17 : vector<1x384xf32> to vector<8x384xf32>
    %20 = arith.mulf %19, %18 : vector<8x384xf32>
    %21 = arith.addf %16, %20 : vector<8x384xf32>
    %c0_5 = arith.constant 0 : index
    %c0_6 = arith.constant 0 : index
    %22 = vector.load %arg4[%c0_5, %c0_6] : memref<384x768xbf16, #tpu.memory_space<vmem>>, vector<384x768xbf16>
    %23 = arith.extf %22 : vector<384x768xbf16> to vector<384x768xf32>
    %cst_7 = arith.constant dense<0.000000e+00> : vector<8x768xf32>
    %24 = tpu.matmul %21, %23, %cst_7 {dimension_numbers = #tpu.dot_dimension_numbers<[1], [0], [0], [1], [0, 0, 1, 1], [], []>} : vector<8x384xf32>, vector<384x768xf32>, vector<8x768xf32> -> vector<8x768xf32>
    %25 = vector.extract_strided_slice %24 {offsets = [0, 0], sizes = [8, 384], strides = [1, 1]} : vector<8x768xf32> to vector<8x384xf32>
    %26 = vector.extract_strided_slice %24 {offsets = [0, 384], sizes = [8, 384], strides = [1, 1]} : vector<8x768xf32> to vector<8x384xf32>
    %c0_8 = arith.constant 0 : index
    %c0_9 = arith.constant 0 : index
    %27 = vector.load %arg5[%c0_8, %c0_9] : memref<4x384xf32, #tpu.memory_space<vmem>>, vector<4x384xf32>
    %28 = vector.extract_strided_slice %27 {offsets = [0, 0], sizes = [1, 384], strides = [1, 1]} : vector<4x384xf32> to vector<1x384xf32>
    %29 = vector.extract_strided_slice %27 {offsets = [1, 0], sizes = [1, 384], strides = [1, 1]} : vector<4x384xf32> to vector<1x384xf32>
    %30 = vector.broadcast %29 : vector<1x384xf32> to vector<8x384xf32>
    %31 = arith.mulf %30, %25 : vector<8x384xf32>
    %32 = vector.broadcast %28 : vector<1x384xf32> to vector<8x384xf32>
    %33 = arith.addf %32, %31 : vector<8x384xf32>
    %34 = vector.extract_strided_slice %27 {offsets = [2, 0], sizes = [1, 384], strides = [1, 1]} : vector<4x384xf32> to vector<1x384xf32>
    %35 = vector.broadcast %34 : vector<1x384xf32> to vector<8x384xf32>
    %36 = arith.mulf %35, %26 : vector<8x384xf32>
    %37 = arith.addf %33, %36 : vector<8x384xf32>
    %38 = vector.extract_strided_slice %27 {offsets = [3, 0], sizes = [1, 384], strides = [1, 1]} : vector<4x384xf32> to vector<1x384xf32>
    %39 = arith.mulf %25, %26 : vector<8x384xf32>
    %40 = vector.broadcast %38 : vector<1x384xf32> to vector<8x384xf32>
    %41 = arith.mulf %40, %39 : vector<8x384xf32>
    %42 = arith.addf %37, %41 : vector<8x384xf32>
    %c0_10 = arith.constant 0 : index
    %c0_11 = arith.constant 0 : index
    %43 = vector.load %arg6[%c0_10, %c0_11] : memref<384x768xbf16, #tpu.memory_space<vmem>>, vector<384x768xbf16>
    %44 = arith.extf %43 : vector<384x768xbf16> to vector<384x768xf32>
    %cst_12 = arith.constant dense<0.000000e+00> : vector<8x768xf32>
    %45 = tpu.matmul %42, %44, %cst_12 {dimension_numbers = #tpu.dot_dimension_numbers<[1], [0], [0], [1], [0, 0, 1, 1], [], []>} : vector<8x384xf32>, vector<384x768xf32>, vector<8x768xf32> -> vector<8x768xf32>
    %46 = vector.extract_strided_slice %45 {offsets = [0, 0], sizes = [8, 384], strides = [1, 1]} : vector<8x768xf32> to vector<8x384xf32>
    %47 = vector.extract_strided_slice %45 {offsets = [0, 384], sizes = [8, 384], strides = [1, 1]} : vector<8x768xf32> to vector<8x384xf32>
    %c0_13 = arith.constant 0 : index
    %c0_14 = arith.constant 0 : index
    %48 = vector.load %arg7[%c0_13, %c0_14] : memref<4x384xf32, #tpu.memory_space<vmem>>, vector<4x384xf32>
    %49 = vector.extract_strided_slice %48 {offsets = [0, 0], sizes = [1, 384], strides = [1, 1]} : vector<4x384xf32> to vector<1x384xf32>
    %50 = vector.extract_strided_slice %48 {offsets = [1, 0], sizes = [1, 384], strides = [1, 1]} : vector<4x384xf32> to vector<1x384xf32>
    %51 = vector.broadcast %50 : vector<1x384xf32> to vector<8x384xf32>
    %52 = arith.mulf %51, %46 : vector<8x384xf32>
    %53 = vector.broadcast %49 : vector<1x384xf32> to vector<8x384xf32>
    %54 = arith.addf %53, %52 : vector<8x384xf32>
    %55 = vector.extract_strided_slice %48 {offsets = [2, 0], sizes = [1, 384], strides = [1, 1]} : vector<4x384xf32> to vector<1x384xf32>
    %56 = vector.broadcast %55 : vector<1x384xf32> to vector<8x384xf32>
    %57 = arith.mulf %56, %47 : vector<8x384xf32>
    %58 = arith.addf %54, %57 : vector<8x384xf32>
    %59 = vector.extract_strided_slice %48 {offsets = [3, 0], sizes = [1, 384], strides = [1, 1]} : vector<4x384xf32> to vector<1x384xf32>
    %60 = arith.mulf %46, %47 : vector<8x384xf32>
    %61 = vector.broadcast %59 : vector<1x384xf32> to vector<8x384xf32>
    %62 = arith.mulf %61, %60 : vector<8x384xf32>
    %63 = arith.addf %58, %62 : vector<8x384xf32>
    %c0_15 = arith.constant 0 : index
    %c0_16 = arith.constant 0 : index
    %64 = vector.load %arg8[%c0_15, %c0_16] : memref<384x128xf32, #tpu.memory_space<vmem>>, vector<384x128xf32>
    %cst_17 = arith.constant dense<0.000000e+00> : vector<8x128xf32>
    %65 = tpu.matmul %63, %64, %cst_17 {dimension_numbers = #tpu.dot_dimension_numbers<[1], [0], [0], [1], [0, 0, 1, 1], [], []>} : vector<8x384xf32>, vector<384x128xf32>, vector<8x128xf32> -> vector<8x128xf32>
    %c0_18 = arith.constant 0 : index
    %c0_19 = arith.constant 0 : index
    %66 = vector.load %arg9[%c0_18, %c0_19] : memref<8x128xf32, #tpu.memory_space<vmem>>, vector<8x128xf32>
    tpu.vector_store %arg9[%c0_18, %c0_19], %65 {strides = array<i32>} : memref<8x128xf32, #tpu.memory_space<vmem>>, vector<8x128xf32>,
    return
  }
  func.func @transform_0(%arg0: i32) -> (i32, i32) {
    %c0_i32 = arith.constant 0 : i32
    %c0_i32_0 = arith.constant 0 : i32
    return %arg0, %c0_i32 : i32, i32
  }
  func.func @transform_1(%arg0: i32) -> (i32, i32) {
    %c0_i32 = arith.constant 0 : i32
    %c0_i32_0 = arith.constant 0 : i32
    %c0_i32_1 = arith.constant 0 : i32
    return %c0_i32, %c0_i32_0 : i32, i32
  }
  func.func @transform_2(%arg0: i32) -> (i32, i32) {
    %c0_i32 = arith.constant 0 : i32
    %c0_i32_0 = arith.constant 0 : i32
    %c0_i32_1 = arith.constant 0 : i32
    return %c0_i32, %c0_i32_0 : i32, i32
  }
  func.func @transform_3(%arg0: i32) -> (i32, i32) {
    %c0_i32 = arith.constant 0 : i32
    %c0_i32_0 = arith.constant 0 : i32
    %c0_i32_1 = arith.constant 0 : i32
    return %c0_i32, %c0_i32_0 : i32, i32
  }
  func.func @transform_4(%arg0: i32) -> (i32, i32) {
    %c0_i32 = arith.constant 0 : i32
    %c0_i32_0 = arith.constant 0 : i32
    %c0_i32_1 = arith.constant 0 : i32
    return %c0_i32, %c0_i32_0 : i32, i32
  }
  func.func @transform_5(%arg0: i32) -> (i32, i32) {
    %c0_i32 = arith.constant 0 : i32
    %c0_i32_0 = arith.constant 0 : i32
    %c0_i32_1 = arith.constant 0 : i32
    return %c0_i32, %c0_i32_0 : i32, i32
  }
  func.func @transform_6(%arg0: i32) -> (i32, i32) {
    %c0_i32 = arith.constant 0 : i32
    %c0_i32_0 = arith.constant 0 : i32
    %c0_i32_1 = arith.constant 0 : i32
    return %c0_i32, %c0_i32_0 : i32, i32
  }
  func.func @transform_7(%arg0: i32) -> (i32, i32) {
    %c0_i32 = arith.constant 0 : i32
    %c0_i32_0 = arith.constant 0 : i32
    %c0_i32_1 = arith.constant 0 : i32
    return %c0_i32, %c0_i32_0 : i32, i32
  }
  func.func @transform_8(%arg0: i32) -> (i32, i32) {
    %c0_i32 = arith.constant 0 : i32
    %c0_i32_0 = arith.constant 0 : i32
    return %arg0, %c0_i32 : i32, i32
  }
}

</mosaic_0001>

<llo_original>
// kernel: tpu_custom_call.1
$region0: #{tpu_custom_call.1}
  #allocation0 [shape = 'u32[]', space=smem, size = 0x4, offset = 0x4, fixed_abs, tag = 'smem constant byte address 0x4 - core index']
  #allocation1 [shape = 'u32[144,128]{1,0:T(1,128)}', space=vmem, size = 0x12000, scoped, tag = 'internal scratch']
  %s0 = inlined_call_operand.hbm [shape: f32[16,193], index: 0, kind: input, shape index: {}]
  %s1 = inlined_call_operand.hbm [shape: bf16[193,768], index: 1, kind: input, shape index: {}]
  %s2 = inlined_call_operand.hbm [shape: f32[4,384], index: 2, kind: input, shape index: {}]
  %s3 = inlined_call_operand.hbm [shape: bf16[384,768], index: 3, kind: input, shape index: {}]
  %s4 = inlined_call_operand.vmem [shape: f32[4,384], index: 4, kind: input, shape index: {}]
  %s5 = inlined_call_operand.hbm [shape: bf16[384,768], index: 5, kind: input, shape index: {}]
  %s6 = inlined_call_operand.hbm [shape: f32[4,384], index: 6, kind: input, shape index: {}]
  %s7 = inlined_call_operand.hbm [shape: f32[384,128], index: 7, kind: input, shape index: {}]
  %s8 = inlined_call_operand.hbm [shape: f32[16,128], index: 8, kind: output, shape index: {}]
  %s9 = sld [smem:[#allocation0]]
  $region93: #{tpu_custom_call.1} parent=0
    _
  %s11 = ssub.s32 1, %s9
  %s12 = scalar_select 0, %s11, %s9
  $region1: #{tpu_custom_call.1} parent=0
    #allocation2 [shape = 'u8[16384]{0}', space=vmem, size = 0x4000, scoped, tag = 'input window, operand 0']
    #allocation3 [shape = 's32[2]{0}', space=sflag, size = 0x8, scoped, tag = 'scoped memory for tpu_custom_call.1']
    #allocation4 [shape = 's32[2]{0}', space=sflag, size = 0x8, scoped, tag = 'scoped memory for tpu_custom_call.1']
    #allocation5 [shape = 'u8[307200]{0}', space=vmem, size = 0x4b000, scoped, tag = 'input window, operand 1, single buffered']
    #allocation6 [shape = 's32[1]{0}', space=sflag, size = 0x4, scoped, tag = 'scoped memory for tpu_custom_call.1']
    #allocation7 [shape = 'u8[6144]{0}', space=vmem, size = 0x1800, scoped, tag = 'input window, operand 2, single buffered']
    #allocation8 [shape = 'u8[589824]{0}', space=vmem, size = 0x90000, scoped, tag = 'input window, operand 3, single buffered']
    #allocation9 [shape = 's32[1]{0}', space=sflag, size = 0x4, scoped, tag = 'scoped memory for tpu_custom_call.1']
    #allocation10 [shape = 'u8[589824]{0}', space=vmem, size = 0x90000, scoped, tag = 'input window, operand 5, single buffered']
    #allocation11 [shape = 'u8[6144]{0}', space=vmem, size = 0x1800, scoped, tag = 'input window, operand 6, single buffered']
    #allocation12 [shape = 's32[1]{0}', space=sflag, size = 0x4, scoped, tag = 'scoped memory for tpu_custom_call.1']
    #allocation13 [shape = 'u8[196608]{0}', space=vmem, size = 0x30000, scoped, tag = 'input window, operand 7, single buffered']
    #allocation14 [shape = 'u8[8192]{0}', space=vmem, size = 0x2000, scoped, tag = 'output window, operand 0']
    %13 = vsyncpa [#allocation3], 0
    %s14 = scalar_lea.sflag [#allocation3], 1
    %15 = vsyncpa %s14, 0
    %16 = vsyncpa [#allocation6], 0
    %17 = vsyncpa [#allocation9], 0
    %18 = vsyncpa [#allocation12], 0
    %19 = vsyncpa [#allocation4], 0
    %s20 = scalar_lea.sflag [#allocation4], 1
    %21 = vsyncpa %s20, 0
    loop: start=0, step=1, limit=4
    $region2: #{tpu_custom_call.1} parent=1 // loop_pre_header
      _
    $region3: #{tpu_custom_call.1} parent=1 // loop_header
      %s23 = sphi 0, %s27
      %p24 = scmp.ge.s32.totalorder %s23, 4
      %s33 = sphi 0, %s35
      %s36 = sphi 0, %s33
      %s37 = sphi 0, %s36
      %s53 = sphi 0, %s37
      %s57 = sphi 0, %s57
      %s59 = sphi 0, %s57
      %s60 = sphi 0, %s59
      %s74 = sphi 0, %s60
      %s78 = sphi 0, %s78
      %s80 = sphi 0, %s78
      %s81 = sphi 0, %s80
      %s95 = sphi 0, %s81
      %s99 = sphi 0, %s99
      %s101 = sphi 0, %s99
      %s102 = sphi 0, %s101
      %s116 = sphi 0, %s102
      %s120 = sphi 0, %s120
      %s122 = sphi 0, %s120
      %s123 = sphi 0, %s122
      %s137 = sphi 0, %s123
      %s141 = sphi 0, %s141
      %s143 = sphi 0, %s141
      %s144 = sphi 0, %s143
      %s158 = sphi 0, %s144
      %s162 = sphi 0, %s162
      %s164 = sphi 0, %s162
      %s165 = sphi 0, %s164
      %s179 = sphi 0, %s165
      %s183 = sphi 0, %s183
      %s185 = sphi 0, %s183
      %s186 = sphi 0, %s185
      %s200 = sphi 0, %s186
      %s206 = sphi 0, %s208
      %s209 = sphi 0, %s206
      %s210 = sphi 0, %s209
      %s226 = sphi 0, %s210
    $region4: #{tpu_custom_call.1} parent=1 // loop_header_branch
      %26 = sbr.rel (%p24) target = $region8
    $region5: #{tpu_custom_call.1} parent=1 // loop_body
      %s28 = ssub.s32 %s23, 1
      %s29 = ssub.s32 %s23, 2
      %s30 = sadd.s32 %s23, 1
      %s31 = ssub.s32 %s23, %s30
      %p32 = scmp.eq.s32.totalorder %s31, 0
      %s34 = sadd.s32 %s33, 1
      %s35 = scalar_select %p32, %s33, %s34
      %p38 = pneg %p32
      %p39 = scmp.eq.s32.totalorder %s23, 1
      %p40 = por %p38, %p39
      %p41 = scmp.ne.s32.totalorder %s33, %s36
      %p42 = scmp.eq.s32.totalorder %s23, 0
      %p43 = por %p41, %p42
      %p44 = scmp.ne.s32.totalorder %s33, %s36
      %p45 = scmp.eq.s32.totalorder %s28, 1
      %p46 = por %p44, %p45
      %p47 = scmp.ne.s32.totalorder %s36, %s37
      %p48 = scmp.eq.s32.totalorder %s28, 0
      %p49 = por %p47, %p48
      %p50 = scmp.ne.s32.totalorder %s36, %s37
      %p51 = scmp.eq.s32.totalorder %s29, 1
      %p52 = por %p50, %p51
      %p54 = scmp.ne.s32.totalorder %s37, %s53
      %p55 = scmp.eq.s32.totalorder %s29, 0
      %p56 = por %p54, %p55
      %s58 = sadd.s32 %s57, 1
      %p61 = scmp.eq.s32.totalorder %s23, 1
      %p62 = scmp.ne.s32.totalorder %s57, %s59
      %p63 = scmp.eq.s32.totalorder %s23, 0
      %p64 = por %p62, %p63
      %p65 = scmp.ne.s32.totalorder %s57, %s59
      %p66 = scmp.eq.s32.totalorder %s28, 1
      %p67 = por %p65, %p66
      %p68 = scmp.ne.s32.totalorder %s59, %s60
      %p69 = scmp.eq.s32.totalorder %s28, 0
      %p70 = por %p68, %p69
      %p71 = scmp.ne.s32.totalorder %s59, %s60
      %p72 = scmp.eq.s32.totalorder %s29, 1
      %p73 = por %p71, %p72
      %p75 = scmp.ne.s32.totalorder %s60, %s74
      %p76 = scmp.eq.s32.totalorder %s29, 0
      %p77 = por %p75, %p76
      %s79 = sadd.s32 %s78, 1
      %p82 = scmp.eq.s32.totalorder %s23, 1
      %p83 = scmp.ne.s32.totalorder %s78, %s80
      %p84 = scmp.eq.s32.totalorder %s23, 0
      %p85 = por %p83, %p84
      %p86 = scmp.ne.s32.totalorder %s78, %s80
      %p87 = scmp.eq.s32.totalorder %s28, 1
      %p88 = por %p86, %p87
      %p89 = scmp.ne.s32.totalorder %s80, %s81
      %p90 = scmp.eq.s32.totalorder %s28, 0
      %p91 = por %p89, %p90
      %p92 = scmp.ne.s32.totalorder %s80, %s81
      %p93 = scmp.eq.s32.totalorder %s29, 1
      %p94 = por %p92, %p93
      %p96 = scmp.ne.s32.totalorder %s81, %s95
      %p97 = scmp.eq.s32.totalorder %s29, 0
      %p98 = por %p96, %p97
      %s100 = sadd.s32 %s99, 1
      %p103 = scmp.eq.s32.totalorder %s23, 1
      %p104 = scmp.ne.s32.totalorder %s99, %s101
      %p105 = scmp.eq.s32.totalorder %s23, 0
      %p106 = por %p104, %p105
      %p107 = scmp.ne.s32.totalorder %s99, %s101
      %p108 = scmp.eq.s32.totalorder %s28, 1
      %p109 = por %p107, %p108
      %p110 = scmp.ne.s32.totalorder %s101, %s102
      %p111 = scmp.eq.s32.totalorder %s28, 0
      %p112 = por %p110, %p111
      %p113 = scmp.ne.s32.totalorder %s101, %s102
      %p114 = scmp.eq.s32.totalorder %s29, 1
      %p115 = por %p113, %p114
      %p117 = scmp.ne.s32.totalorder %s102, %s116
      %p118 = scmp.eq.s32.totalorder %s29, 0
      %p119 = por %p117, %p118
      %s121 = sadd.s32 %s120, 1
      %p124 = scmp.eq.s32.totalorder %s23, 1
      %p125 = scmp.ne.s32.totalorder %s120, %s122
      %p126 = scmp.eq.s32.totalorder %s23, 0
      %p127 = por %p125, %p126
      %p128 = scmp.ne.s32.totalorder %s120, %s122
      %p129 = scmp.eq.s32.totalorder %s28, 1
      %p130 = por %p128, %p129
      %p131 = scmp.ne.s32.totalorder %s122, %s123
      %p132 = scmp.eq.s32.totalorder %s28, 0
      %p133 = por %p131, %p132
      %p134 = scmp.ne.s32.totalorder %s122, %s123
      %p135 = scmp.eq.s32.totalorder %s29, 1
      %p136 = por %p134, %p135
      %p138 = scmp.ne.s32.totalorder %s123, %s137
      %p139 = scmp.eq.s32.totalorder %s29, 0
      %p140 = por %p138, %p139
      %s142 = sadd.s32 %s141, 1
      %p145 = scmp.eq.s32.totalorder %s23, 1
      %p146 = scmp.ne.s32.totalorder %s141, %s143
      %p147 = scmp.eq.s32.totalorder %s23, 0
      %p148 = por %p146, %p147
      %p149 = scmp.ne.s32.totalorder %s141, %s143
      %p150 = scmp.eq.s32.totalorder %s28, 1
      %p151 = por %p149, %p150
      %p152 = scmp.ne.s32.totalorder %s143, %s144
      %p153 = scmp.eq.s32.totalorder %s28, 0
      %p154 = por %p152, %p153
      %p155 = scmp.ne.s32.totalorder %s143, %s144
      %p156 = scmp.eq.s32.totalorder %s29, 1
      %p157 = por %p155, %p156
      %p159 = scmp.ne.s32.totalorder %s144, %s158
      %p160 = scmp.eq.s32.totalorder %s29, 0
      %p161 = por %p159, %p160
      %s163 = sadd.s32 %s162, 1
      %p166 = scmp.eq.s32.totalorder %s23, 1
      %p167 = scmp.ne.s32.totalorder %s162, %s164
      %p168 = scmp.eq.s32.totalorder %s23, 0
      %p169 = por %p167, %p168
      %p170 = scmp.ne.s32.totalorder %s162, %s164
      %p171 = scmp.eq.s32.totalorder %s28, 1
      %p172 = por %p170, %p171
      %p173 = scmp.ne.s32.totalorder %s164, %s165
      %p174 = scmp.eq.s32.totalorder %s28, 0
      %p175 = por %p173, %p174
      %p176 = scmp.ne.s32.totalorder %s164, %s165
      %p177 = scmp.eq.s32.totalorder %s29, 1
      %p178 = por %p176, %p177
      %p180 = scmp.ne.s32.totalorder %s165, %s179
      %p181 = scmp.eq.s32.totalorder %s29, 0
      %p182 = por %p180, %p181
      %s184 = sadd.s32 %s183, 1
      %p187 = scmp.eq.s32.totalorder %s23, 1
      %p188 = scmp.ne.s32.totalorder %s183, %s185
      %p189 = scmp.eq.s32.totalorder %s23, 0
      %p190 = por %p188, %p189
      %p191 = scmp.ne.s32.totalorder %s183, %s185
      %p192 = scmp.eq.s32.totalorder %s28, 1
      %p193 = por %p191, %p192
      %p194 = scmp.ne.s32.totalorder %s185, %s186
      %p195 = scmp.eq.s32.totalorder %s28, 0
      %p196 = por %p194, %p195
      %p197 = scmp.ne.s32.totalorder %s185, %s186
      %p198 = scmp.eq.s32.totalorder %s29, 1
      %p199 = por %p197, %p198
      %p201 = scmp.ne.s32.totalorder %s186, %s200
      %p202 = scmp.eq.s32.totalorder %s29, 0
      %p203 = por %p201, %p202
      %s204 = ssub.s32 %s23, %s30
      %p205 = scmp.eq.s32.totalorder %s204, 0
      %s207 = sadd.s32 %s206, 1
      %s208 = scalar_select %p205, %s206, %s207
      %p211 = pneg %p205
      %p212 = scmp.eq.s32.totalorder %s23, 1
      %p213 = por %p211, %p212
      %p214 = scmp.ne.s32.totalorder %s206, %s209
      %p215 = scmp.eq.s32.totalorder %s23, 0
      %p216 = por %p214, %p215
      %p217 = scmp.ne.s32.totalorder %s206, %s209
      %p218 = scmp.eq.s32.totalorder %s28, 1
      %p219 = por %p217, %p218
      %p220 = scmp.ne.s32.totalorder %s209, %s210
      %p221 = scmp.eq.s32.totalorder %s28, 0
      %p222 = por %p220, %p221
      %p223 = scmp.ne.s32.totalorder %s209, %s210
      %p224 = scmp.eq.s32.totalorder %s29, 1
      %p225 = por %p223, %p224
      %p227 = scmp.ne.s32.totalorder %s210, %s226
      %p228 = scmp.eq.s32.totalorder %s29, 0
      %p229 = por %p227, %p228
      %p230 = scmp.le.s32.totalorder 1, %s23
      %p231 = scmp.lt.s32.totalorder %s23, 3
      %p232 = pnand %p230, %p231
      %p233 = pneg %p232
      // Predicated region
      $region9: #{tpu_custom_call.1} parent=5 // pred_check
        _
      $region10: #{tpu_custom_call.1} parent=5 // pred_check_branch
        %235 = sbr.rel (%p232) target = $region12
      $region11: #{tpu_custom_call.1} parent=5 // pred_region
        %s236 = ssub.s32 %s23, 1
        // Predicated region
        $region13: #{tpu_custom_call.1} parent=11 // pred_check
          %p237 = pneg %p70
        $region14: #{tpu_custom_call.1} parent=11 // pred_check_branch
          %239 = sbr.rel (%p237) target = $region16
        $region15: #{tpu_custom_call.1} parent=11 // pred_region
          %s241 = ssub.s32 9600, 9600
          %242 = vsyncadd [#allocation6], %s241
          %s243 = sshll.u32 [#allocation5], 4
          %s244 = int_to_ptr.vmem [resolvable:$true] %s243
          %249 = dma.hbm_to_vmem [thread:$0]  %s1, 9600, %s244, [#allocation6], 384, 384, 24
        $region16: #{tpu_custom_call.1} parent=11 // pred_fallthru
          _
        // Predicated region
        $region17: #{tpu_custom_call.1} parent=11 // pred_check
          %p250 = pneg %p91
        $region18: #{tpu_custom_call.1} parent=11 // pred_check_branch
          %252 = sbr.rel (%p250) target = $region20
        $region19: #{tpu_custom_call.1} parent=11 // pred_region
          %s254 = ssub.s32 192, 192
          %255 = vsyncadd [#allocation6], %s254
          %s257 = sshll.u32 [#allocation7], 4
          %s258 = int_to_ptr.vmem [resolvable:$true] %s257
          %260 = dma.hbm_to_vmem [thread:$0]  %s2, 192, %s258, [#allocation6]
        $region20: #{tpu_custom_call.1} parent=11 // pred_fallthru
          _
        // Predicated region
        $region21: #{tpu_custom_call.1} parent=11 // pred_check
          %p261 = pneg %p112
        $region22: #{tpu_custom_call.1} parent=11 // pred_check_branch
          %263 = sbr.rel (%p261) target = $region24
        $region23: #{tpu_custom_call.1} parent=11 // pred_region
          %s265 = ssub.s32 18432, 18432
          %266 = vsyncadd [#allocation9], %s265
          %s267 = sshll.u32 [#allocation8], 4
          %s268 = int_to_ptr.vmem [resolvable:$true] %s267
          %273 = dma.hbm_to_vmem [thread:$0]  %s3, 18432, %s268, [#allocation9], 384, 384, 24
        $region24: #{tpu_custom_call.1} parent=11 // pred_fallthru
          _
        // Predicated region
        $region25: #{tpu_custom_call.1} parent=11 // pred_check
          %p274 = pneg %p133
        $region26: #{tpu_custom_call.1} parent=11 // pred_check_branch
          %276 = sbr.rel (%p274) target = $region28
        $region27: #{tpu_custom_call.1} parent=11 // pred_region
          _
        $region28: #{tpu_custom_call.1} parent=11 // pred_fallthru
          _
        // Predicated region
        $region29: #{tpu_custom_call.1} parent=11 // pred_check
          %p277 = pneg %p154
        $region30: #{tpu_custom_call.1} parent=11 // pred_check_branch
          %279 = sbr.rel (%p277) target = $region32
        $region31: #{tpu_custom_call.1} parent=11 // pred_region
          %s281 = ssub.s32 18432, 18432
          %282 = vsyncadd [#allocation9], %s281
          %s283 = sshll.u32 [#allocation10], 4
          %s284 = int_to_ptr.vmem [resolvable:$true] %s283
          %289 = dma.hbm_to_vmem [thread:$0]  %s5, 18432, %s284, [#allocation9], 384, 384, 24
        $region32: #{tpu_custom_call.1} parent=11 // pred_fallthru
          _
        // Predicated region
        $region33: #{tpu_custom_call.1} parent=11 // pred_check
          %p290 = pneg %p175
        $region34: #{tpu_custom_call.1} parent=11 // pred_check_branch
          %292 = sbr.rel (%p290) target = $region36
        $region35: #{tpu_custom_call.1} parent=11 // pred_region
          %s294 = ssub.s32 192, 192
          %295 = vsyncadd [#allocation12], %s294
          %s297 = sshll.u32 [#allocation11], 4
          %s298 = int_to_ptr.vmem [resolvable:$true] %s297
          %300 = dma.hbm_to_vmem [thread:$0]  %s6, 192, %s298, [#allocation12]
        $region36: #{tpu_custom_call.1} parent=11 // pred_fallthru
          _
        // Predicated region
        $region37: #{tpu_custom_call.1} parent=11 // pred_check
          %p301 = pneg %p196
        $region38: #{tpu_custom_call.1} parent=11 // pred_check_branch
          %303 = sbr.rel (%p301) target = $region40
        $region39: #{tpu_custom_call.1} parent=11 // pred_region
          %s305 = ssub.s32 6144, 6144
          %306 = vsyncadd [#allocation12], %s305
          %s307 = sshll.u32 [#allocation13], 4
          %s308 = int_to_ptr.vmem [resolvable:$true] %s307
          %313 = dma.hbm_to_vmem [thread:$0]  %s7, 6144, %s308, [#allocation12], 128, 128, 8
        $region40: #{tpu_custom_call.1} parent=11 // pred_fallthru
          _
      $region12: #{tpu_custom_call.1} parent=5 // pred_fallthru
        _
      %p314 = scmp.lt.s32.totalorder %s23, 2
      // Predicated region
      $region41: #{tpu_custom_call.1} parent=5 // pred_check
        %p315 = pneg %p314
      $region42: #{tpu_custom_call.1} parent=5 // pred_check_branch
        %317 = sbr.rel (%p315) target = $region44
      $region43: #{tpu_custom_call.1} parent=5 // pred_region
        // Predicated region
        $region45: #{tpu_custom_call.1} parent=43 // pred_check
          %p318 = pneg %p43
        $region46: #{tpu_custom_call.1} parent=43 // pred_check_branch
          %320 = sbr.rel (%p318) target = $region48
        $region47: #{tpu_custom_call.1} parent=43 // pred_region
          %s321 = sand.u32 %s33, 1
          %s322 = scalar_lea.sflag [#allocation3], %s321
          %s323 = sand.u32 %s33, 1
          %s324 = smul.addr %s323, 16
          %s325 = scalar_lea.vmem [#allocation2], %s324
          %s327 = ssub.s32 256, 256
          %328 = vsyncadd %s322, %s327
          %s329 = smul.addr %s23, 2
          %s330 = smul.addr %s329, 128
          %s331 = scalar_lea.hbm %s0, %s330
          %s333 = sshll.u32 %s325, 4
          %s334 = int_to_ptr.vmem [resolvable:$true] %s333
          %336 = dma.hbm_to_vmem [thread:$0]  %s331, 256, %s334, %s322
        $region48: #{tpu_custom_call.1} parent=43 // pred_fallthru
          _
      $region44: #{tpu_custom_call.1} parent=5 // pred_fallthru
        _
      %p337 = scmp.le.s32.totalorder 1, %s23
      %p338 = scmp.lt.s32.totalorder %s23, 3
      %p339 = pnand %p337, %p338
      %p340 = pneg %p339
      // Predicated region
      $region49: #{tpu_custom_call.1} parent=5 // pred_check
        _
      $region50: #{tpu_custom_call.1} parent=5 // pred_check_branch
        %342 = sbr.rel (%p339) target = $region52
      $region51: #{tpu_custom_call.1} parent=5 // pred_region
        %s343 = ssub.s32 %s23, 1
        %s344 = sand.u32 %s36, 1
        %s345 = scalar_lea.sflag [#allocation3], %s344
        %s346 = sand.u32 %s36, 1
        %s347 = smul.addr %s346, 16
        %s348 = scalar_lea.vmem [#allocation2], %s347
        // Predicated region
        $region53: #{tpu_custom_call.1} parent=51 // pred_check
          %p349 = pneg %p49
        $region54: #{tpu_custom_call.1} parent=51 // pred_check_branch
          %351 = sbr.rel (%p349) target = $region56
        $region55: #{tpu_custom_call.1} parent=51 // pred_region
          %352 = dma.done %s345, 256
        $region56: #{tpu_custom_call.1} parent=51 // pred_fallthru
          _
        // Predicated region
        $region57: #{tpu_custom_call.1} parent=51 // pred_check
          %p353 = pneg %p70
        $region58: #{tpu_custom_call.1} parent=51 // pred_check_branch
          %355 = sbr.rel (%p353) target = $region60
        $region59: #{tpu_custom_call.1} parent=51 // pred_region
          %356 = dma.done [#allocation6], 9600
        $region60: #{tpu_custom_call.1} parent=51 // pred_fallthru
          _
        // Predicated region
        $region61: #{tpu_custom_call.1} parent=51 // pred_check
          %p357 = pneg %p91
        $region62: #{tpu_custom_call.1} parent=51 // pred_check_branch
          %359 = sbr.rel (%p357) target = $region64
        $region63: #{tpu_custom_call.1} parent=51 // pred_region
          %360 = dma.done [#allocation6], 192
        $region64: #{tpu_custom_call.1} parent=51 // pred_fallthru
          _
        // Predicated region
        $region65: #{tpu_custom_call.1} parent=51 // pred_check
          %p361 = pneg %p112
        $region66: #{tpu_custom_call.1} parent=51 // pred_check_branch
          %363 = sbr.rel (%p361) target = $region68
        $region67: #{tpu_custom_call.1} parent=51 // pred_region
          %364 = dma.done [#allocation9], 18432
        $region68: #{tpu_custom_call.1} parent=51 // pred_fallthru
          _
        // Predicated region
        $region69: #{tpu_custom_call.1} parent=51 // pred_check
          %p365 = pneg %p154
        $region70: #{tpu_custom_call.1} parent=51 // pred_check_branch
          %367 = sbr.rel (%p365) target = $region72
        $region71: #{tpu_custom_call.1} parent=51 // pred_region
          %368 = dma.done [#allocation9], 18432
        $region72: #{tpu_custom_call.1} parent=51 // pred_fallthru
          _
        // Predicated region
        $region73: #{tpu_custom_call.1} parent=51 // pred_check
          %p369 = pneg %p175
        $region74: #{tpu_custom_call.1} parent=51 // pred_check_branch
          %371 = sbr.rel (%p369) target = $region76
        $region75: #{tpu_custom_call.1} parent=51 // pred_region
          %372 = dma.done [#allocation12], 192
        $region76: #{tpu_custom_call.1} parent=51 // pred_fallthru
          _
        // Predicated region
        $region77: #{tpu_custom_call.1} parent=51 // pred_check
          %p373 = pneg %p196
        $region78: #{tpu_custom_call.1} parent=51 // pred_check_branch
          %375 = sbr.rel (%p373) target = $region80
        $region79: #{tpu_custom_call.1} parent=51 // pred_region
          %376 = dma.done [#allocation12], 6144
        $region80: #{tpu_custom_call.1} parent=51 // pred_fallthru
          _
        %s377 = sand.u32 %s36, 1
        %s378 = scalar_lea.sflag [#allocation3], %s377
        %s379 = sand.u32 %s36, 1
        %s380 = smul.addr %s379, 16
        %s381 = scalar_lea.vmem [#allocation2], %s380
        %p382 = pneg %p49
        %p383 = pneg %p46
        %p384 = pneg %p70
        %p385 = pneg %p67
        %p386 = pneg %p91
        %p387 = pneg %p88
        %p388 = pneg %p112
        %p389 = pneg %p109
        %p390 = pneg %p133
        %p391 = pneg %p130
        %p392 = pneg %p154
        %p393 = pneg %p151
        %p394 = pneg %p175
        %p395 = pneg %p172
        %p396 = pneg %p196
        %p397 = pneg %p193
        %p398 = pneg %p222
        %p399 = pneg %p219
        %s400 = sand.u32 %s209, 1
        %s401 = scalar_lea.sflag [#allocation4], %s400
        %s402 = sand.u32 %s209, 1
        %s403 = smul.addr %s402, 8
        %s404 = scalar_lea.vmem [#allocation14], %s403
        %v405 = vld [vmem:[%s348] sm:$0xff]
        %v406 = vld [vmem:[%s348 + $0x8] sm:$0xff]
        %v407 = vld [vmem:[#allocation5] sm:$0xff]
        %v408 = vld [vmem:[#allocation5 + $0x8] sm:$0xff]
        %v409 = vld [vmem:[#allocation5 + $0x10] sm:$0xff]
        %v410 = vld [vmem:[#allocation5 + $0x18] sm:$0xff]
        %v411 = vld [vmem:[#allocation5 + $0x20] sm:$0xff]
        %v412 = vld [vmem:[#allocation5 + $0x28] sm:$0xff]
        %v413 = vld [vmem:[#allocation5 + $0x30] sm:$0xff]
        %v414 = vld [vmem:[#allocation5 + $0x38] sm:$0xff]
        %v415 = vld [vmem:[#allocation5 + $0x40] sm:$0xff]
        %v416 = vld [vmem:[#allocation5 + $0x48] sm:$0xff]
        %v417 = vld [vmem:[#allocation5 + $0x50] sm:$0xff]
        %v418 = vld [vmem:[#allocation5 + $0x58] sm:$0xff]
        %v419 = vld [vmem:[#allocation5 + $0x60] sm:$0xff]
        %v420 = vld [vmem:[#allocation5 + $0x68] sm:$0xff]
        %v421 = vld [vmem:[#allocation5 + $0x70] sm:$0xff]
        %v422 = vld [vmem:[#allocation5 + $0x78] sm:$0xff]
        %v423 = vld [vmem:[#allocation5 + $0x80] sm:$0xff]
        %v424 = vld [vmem:[#allocation5 + $0x88] sm:$0xff]
        %v425 = vld [vmem:[#allocation5 + $0x90] sm:$0xff]
        %v426 = vld [vmem:[#allocation5 + $0x98] sm:$0xff]
        %v427 = vld [vmem:[#allocation5 + $0xa0] sm:$0xff]
        %v428 = vld [vmem:[#allocation5 + $0xa8] sm:$0xff]
        %v429 = vld [vmem:[#allocation5 + $0xb0] sm:$0xff]
        %v430 = vld [vmem:[#allocation5 + $0xb8] sm:$0xff]
        %v431 = vld [vmem:[#allocation5 + $0xc0] sm:$0xff]
        %v432 = vld [vmem:[#allocation5 + $0xc8] sm:$0xff]
        %v433 = vld [vmem:[#allocation5 + $0xd0] sm:$0xff]
        %v434 = vld [vmem:[#allocation5 + $0xd8] sm:$0xff]
        %v435 = vld [vmem:[#allocation5 + $0xe0] sm:$0xff]
        %v436 = vld [vmem:[#allocation5 + $0xe8] sm:$0xff]
        %v437 = vld [vmem:[#allocation5 + $0xf0] sm:$0xff]
        %v438 = vld [vmem:[#allocation5 + $0xf8] sm:$0xff]
        %v439 = vld [vmem:[#allocation5 + $0x100] sm:$0xff]
        %v440 = vld [vmem:[#allocation5 + $0x108] sm:$0xff]
        %v441 = vld [vmem:[#allocation5 + $0x110] sm:$0xff]
        %v442 = vld [vmem:[#allocation5 + $0x118] sm:$0xff]
        %v443 = vld [vmem:[#allocation5 + $0x120] sm:$0xff]
        %v444 = vld [vmem:[#allocation5 + $0x128] sm:$0xff]
        %v445 = vld [vmem:[#allocation5 + $0x130] sm:$0xff]
        %v446 = vld [vmem:[#allocation5 + $0x138] sm:$0xff]
        %v447 = vld [vmem:[#allocation5 + $0x140] sm:$0xff]
        %v448 = vld [vmem:[#allocation5 + $0x148] sm:$0xff]
        %v449 = vld [vmem:[#allocation5 + $0x150] sm:$0xff]
        %v450 = vld [vmem:[#allocation5 + $0x158] sm:$0xff]
        %v451 = vld [vmem:[#allocation5 + $0x160] sm:$0xff]
        %v452 = vld [vmem:[#allocation5 + $0x168] sm:$0xff]
        %v453 = vld [vmem:[#allocation5 + $0x170] sm:$0xff]
        %v454 = vld [vmem:[#allocation5 + $0x178] sm:$0xff]
        %v455 = vld [vmem:[#allocation5 + $0x180] sm:$0xff]
        %v456 = vld [vmem:[#allocation5 + $0x188] sm:$0xff]
        %v457 = vld [vmem:[#allocation5 + $0x190] sm:$0xff]
        %v458 = vld [vmem:[#allocation5 + $0x198] sm:$0xff]
        %v459 = vld [vmem:[#allocation5 + $0x1a0] sm:$0xff]
        %v460 = vld [vmem:[#allocation5 + $0x1a8] sm:$0xff]
        %v461 = vld [vmem:[#allocation5 + $0x1b0] sm:$0xff]
        %v462 = vld [vmem:[#allocation5 + $0x1b8] sm:$0xff]
        %v463 = vld [vmem:[#allocation5 + $0x1c0] sm:$0xff]
        %v464 = vld [vmem:[#allocation5 + $0x1c8] sm:$0xff]
        %v465 = vld [vmem:[#allocation5 + $0x1d0] sm:$0xff]
        %v466 = vld [vmem:[#allocation5 + $0x1d8] sm:$0xff]
        %v467 = vld [vmem:[#allocation5 + $0x1e0] sm:$0xff]
        %v468 = vld [vmem:[#allocation5 + $0x1e8] sm:$0xff]
        %v469 = vld [vmem:[#allocation5 + $0x1f0] sm:$0xff]
        %v470 = vld [vmem:[#allocation5 + $0x1f8] sm:$0xff]
        %v471 = vld [vmem:[#allocation5 + $0x200] sm:$0xff]
        %v472 = vld [vmem:[#allocation5 + $0x208] sm:$0xff]
        %v473 = vld [vmem:[#allocation5 + $0x210] sm:$0xff]
        %v474 = vld [vmem:[#allocation5 + $0x218] sm:$0xff]
        %v475 = vld [vmem:[#allocation5 + $0x220] sm:$0xff]
        %v476 = vld [vmem:[#allocation5 + $0x228] sm:$0xff]
        %v477 = vld [vmem:[#allocation5 + $0x230] sm:$0xff]
        %v478 = vld [vmem:[#allocation5 + $0x238] sm:$0xff]
        %v479 = vld [vmem:[#allocation5 + $0x240] sm:$0x11]
        %v480 = vld [vmem:[#allocation5 + $0x248] sm:$0x11]
        %v481 = vld [vmem:[#allocation5 + $0x250] sm:$0x11]
        %v482 = vunpack.c.l.bf16 %v407
        %v483 = vunpack.c.h.bf16 %v407
        %v484 = vunpack.c.l.bf16 %v408
        %v485 = vunpack.c.h.bf16 %v408
        %v486 = vunpack.c.l.bf16 %v409
        %v487 = vunpack.c.h.bf16 %v409
        %v488 = vunpack.c.l.bf16 %v410
        %v489 = vunpack.c.h.bf16 %v410
        %v490 = vunpack.c.l.bf16 %v411
        %v491 = vunpack.c.h.bf16 %v411
        %v492 = vunpack.c.l.bf16 %v412
        %v493 = vunpack.c.h.bf16 %v412
        %v494 = vunpack.c.l.bf16 %v413
        %v495 = vunpack.c.h.bf16 %v413
        %v496 = vunpack.c.l.bf16 %v414
        %v497 = vunpack.c.h.bf16 %v414
        %v498 = vunpack.c.l.bf16 %v415
        %v499 = vunpack.c.h.bf16 %v415
        %v500 = vunpack.c.l.bf16 %v416
        %v501 = vunpack.c.h.bf16 %v416
        %v502 = vunpack.c.l.bf16 %v417
        %v503 = vunpack.c.h.bf16 %v417
        %v504 = vunpack.c.l.bf16 %v418
        %v505 = vunpack.c.h.bf16 %v418
        %v506 = vunpack.c.l.bf16 %v419
        %v507 = vunpack.c.h.bf16 %v419
        %v508 = vunpack.c.l.bf16 %v420
        %v509 = vunpack.c.h.bf16 %v420
        %v510 = vunpack.c.l.bf16 %v421
        %v511 = vunpack.c.h.bf16 %v421
        %v512 = vunpack.c.l.bf16 %v422
        %v513 = vunpack.c.h.bf16 %v422
        %v514 = vunpack.c.l.bf16 %v423
        %v515 = vunpack.c.h.bf16 %v423
        %v516 = vunpack.c.l.bf16 %v424
        %v517 = vunpack.c.h.bf16 %v424
        %v518 = vunpack.c.l.bf16 %v425
        %v519 = vunpack.c.h.bf16 %v425
        %v520 = vunpack.c.l.bf16 %v426
        %v521 = vunpack.c.h.bf16 %v426
        %v522 = vunpack.c.l.bf16 %v427
        %v523 = vunpack.c.h.bf16 %v427
        %v524 = vunpack.c.l.bf16 %v428
        %v525 = vunpack.c.h.bf16 %v428
        %v526 = vunpack.c.l.bf16 %v429
        %v527 = vunpack.c.h.bf16 %v429
        %v528 = vunpack.c.l.bf16 %v430
        %v529 = vunpack.c.h.bf16 %v430
        %v530 = vunpack.c.l.bf16 %v431
        %v531 = vunpack.c.h.bf16 %v431
        %v532 = vunpack.c.l.bf16 %v432
        %v533 = vunpack.c.h.bf16 %v432
        %v534 = vunpack.c.l.bf16 %v433
        %v535 = vunpack.c.h.bf16 %v433
        %v536 = vunpack.c.l.bf16 %v434
        %v537 = vunpack.c.h.bf16 %v434
        %v538 = vunpack.c.l.bf16 %v435
        %v539 = vunpack.c.h.bf16 %v435
        %v540 = vunpack.c.l.bf16 %v436
        %v541 = vunpack.c.h.bf16 %v436
        %v542 = vunpack.c.l.bf16 %v437
        %v543 = vunpack.c.h.bf16 %v437
        %v544 = vunpack.c.l.bf16 %v438
        %v545 = vunpack.c.h.bf16 %v438
        %v546 = vunpack.c.l.bf16 %v439
        %v547 = vunpack.c.h.bf16 %v439
        %v548 = vunpack.c.l.bf16 %v440
        %v549 = vunpack.c.h.bf16 %v440
        %v550 = vunpack.c.l.bf16 %v441
        %v551 = vunpack.c.h.bf16 %v441
        %v552 = vunpack.c.l.bf16 %v442
        %v553 = vunpack.c.h.bf16 %v442
        %v554 = vunpack.c.l.bf16 %v443
        %v555 = vunpack.c.h.bf16 %v443
        %v556 = vunpack.c.l.bf16 %v444
        %v557 = vunpack.c.h.bf16 %v444
        %v558 = vunpack.c.l.bf16 %v445
        %v559 = vunpack.c.h.bf16 %v445
        %v560 = vunpack.c.l.bf16 %v446
        %v561 = vunpack.c.h.bf16 %v446
        %v562 = vunpack.c.l.bf16 %v447
        %v563 = vunpack.c.h.bf16 %v447
        %v564 = vunpack.c.l.bf16 %v448
        %v565 = vunpack.c.h.bf16 %v448
        %v566 = vunpack.c.l.bf16 %v449
        %v567 = vunpack.c.h.bf16 %v449
        %v568 = vunpack.c.l.bf16 %v450
        %v569 = vunpack.c.h.bf16 %v450
        %v570 = vunpack.c.l.bf16 %v451
        %v571 = vunpack.c.h.bf16 %v451
        %v572 = vunpack.c.l.bf16 %v452
        %v573 = vunpack.c.h.bf16 %v452
        %v574 = vunpack.c.l.bf16 %v453
        %v575 = vunpack.c.h.bf16 %v453
        %v576 = vunpack.c.l.bf16 %v454
        %v577 = vunpack.c.h.bf16 %v454
        %v578 = vunpack.c.l.bf16 %v455
        %v579 = vunpack.c.h.bf16 %v455
        %v580 = vunpack.c.l.bf16 %v456
        %v581 = vunpack.c.h.bf16 %v456
        %v582 = vunpack.c.l.bf16 %v457
        %v583 = vunpack.c.h.bf16 %v457
        %v584 = vunpack.c.l.bf16 %v458
        %v585 = vunpack.c.h.bf16 %v458
        %v586 = vunpack.c.l.bf16 %v459
        %v587 = vunpack.c.h.bf16 %v459
        %v588 = vunpack.c.l.bf16 %v460
        %v589 = vunpack.c.h.bf16 %v460
        %v590 = vunpack.c.l.bf16 %v461
        %v591 = vunpack.c.h.bf16 %v461
        %v592 = vunpack.c.l.bf16 %v462
        %v593 = vunpack.c.h.bf16 %v462
        %v594 = vunpack.c.l.bf16 %v463
        %v595 = vunpack.c.h.bf16 %v463
        %v596 = vunpack.c.l.bf16 %v464
        %v597 = vunpack.c.h.bf16 %v464
        %v598 = vunpack.c.l.bf16 %v465
        %v599 = vunpack.c.h.bf16 %v465
        %v600 = vunpack.c.l.bf16 %v466
        %v601 = vunpack.c.h.bf16 %v466
        %v602 = vunpack.c.l.bf16 %v467
        %v603 = vunpack.c.h.bf16 %v467
        %v604 = vunpack.c.l.bf16 %v468
        %v605 = vunpack.c.h.bf16 %v468
        %v606 = vunpack.c.l.bf16 %v469
        %v607 = vunpack.c.h.bf16 %v469
        %v608 = vunpack.c.l.bf16 %v470
        %v609 = vunpack.c.h.bf16 %v470
        %v610 = vunpack.c.l.bf16 %v471
        %v611 = vunpack.c.h.bf16 %v471
        %v612 = vunpack.c.l.bf16 %v472
        %v613 = vunpack.c.h.bf16 %v472
        %v614 = vunpack.c.l.bf16 %v473
        %v615 = vunpack.c.h.bf16 %v473
        %v616 = vunpack.c.l.bf16 %v474
        %v617 = vunpack.c.h.bf16 %v474
        %v618 = vunpack.c.l.bf16 %v475
        %v619 = vunpack.c.h.bf16 %v475
        %v620 = vunpack.c.l.bf16 %v476
        %v621 = vunpack.c.h.bf16 %v476
        %v622 = vunpack.c.l.bf16 %v477
        %v623 = vunpack.c.h.bf16 %v477
        %v624 = vunpack.c.l.bf16 %v478
        %v625 = vunpack.c.h.bf16 %v478
        %v626 = vunpack.c.l.bf16 %v479
        %v627 = vunpack.c.h.bf16 %v479
        %v628 = vunpack.c.l.bf16 %v480
        %v629 = vunpack.c.h.bf16 %v480
        %v630 = vunpack.c.l.bf16 %v481
        %v631 = vunpack.c.h.bf16 %v481
        %vm632 = vcmask 531456
        %v634 = vsel %vm632, %v406, 0
        %vm636 = vcmask 1040384
        %v638 = vsel %vm636, %v626, 0
        %v641 = vsel %vm636, %v627, 0
        %v644 = vsel %vm636, %v628, 0
        %v647 = vsel %vm636, %v629, 0
        %v650 = vsel %vm636, %v630, 0
        %v653 = vsel %vm636, %v631, 0
        %655 = vmatprep.subr.mxu0 %v483
        %656 = vmatpush1.msra.mxu0 %v482
        %657 = vmatprep.subr.mxu0 %v489
        %658 = vmatpush1.msra.mxu0 %v488
        %659 = vmatprep.subr.mxu0 %v495
        %660 = vmatpush1.msra.mxu0 %v494
        %661 = vmatprep.subr.mxu0 %v501
        %662 = vmatpush1.msra.mxu0 %v500
        %663 = vmatprep.subr.mxu0 %v507
        %664 = vmatpush1.msra.mxu0 %v506
        %665 = vmatprep.subr.mxu0 %v513
        %666 = vmatpush1.msra.mxu0 %v512
        %667 = vmatprep.subr.mxu0 %v519
        %668 = vmatpush1.msra.mxu0 %v518
        %669 = vmatprep.subr.mxu0 %v525
        %670 = vmatpush1.msra.mxu0 %v524
        %671 = vmatprep.subr.mxu0 %v531
        %672 = vmatpush1.msra.mxu0 %v530
        %673 = vmatprep.subr.mxu0 %v537
        %674 = vmatpush1.msra.mxu0 %v536
        %675 = vmatprep.subr.mxu0 %v543
        %676 = vmatpush1.msra.mxu0 %v542
        %677 = vmatprep.subr.mxu0 %v549
        %678 = vmatpush1.msra.mxu0 %v548
        %679 = vmatprep.subr.mxu0 %v555
        %680 = vmatpush1.msra.mxu0 %v554
        %681 = vmatprep.subr.mxu0 %v561
        %682 = vmatpush1.msra.mxu0 %v560
        %683 = vmatprep.subr.mxu0 %v567
        %684 = vmatpush1.msra.mxu0 %v566
        %685 = vmatprep.subr.mxu0 %v573
        %686 = vmatpush1.msra.mxu0 %v572
        %687 = vmatprep.subr.mxu0 %v579
        %688 = vmatpush1.msra.mxu0 %v578
        %689 = vmatprep.subr.mxu0 %v585
        %690 = vmatpush1.msra.mxu0 %v584
        %691 = vmatprep.subr.mxu0 %v591
        %692 = vmatpush1.msra.mxu0 %v590
        %693 = vmatprep.subr.mxu0 %v597
        %694 = vmatpush1.msra.mxu0 %v596
        %695 = vmatprep.subr.mxu0 %v603
        %696 = vmatpush1.msra.mxu0 %v602
        %697 = vmatprep.subr.mxu0 %v609
        %698 = vmatpush1.msra.mxu0 %v608
        %699 = vmatprep.subr.mxu0 %v615
        %700 = vmatpush1.msra.mxu0 %v614
        %701 = vmatprep.subr.mxu0 %v621
        %702 = vmatpush1.msra.mxu0 %v620
        %703 = vmatprep.subr.mxu0 %v641
        %704 = vmatpush1.msra.mxu0 %v638
        %705 = vmatprep.subr.mxu0 0.0
        %706 = vmatpush1.msra.mxu0 0.0
        %707 = vmatprep.subr.mxu0 0.0
        %708 = vmatpush1.msra.mxu0 0.0
        %709 = vmatprep.subr.mxu0 0.0
        %710 = vmatpush1.msra.mxu0 0.0
        %711 = vmatprep.subr.mxu0 0.0
        %712 = vmatpush1.msra.mxu0 0.0
        %713 = vmatprep.subr.mxu0 0.0
        %714 = vmatpush1.msra.mxu0 0.0
        %715 = vmatprep.subr.mxu0 0.0
        %716 = vmatpush1.msra.mxu0 0.0
        %717 = vmatprep.subr.mxu0 0.0
        %718 = vmatpush1.msra.mxu0 0.0
        %719 = vmatprep.mubr.f32.mxu0 %v634
        %720 = vmatmul.mubr.f32.gmra.mrb[0].mxu0 %v405
        %v721 = vpop.f32.mrb[0].mxu0
        %v722 = vadd.f32 0.0, %v721
        %v723 = vpop.f32.mrb[0].mxu0
        %v724 = vadd.f32 0.0, %v723
        %725 = vdwg.mxu0
        %726 = vmatprep.subr.mxu0 %v485
        %727 = vmatpush1.msra.mxu0 %v484
        %728 = vmatprep.subr.mxu0 %v491
        %729 = vmatpush1.msra.mxu0 %v490
        %730 = vmatprep.subr.mxu0 %v497
        %731 = vmatpush1.msra.mxu0 %v496
        %732 = vmatprep.subr.mxu0 %v503
        %733 = vmatpush1.msra.mxu0 %v502
        %734 = vmatprep.subr.mxu0 %v509
        %735 = vmatpush1.msra.mxu0 %v508
        %736 = vmatprep.subr.mxu0 %v515
        %737 = vmatpush1.msra.mxu0 %v514
        %738 = vmatprep.subr.mxu0 %v521
        %739 = vmatpush1.msra.mxu0 %v520
        %740 = vmatprep.subr.mxu0 %v527
        %741 = vmatpush1.msra.mxu0 %v526
        %742 = vmatprep.subr.mxu0 %v533
        %743 = vmatpush1.msra.mxu0 %v532
        %744 = vmatprep.subr.mxu0 %v539
        %745 = vmatpush1.msra.mxu0 %v538
        %746 = vmatprep.subr.mxu0 %v545
        %747 = vmatpush1.msra.mxu0 %v544
        %748 = vmatprep.subr.mxu0 %v551
        %749 = vmatpush1.msra.mxu0 %v550
        %750 = vmatprep.subr.mxu0 %v557
        %751 = vmatpush1.msra.mxu0 %v556
        %752 = vmatprep.subr.mxu0 %v563
        %753 = vmatpush1.msra.mxu0 %v562
        %754 = vmatprep.subr.mxu0 %v569
        %755 = vmatpush1.msra.mxu0 %v568
        %756 = vmatprep.subr.mxu0 %v575
        %757 = vmatpush1.msra.mxu0 %v574
        %758 = vmatprep.subr.mxu0 %v581
        %759 = vmatpush1.msra.mxu0 %v580
        %760 = vmatprep.subr.mxu0 %v587
        %761 = vmatpush1.msra.mxu0 %v586
        %762 = vmatprep.subr.mxu0 %v593
        %763 = vmatpush1.msra.mxu0 %v592
        %764 = vmatprep.subr.mxu0 %v599
        %765 = vmatpush1.msra.mxu0 %v598
        %766 = vmatprep.subr.mxu0 %v605
        %767 = vmatpush1.msra.mxu0 %v604
        %768 = vmatprep.subr.mxu0 %v611
        %769 = vmatpush1.msra.mxu0 %v610
        %770 = vmatprep.subr.mxu0 %v617
        %771 = vmatpush1.msra.mxu0 %v616
        %772 = vmatprep.subr.mxu0 %v623
        %773 = vmatpush1.msra.mxu0 %v622
        %774 = vmatprep.subr.mxu0 %v647
        %775 = vmatpush1.msra.mxu0 %v644
        %776 = vmatprep.subr.mxu0 0.0
        %777 = vmatpush1.msra.mxu0 0.0
        %778 = vmatprep.subr.mxu0 0.0
        %779 = vmatpush1.msra.mxu0 0.0
        %780 = vmatprep.subr.mxu0 0.0
        %781 = vmatpush1.msra.mxu0 0.0
        %782 = vmatprep.subr.mxu0 0.0
        %783 = vmatpush1.msra.mxu0 0.0
        %784 = vmatprep.subr.mxu0 0.0
        %785 = vmatpush1.msra.mxu0 0.0
        %786 = vmatprep.subr.mxu0 0.0
        %787 = vmatpush1.msra.mxu0 0.0
        %788 = vmatprep.subr.mxu0 0.0
        %789 = vmatpush1.msra.mxu0 0.0
        %790 = vmatprep.mubr.f32.mxu0 %v634
        %791 = vmatmul.mubr.f32.gmra.mrb[0].mxu0 %v405
        %v792 = vpop.f32.mrb[0].mxu0
        %v793 = vadd.f32 0.0, %v792
        %v794 = vpop.f32.mrb[0].mxu0
        %v795 = vadd.f32 0.0, %v794
        %796 = vdwg.mxu0
        %797 = vmatprep.subr.mxu0 %v487
        %798 = vmatpush1.msra.mxu0 %v486
        %799 = vmatprep.subr.mxu0 %v493
        %800 = vmatpush1.msra.mxu0 %v492
        %801 = vmatprep.subr.mxu0 %v499
        %802 = vmatpush1.msra.mxu0 %v498
        %803 = vmatprep.subr.mxu0 %v505
        %804 = vmatpush1.msra.mxu0 %v504
        %805 = vmatprep.subr.mxu0 %v511
        %806 = vmatpush1.msra.mxu0 %v510
        %807 = vmatprep.subr.mxu0 %v517
        %808 = vmatpush1.msra.mxu0 %v516
        %809 = vmatprep.subr.mxu0 %v523
        %810 = vmatpush1.msra.mxu0 %v522
        %811 = vmatprep.subr.mxu0 %v529
        %812 = vmatpush1.msra.mxu0 %v528
        %813 = vmatprep.subr.mxu0 %v535
        %814 = vmatpush1.msra.mxu0 %v534
        %815 = vmatprep.subr.mxu0 %v541
        %816 = vmatpush1.msra.mxu0 %v540
        %817 = vmatprep.subr.mxu0 %v547
        %818 = vmatpush1.msra.mxu0 %v546
        %819 = vmatprep.subr.mxu0 %v553
        %820 = vmatpush1.msra.mxu0 %v552
        %821 = vmatprep.subr.mxu0 %v559
        %822 = vmatpush1.msra.mxu0 %v558
        %823 = vmatprep.subr.mxu0 %v565
        %824 = vmatpush1.msra.mxu0 %v564
        %825 = vmatprep.subr.mxu0 %v571
        %826 = vmatpush1.msra.mxu0 %v570
        %827 = vmatprep.subr.mxu0 %v577
        %828 = vmatpush1.msra.mxu0 %v576
        %829 = vmatprep.subr.mxu0 %v583
        %830 = vmatpush1.msra.mxu0 %v582
        %831 = vmatprep.subr.mxu0 %v589
        %832 = vmatpush1.msra.mxu0 %v588
        %833 = vmatprep.subr.mxu0 %v595
        %834 = vmatpush1.msra.mxu0 %v594
        %835 = vmatprep.subr.mxu0 %v601
        %836 = vmatpush1.msra.mxu0 %v600
        %837 = vmatprep.subr.mxu0 %v607
        %838 = vmatpush1.msra.mxu0 %v606
        %839 = vmatprep.subr.mxu0 %v613
        %840 = vmatpush1.msra.mxu0 %v612
        %841 = vmatprep.subr.mxu0 %v619
        %842 = vmatpush1.msra.mxu0 %v618
        %843 = vmatprep.subr.mxu0 %v625
        %844 = vmatpush1.msra.mxu0 %v624
        %845 = vmatprep.subr.mxu0 %v653
        %846 = vmatpush1.msra.mxu0 %v650
        %847 = vmatprep.subr.mxu0 0.0
        %848 = vmatpush1.msra.mxu0 0.0
        %849 = vmatprep.subr.mxu0 0.0
        %850 = vmatpush1.msra.mxu0 0.0
        %851 = vmatprep.subr.mxu0 0.0
        %852 = vmatpush1.msra.mxu0 0.0
        %853 = vmatprep.subr.mxu0 0.0
        %854 = vmatpush1.msra.mxu0 0.0
        %855 = vmatprep.subr.mxu0 0.0
        %856 = vmatpush1.msra.mxu0 0.0
        %857 = vmatprep.subr.mxu0 0.0
        %858 = vmatpush1.msra.mxu0 0.0
        %859 = vmatprep.subr.mxu0 0.0
        %860 = vmatpush1.msra.mxu0 0.0
        %861 = vmatprep.mubr.f32.mxu0 %v634
        %862 = vmatmul.mubr.f32.gmra.mrb[0].mxu0 %v405
        %v863 = vpop.f32.mrb[0].mxu0
        %v864 = vadd.f32 0.0, %v863
        %v865 = vpop.f32.mrb[0].mxu0
        %v866 = vadd.f32 0.0, %v865
        %867 = vdwg.mxu0
        %v868 = vld [vmem:[#allocation7] sm:$0xff]
        %v869 = vld [vmem:[#allocation7 + $0x8] sm:$0xf]
        %v872 = vlaneseq
        %v873 = vshrl.u32 %v872, 7
        %v874 = vsub.s32 1, %v873
        %v875 = vrot.slane %v868, %v874
        %v876 = vlaneseq
        %v877 = vshrl.u32 %v876, 7
        %v878 = vsub.s32 5, %v877
        %v879 = vrot.slane %v868, %v878
        %v880 = vlaneseq
        %v881 = vshrl.u32 %v880, 7
        %v882 = vsub.s32 1, %v881
        %v883 = vrot.slane %v869, %v882
        %v887 = vlaneseq
        %v888 = vshrl.u32 %v887, 7
        %v889 = vsub.s32 1, %v888
        %v890 = vrot.slane %v875, %v889
        %v891 = vlaneseq
        %v892 = vshrl.u32 %v891, 7
        %v893 = vsub.s32 1, %v892
        %v894 = vrot.slane %v879, %v893
        %v895 = vlaneseq
        %v896 = vshrl.u32 %v895, 7
        %v897 = vsub.s32 1, %v896
        %v898 = vrot.slane %v883, %v897
        %v899 = vmul.f32 %v890, %v722
        %v900 = vmul.f32 %v894, %v724
        %v901 = vmul.f32 %v898, %v793
        %v902 = vlaneseq
        %v903 = vshrl.u32 %v902, 7
        %v904 = vsub.s32 0, %v903
        %v905 = vrot.slane %v868, %v904
        %v906 = vlaneseq
        %v907 = vshrl.u32 %v906, 7
        %v908 = vsub.s32 4, %v907
        %v909 = vrot.slane %v868, %v908
        %v910 = vlaneseq
        %v911 = vshrl.u32 %v910, 7
        %v912 = vsub.s32 0, %v911
        %v913 = vrot.slane %v869, %v912
        %v917 = vlaneseq
        %v918 = vshrl.u32 %v917, 7
        %v919 = vsub.s32 0, %v918
        %v920 = vrot.slane %v905, %v919
        %v921 = vlaneseq
        %v922 = vshrl.u32 %v921, 7
        %v923 = vsub.s32 0, %v922
        %v924 = vrot.slane %v909, %v923
        %v925 = vlaneseq
        %v926 = vshrl.u32 %v925, 7
        %v927 = vsub.s32 0, %v926
        %v928 = vrot.slane %v913, %v927
        %v929 = vadd.f32 %v920, %v899
        %v930 = vadd.f32 %v924, %v900
        %v931 = vadd.f32 %v928, %v901
        %v932 = vlaneseq
        %v933 = vshrl.u32 %v932, 7
        %v934 = vsub.s32 2, %v933
        %v935 = vrot.slane %v868, %v934
        %v936 = vlaneseq
        %v937 = vshrl.u32 %v936, 7
        %v938 = vsub.s32 6, %v937
        %v939 = vrot.slane %v868, %v938
        %v940 = vlaneseq
        %v941 = vshrl.u32 %v940, 7
        %v942 = vsub.s32 2, %v941
        %v943 = vrot.slane %v869, %v942
        %v947 = vlaneseq
        %v948 = vshrl.u32 %v947, 7
        %v949 = vsub.s32 2, %v948
        %v950 = vrot.slane %v935, %v949
        %v951 = vlaneseq
        %v952 = vshrl.u32 %v951, 7
        %v953 = vsub.s32 2, %v952
        %v954 = vrot.slane %v939, %v953
        %v955 = vlaneseq
        %v956 = vshrl.u32 %v955, 7
        %v957 = vsub.s32 2, %v956
        %v958 = vrot.slane %v943, %v957
        %v959 = vmul.f32 %v950, %v795
        %v960 = vmul.f32 %v954, %v864
        %v961 = vmul.f32 %v958, %v866
        %v962 = vadd.f32 %v929, %v959
        %v963 = vadd.f32 %v930, %v960
        %v964 = vadd.f32 %v931, %v961
        %v965 = vmul.f32 %v722, %v795
        %v966 = vmul.f32 %v724, %v864
        %v967 = vmul.f32 %v793, %v866
        %v968 = vlaneseq
        %v969 = vshrl.u32 %v968, 7
        %v970 = vsub.s32 3, %v969
        %v971 = vrot.slane %v868, %v970
        %v972 = vlaneseq
        %v973 = vshrl.u32 %v972, 7
        %v974 = vsub.s32 7, %v973
        %v975 = vrot.slane %v868, %v974
        %v976 = vlaneseq
        %v977 = vshrl.u32 %v976, 7
        %v978 = vsub.s32 3, %v977
        %v979 = vrot.slane %v869, %v978
        %v983 = vlaneseq
        %v984 = vshrl.u32 %v983, 7
        %v985 = vsub.s32 3, %v984
        %v986 = vrot.slane %v971, %v985
        %v987 = vlaneseq
        %v988 = vshrl.u32 %v987, 7
        %v989 = vsub.s32 3, %v988
        %v990 = vrot.slane %v975, %v989
        %v991 = vlaneseq
        %v992 = vshrl.u32 %v991, 7
        %v993 = vsub.s32 3, %v992
        %v994 = vrot.slane %v979, %v993
        %v995 = vmul.f32 %v986, %v965
        %v996 = vmul.f32 %v990, %v966
        %v997 = vmul.f32 %v994, %v967
        %v998 = vadd.f32 %v962, %v995
        %v999 = vadd.f32 %v963, %v996
        %v1000 = vadd.f32 %v964, %v997
        %v1001 = vld [vmem:[#allocation8] sm:$0xff]
        %v1002 = vld [vmem:[#allocation8 + $0x8] sm:$0xff]
        %v1003 = vld [vmem:[#allocation8 + $0x10] sm:$0xff]
        %v1004 = vld [vmem:[#allocation8 + $0x18] sm:$0xff]
        %v1005 = vld [vmem:[#allocation8 + $0x20] sm:$0xff]
        %v1006 = vld [vmem:[#allocation8 + $0x28] sm:$0xff]
        %v1007 = vld [vmem:[#allocation8 + $0x30] sm:$0xff]
        %v1008 = vld [vmem:[#allocation8 + $0x38] sm:$0xff]
        %v1009 = vld [vmem:[#allocation8 + $0x40] sm:$0xff]
        %v1010 = vld [vmem:[#allocation8 + $0x48] sm:$0xff]
        %v1011 = vld [vmem:[#allocation8 + $0x50] sm:$0xff]
        %v1012 = vld [vmem:[#allocation8 + $0x58] sm:$0xff]
        %v1013 = vld [vmem:[#allocation8 + $0x60] sm:$0xff]
        %v1014 = vld [vmem:[#allocation8 + $0x68] sm:$0xff]
        %v1015 = vld [vmem:[#allocation8 + $0x70] sm:$0xff]
        %v1016 = vld [vmem:[#allocation8 + $0x78] sm:$0xff]
        %v1017 = vld [vmem:[#allocation8 + $0x80] sm:$0xff]
        %v1018 = vld [vmem:[#allocation8 + $0x88] sm:$0xff]
        %v1019 = vld [vmem:[#allocation8 + $0x90] sm:$0xff]
        %v1020 = vld [vmem:[#allocation8 + $0x98] sm:$0xff]
        %v1021 = vld [vmem:[#allocation8 + $0xa0] sm:$0xff]
        %v1022 = vld [vmem:[#allocation8 + $0xa8] sm:$0xff]
        %v1023 = vld [vmem:[#allocation8 + $0xb0] sm:$0xff]
        %v1024 = vld [vmem:[#allocation8 + $0xb8] sm:$0xff]
        %v1025 = vld [vmem:[#allocation8 + $0xc0] sm:$0xff]
        %v1026 = vld [vmem:[#allocation8 + $0xc8] sm:$0xff]
        %v1027 = vld [vmem:[#allocation8 + $0xd0] sm:$0xff]
        %v1028 = vld [vmem:[#allocation8 + $0xd8] sm:$0xff]
        %v1029 = vld [vmem:[#allocation8 + $0xe0] sm:$0xff]
        %v1030 = vld [vmem:[#allocation8 + $0xe8] sm:$0xff]
        %v1031 = vld [vmem:[#allocation8 + $0xf0] sm:$0xff]
        %v1032 = vld [vmem:[#allocation8 + $0xf8] sm:$0xff]
        %v1033 = vld [vmem:[#allocation8 + $0x100] sm:$0xff]
        %v1034 = vld [vmem:[#allocation8 + $0x108] sm:$0xff]
        %v1035 = vld [vmem:[#allocation8 + $0x110] sm:$0xff]
        %v1036 = vld [vmem:[#allocation8 + $0x118] sm:$0xff]
        %v1037 = vld [vmem:[#allocation8 + $0x120] sm:$0xff]
        %v1038 = vld [vmem:[#allocation8 + $0x128] sm:$0xff]
        %v1039 = vld [vmem:[#allocation8 + $0x130] sm:$0xff]
        %v1040 = vld [vmem:[#allocation8 + $0x138] sm:$0xff]
        %v1041 = vld [vmem:[#allocation8 + $0x140] sm:$0xff]
        %v1042 = vld [vmem:[#allocation8 + $0x148] sm:$0xff]
        %v1043 = vld [vmem:[#allocation8 + $0x150] sm:$0xff]
        %v1044 = vld [vmem:[#allocation8 + $0x158] sm:$0xff]
        %v1045 = vld [vmem:[#allocation8 + $0x160] sm:$0xff]
        %v1046 = vld [vmem:[#allocation8 + $0x168] sm:$0xff]
        %v1047 = vld [vmem:[#allocation8 + $0x170] sm:$0xff]
        %v1048 = vld [vmem:[#allocation8 + $0x178] sm:$0xff]
        %v1049 = vld [vmem:[#allocation8 + $0x180] sm:$0xff]
        %v1050 = vld [vmem:[#allocation8 + $0x188] sm:$0xff]
        %v1051 = vld [vmem:[#allocation8 + $0x190] sm:$0xff]
        %v1052 = vld [vmem:[#allocation8 + $0x198] sm:$0xff]
        %v1053 = vld [vmem:[#allocation8 + $0x1a0] sm:$0xff]
        %v1054 = vld [vmem:[#allocation8 + $0x1a8] sm:$0xff]
        %v1055 = vld [vmem:[#allocation8 + $0x1b0] sm:$0xff]
        %v1056 = vld [vmem:[#allocation8 + $0x1b8] sm:$0xff]
        %v1057 = vld [vmem:[#allocation8 + $0x1c0] sm:$0xff]
        %v1058 = vld [vmem:[#allocation8 + $0x1c8] sm:$0xff]
        %v1059 = vld [vmem:[#allocation8 + $0x1d0] sm:$0xff]
        %v1060 = vld [vmem:[#allocation8 + $0x1d8] sm:$0xff]
        %v1061 = vld [vmem:[#allocation8 + $0x1e0] sm:$0xff]
        %v1062 = vld [vmem:[#allocation8 + $0x1e8] sm:$0xff]
        %v1063 = vld [vmem:[#allocation8 + $0x1f0] sm:$0xff]
        %v1064 = vld [vmem:[#allocation8 + $0x1f8] sm:$0xff]
        %v1065 = vld [vmem:[#allocation8 + $0x200] sm:$0xff]
        %v1066 = vld [vmem:[#allocation8 + $0x208] sm:$0xff]
        %v1067 = vld [vmem:[#allocation8 + $0x210] sm:$0xff]
        %v1068 = vld [vmem:[#allocation8 + $0x218] sm:$0xff]
        %v1069 = vld [vmem:[#allocation8 + $0x220] sm:$0xff]
        %v1070 = vld [vmem:[#allocation8 + $0x228] sm:$0xff]
        %v1071 = vld [vmem:[#allocation8 + $0x230] sm:$0xff]
        %v1072 = vld [vmem:[#allocation8 + $0x238] sm:$0xff]
        %v1073 = vld [vmem:[#allocation8 + $0x240] sm:$0xff]
        %v1074 = vld [vmem:[#allocation8 + $0x248] sm:$0xff]
        %v1075 = vld [vmem:[#allocation8 + $0x250] sm:$0xff]
        %v1076 = vld [vmem:[#allocation8 + $0x258] sm:$0xff]
        %v1077 = vld [vmem:[#allocation8 + $0x260] sm:$0xff]
        %v1078 = vld [vmem:[#allocation8 + $0x268] sm:$0xff]
        %v1079 = vld [vmem:[#allocation8 + $0x270] sm:$0xff]
        %v1080 = vld [vmem:[#allocation8 + $0x278] sm:$0xff]
        %v1081 = vld [vmem:[#allocation8 + $0x280] sm:$0xff]
        %v1082 = vld [vmem:[#allocation8 + $0x288] sm:$0xff]
        %v1083 = vld [vmem:[#allocation8 + $0x290] sm:$0xff]
        %v1084 = vld [vmem:[#allocation8 + $0x298] sm:$0xff]
        %v1085 = vld [vmem:[#allocation8 + $0x2a0] sm:$0xff]
        %v1086 = vld [vmem:[#allocation8 + $0x2a8] sm:$0xff]
        %v1087 = vld [vmem:[#allocation8 + $0x2b0] sm:$0xff]
        %v1088 = vld [vmem:[#allocation8 + $0x2b8] sm:$0xff]
        %v1089 = vld [vmem:[#allocation8 + $0x2c0] sm:$0xff]
        %v1090 = vld [vmem:[#allocation8 + $0x2c8] sm:$0xff]
        %v1091 = vld [vmem:[#allocation8 + $0x2d0] sm:$0xff]
        %v1092 = vld [vmem:[#allocation8 + $0x2d8] sm:$0xff]
        %v1093 = vld [vmem:[#allocation8 + $0x2e0] sm:$0xff]
        %v1094 = vld [vmem:[#allocation8 + $0x2e8] sm:$0xff]
        %v1095 = vld [vmem:[#allocation8 + $0x2f0] sm:$0xff]
        %v1096 = vld [vmem:[#allocation8 + $0x2f8] sm:$0xff]
        %v1097 = vld [vmem:[#allocation8 + $0x300] sm:$0xff]
        %v1098 = vld [vmem:[#allocation8 + $0x308] sm:$0xff]
        %v1099 = vld [vmem:[#allocation8 + $0x310] sm:$0xff]
        %v1100 = vld [vmem:[#allocation8 + $0x318] sm:$0xff]
        %v1101 = vld [vmem:[#allocation8 + $0x320] sm:$0xff]
        %v1102 = vld [vmem:[#allocation8 + $0x328] sm:$0xff]
        %v1103 = vld [vmem:[#allocation8 + $0x330] sm:$0xff]
        %v1104 = vld [vmem:[#allocation8 + $0x338] sm:$0xff]
        %v1105 = vld [vmem:[#allocation8 + $0x340] sm:$0xff]
        %v1106 = vld [vmem:[#allocation8 + $0x348] sm:$0xff]
        %v1107 = vld [vmem:[#allocation8 + $0x350] sm:$0xff]
        %v1108 = vld [vmem:[#allocation8 + $0x358] sm:$0xff]
        %v1109 = vld [vmem:[#allocation8 + $0x360] sm:$0xff]
        %v1110 = vld [vmem:[#allocation8 + $0x368] sm:$0xff]
        %v1111 = vld [vmem:[#allocation8 + $0x370] sm:$0xff]
        %v1112 = vld [vmem:[#allocation8 + $0x378] sm:$0xff]
        %v1113 = vld [vmem:[#allocation8 + $0x380] sm:$0xff]
        %v1114 = vld [vmem:[#allocation8 + $0x388] sm:$0xff]
        %v1115 = vld [vmem:[#allocation8 + $0x390] sm:$0xff]
        %v1116 = vld [vmem:[#allocation8 + $0x398] sm:$0xff]
        %v1117 = vld [vmem:[#allocation8 + $0x3a0] sm:$0xff]
        %v1118 = vld [vmem:[#allocation8 + $0x3a8] sm:$0xff]
        %v1119 = vld [vmem:[#allocation8 + $0x3b0] sm:$0xff]
        %v1120 = vld [vmem:[#allocation8 + $0x3b8] sm:$0xff]
        %v1121 = vld [vmem:[#allocation8 + $0x3c0] sm:$0xff]
        %v1122 = vld [vmem:[#allocation8 + $0x3c8] sm:$0xff]
        %v1123 = vld [vmem:[#allocation8 + $0x3d0] sm:$0xff]
        %v1124 = vld [vmem:[#allocation8 + $0x3d8] sm:$0xff]
        %v1125 = vld [vmem:[#allocation8 + $0x3e0] sm:$0xff]
        %v1126 = vld [vmem:[#allocation8 + $0x3e8] sm:$0xff]
        %v1127 = vld [vmem:[#allocation8 + $0x3f0] sm:$0xff]
        %v1128 = vld [vmem:[#allocation8 + $0x3f8] sm:$0xff]
        %v1129 = vld [vmem:[#allocation8 + $0x400] sm:$0xff]
        %v1130 = vld [vmem:[#allocation8 + $0x408] sm:$0xff]
        %v1131 = vld [vmem:[#allocation8 + $0x410] sm:$0xff]
        %v1132 = vld [vmem:[#allocation8 + $0x418] sm:$0xff]
        %v1133 = vld [vmem:[#allocation8 + $0x420] sm:$0xff]
        %v1134 = vld [vmem:[#allocation8 + $0x428] sm:$0xff]
        %v1135 = vld [vmem:[#allocation8 + $0x430] sm:$0xff]
        %v1136 = vld [vmem:[#allocation8 + $0x438] sm:$0xff]
        %v1137 = vld [vmem:[#allocation8 + $0x440] sm:$0xff]
        %v1138 = vld [vmem:[#allocation8 + $0x448] sm:$0xff]
        %v1139 = vld [vmem:[#allocation8 + $0x450] sm:$0xff]
        %v1140 = vld [vmem:[#allocation8 + $0x458] sm:$0xff]
        %v1141 = vld [vmem:[#allocation8 + $0x460] sm:$0xff]
        %v1142 = vld [vmem:[#allocation8 + $0x468] sm:$0xff]
        %v1143 = vld [vmem:[#allocation8 + $0x470] sm:$0xff]
        %v1144 = vld [vmem:[#allocation8 + $0x478] sm:$0xff]
        %v1145 = vunpack.c.l.bf16 %v1001
        %v1146 = vunpack.c.h.bf16 %v1001
        %v1147 = vunpack.c.l.bf16 %v1002
        %v1148 = vunpack.c.h.bf16 %v1002
        %v1149 = vunpack.c.l.bf16 %v1003
        %v1150 = vunpack.c.h.bf16 %v1003
        %v1151 = vunpack.c.l.bf16 %v1004
        %v1152 = vunpack.c.h.bf16 %v1004
        %v1153 = vunpack.c.l.bf16 %v1005
        %v1154 = vunpack.c.h.bf16 %v1005
        %v1155 = vunpack.c.l.bf16 %v1006
        %v1156 = vunpack.c.h.bf16 %v1006
        %v1157 = vunpack.c.l.bf16 %v1007
        %v1158 = vunpack.c.h.bf16 %v1007
        %v1159 = vunpack.c.l.bf16 %v1008
        %v1160 = vunpack.c.h.bf16 %v1008
        %v1161 = vunpack.c.l.bf16 %v1009
        %v1162 = vunpack.c.h.bf16 %v1009
        %v1163 = vunpack.c.l.bf16 %v1010
        %v1164 = vunpack.c.h.bf16 %v1010
        %v1165 = vunpack.c.l.bf16 %v1011
        %v1166 = vunpack.c.h.bf16 %v1011
        %v1167 = vunpack.c.l.bf16 %v1012
        %v1168 = vunpack.c.h.bf16 %v1012
        %v1169 = vunpack.c.l.bf16 %v1013
        %v1170 = vunpack.c.h.bf16 %v1013
        %v1171 = vunpack.c.l.bf16 %v1014
        %v1172 = vunpack.c.h.bf16 %v1014
        %v1173 = vunpack.c.l.bf16 %v1015
        %v1174 = vunpack.c.h.bf16 %v1015
        %v1175 = vunpack.c.l.bf16 %v1016
        %v1176 = vunpack.c.h.bf16 %v1016
        %v1177 = vunpack.c.l.bf16 %v1017
        %v1178 = vunpack.c.h.bf16 %v1017
        %v1179 = vunpack.c.l.bf16 %v1018
        %v1180 = vunpack.c.h.bf16 %v1018
        %v1181 = vunpack.c.l.bf16 %v1019
        %v1182 = vunpack.c.h.bf16 %v1019
        %v1183 = vunpack.c.l.bf16 %v1020
        %v1184 = vunpack.c.h.bf16 %v1020
        %v1185 = vunpack.c.l.bf16 %v1021
        %v1186 = vunpack.c.h.bf16 %v1021
        %v1187 = vunpack.c.l.bf16 %v1022
        %v1188 = vunpack.c.h.bf16 %v1022
        %v1189 = vunpack.c.l.bf16 %v1023
        %v1190 = vunpack.c.h.bf16 %v1023
        %v1191 = vunpack.c.l.bf16 %v1024
        %v1192 = vunpack.c.h.bf16 %v1024
        %v1193 = vunpack.c.l.bf16 %v1025
        %v1194 = vunpack.c.h.bf16 %v1025
        %v1195 = vunpack.c.l.bf16 %v1026
        %v1196 = vunpack.c.h.bf16 %v1026
        %v1197 = vunpack.c.l.bf16 %v1027
        %v1198 = vunpack.c.h.bf16 %v1027
        %v1199 = vunpack.c.l.bf16 %v1028
        %v1200 = vunpack.c.h.bf16 %v1028
        %v1201 = vunpack.c.l.bf16 %v1029
        %v1202 = vunpack.c.h.bf16 %v1029
        %v1203 = vunpack.c.l.bf16 %v1030
        %v1204 = vunpack.c.h.bf16 %v1030
        %v1205 = vunpack.c.l.bf16 %v1031
        %v1206 = vunpack.c.h.bf16 %v1031
        %v1207 = vunpack.c.l.bf16 %v1032
        %v1208 = vunpack.c.h.bf16 %v1032
        %v1209 = vunpack.c.l.bf16 %v1033
        %v1210 = vunpack.c.h.bf16 %v1033
        %v1211 = vunpack.c.l.bf16 %v1034
        %v1212 = vunpack.c.h.bf16 %v1034
        %v1213 = vunpack.c.l.bf16 %v1035
        %v1214 = vunpack.c.h.bf16 %v1035
        %v1215 = vunpack.c.l.bf16 %v1036
        %v1216 = vunpack.c.h.bf16 %v1036
        %v1217 = vunpack.c.l.bf16 %v1037
        %v1218 = vunpack.c.h.bf16 %v1037
        %v1219 = vunpack.c.l.bf16 %v1038
        %v1220 = vunpack.c.h.bf16 %v1038
        %v1221 = vunpack.c.l.bf16 %v1039
        %v1222 = vunpack.c.h.bf16 %v1039
        %v1223 = vunpack.c.l.bf16 %v1040
        %v1224 = vunpack.c.h.bf16 %v1040
        %v1225 = vunpack.c.l.bf16 %v1041
        %v1226 = vunpack.c.h.bf16 %v1041
        %v1227 = vunpack.c.l.bf16 %v1042
        %v1228 = vunpack.c.h.bf16 %v1042
        %v1229 = vunpack.c.l.bf16 %v1043
        %v1230 = vunpack.c.h.bf16 %v1043
        %v1231 = vunpack.c.l.bf16 %v1044
        %v1232 = vunpack.c.h.bf16 %v1044
        %v1233 = vunpack.c.l.bf16 %v1045
        %v1234 = vunpack.c.h.bf16 %v1045
        %v1235 = vunpack.c.l.bf16 %v1046
        %v1236 = vunpack.c.h.bf16 %v1046
        %v1237 = vunpack.c.l.bf16 %v1047
        %v1238 = vunpack.c.h.bf16 %v1047
        %v1239 = vunpack.c.l.bf16 %v1048
        %v1240 = vunpack.c.h.bf16 %v1048
        %v1241 = vunpack.c.l.bf16 %v1049
        %v1242 = vunpack.c.h.bf16 %v1049
        %v1243 = vunpack.c.l.bf16 %v1050
        %v1244 = vunpack.c.h.bf16 %v1050
        %v1245 = vunpack.c.l.bf16 %v1051
        %v1246 = vunpack.c.h.bf16 %v1051
        %v1247 = vunpack.c.l.bf16 %v1052
        %v1248 = vunpack.c.h.bf16 %v1052
        %v1249 = vunpack.c.l.bf16 %v1053
        %v1250 = vunpack.c.h.bf16 %v1053
        %v1251 = vunpack.c.l.bf16 %v1054
        %v1252 = vunpack.c.h.bf16 %v1054
        %v1253 = vunpack.c.l.bf16 %v1055
        %v1254 = vunpack.c.h.bf16 %v1055
        %v1255 = vunpack.c.l.bf16 %v1056
        %v1256 = vunpack.c.h.bf16 %v1056
        %v1257 = vunpack.c.l.bf16 %v1057
        %v1258 = vunpack.c.h.bf16 %v1057
        %v1259 = vunpack.c.l.bf16 %v1058
        %v1260 = vunpack.c.h.bf16 %v1058
        %v1261 = vunpack.c.l.bf16 %v1059
        %v1262 = vunpack.c.h.bf16 %v1059
        %v1263 = vunpack.c.l.bf16 %v1060
        %v1264 = vunpack.c.h.bf16 %v1060
        %v1265 = vunpack.c.l.bf16 %v1061
        %v1266 = vunpack.c.h.bf16 %v1061
        %v1267 = vunpack.c.l.bf16 %v1062
        %v1268 = vunpack.c.h.bf16 %v1062
        %v1269 = vunpack.c.l.bf16 %v1063
        %v1270 = vunpack.c.h.bf16 %v1063
        %v1271 = vunpack.c.l.bf16 %v1064
        %v1272 = vunpack.c.h.bf16 %v1064
        %v1273 = vunpack.c.l.bf16 %v1065
        %v1274 = vunpack.c.h.bf16 %v1065
        %v1275 = vunpack.c.l.bf16 %v1066
        %v1276 = vunpack.c.h.bf16 %v1066
        %v1277 = vunpack.c.l.bf16 %v1067
        %v1278 = vunpack.c.h.bf16 %v1067
        %v1279 = vunpack.c.l.bf16 %v1068
        %v1280 = vunpack.c.h.bf16 %v1068
        %v1281 = vunpack.c.l.bf16 %v1069
        %v1282 = vunpack.c.h.bf16 %v1069
        %v1283 = vunpack.c.l.bf16 %v1070
        %v1284 = vunpack.c.h.bf16 %v1070
        %v1285 = vunpack.c.l.bf16 %v1071
        %v1286 = vunpack.c.h.bf16 %v1071
        %v1287 = vunpack.c.l.bf16 %v1072
        %v1288 = vunpack.c.h.bf16 %v1072
        %v1289 = vunpack.c.l.bf16 %v1073
        %v1290 = vunpack.c.h.bf16 %v1073
        %v1291 = vunpack.c.l.bf16 %v1074
        %v1292 = vunpack.c.h.bf16 %v1074
        %v1293 = vunpack.c.l.bf16 %v1075
        %v1294 = vunpack.c.h.bf16 %v1075
        %v1295 = vunpack.c.l.bf16 %v1076
        %v1296 = vunpack.c.h.bf16 %v1076
        %v1297 = vunpack.c.l.bf16 %v1077
        %v1298 = vunpack.c.h.bf16 %v1077
        %v1299 = vunpack.c.l.bf16 %v1078
        %v1300 = vunpack.c.h.bf16 %v1078
        %v1301 = vunpack.c.l.bf16 %v1079
        %v1302 = vunpack.c.h.bf16 %v1079
        %v1303 = vunpack.c.l.bf16 %v1080
        %v1304 = vunpack.c.h.bf16 %v1080
        %v1305 = vunpack.c.l.bf16 %v1081
        %v1306 = vunpack.c.h.bf16 %v1081
        %v1307 = vunpack.c.l.bf16 %v1082
        %v1308 = vunpack.c.h.bf16 %v1082
        %v1309 = vunpack.c.l.bf16 %v1083
        %v1310 = vunpack.c.h.bf16 %v1083
        %v1311 = vunpack.c.l.bf16 %v1084
        %v1312 = vunpack.c.h.bf16 %v1084
        %v1313 = vunpack.c.l.bf16 %v1085
        %v1314 = vunpack.c.h.bf16 %v1085
        %v1315 = vunpack.c.l.bf16 %v1086
        %v1316 = vunpack.c.h.bf16 %v1086
        %v1317 = vunpack.c.l.bf16 %v1087
        %v1318 = vunpack.c.h.bf16 %v1087
        %v1319 = vunpack.c.l.bf16 %v1088
        %v1320 = vunpack.c.h.bf16 %v1088
        %v1321 = vunpack.c.l.bf16 %v1089
        %v1322 = vunpack.c.h.bf16 %v1089
        %v1323 = vunpack.c.l.bf16 %v1090
        %v1324 = vunpack.c.h.bf16 %v1090
        %v1325 = vunpack.c.l.bf16 %v1091
        %v1326 = vunpack.c.h.bf16 %v1091
        %v1327 = vunpack.c.l.bf16 %v1092
        %v1328 = vunpack.c.h.bf16 %v1092
        %v1329 = vunpack.c.l.bf16 %v1093
        %v1330 = vunpack.c.h.bf16 %v1093
        %v1331 = vunpack.c.l.bf16 %v1094
        %v1332 = vunpack.c.h.bf16 %v1094
        %v1333 = vunpack.c.l.bf16 %v1095
        %v1334 = vunpack.c.h.bf16 %v1095
        %v1335 = vunpack.c.l.bf16 %v1096
        %v1336 = vunpack.c.h.bf16 %v1096
        %v1337 = vunpack.c.l.bf16 %v1097
        %v1338 = vunpack.c.h.bf16 %v1097
        %v1339 = vunpack.c.l.bf16 %v1098
        %v1340 = vunpack.c.h.bf16 %v1098
        %v1341 = vunpack.c.l.bf16 %v1099
        %v1342 = vunpack.c.h.bf16 %v1099
        %v1343 = vunpack.c.l.bf16 %v1100
        %v1344 = vunpack.c.h.bf16 %v1100
        %v1345 = vunpack.c.l.bf16 %v1101
        %v1346 = vunpack.c.h.bf16 %v1101
        %v1347 = vunpack.c.l.bf16 %v1102
        %v1348 = vunpack.c.h.bf16 %v1102
        %v1349 = vunpack.c.l.bf16 %v1103
        %v1350 = vunpack.c.h.bf16 %v1103
        %v1351 = vunpack.c.l.bf16 %v1104
        %v1352 = vunpack.c.h.bf16 %v1104
        %v1353 = vunpack.c.l.bf16 %v1105
        %v1354 = vunpack.c.h.bf16 %v1105
        %v1355 = vunpack.c.l.bf16 %v1106
        %v1356 = vunpack.c.h.bf16 %v1106
        %v1357 = vunpack.c.l.bf16 %v1107
        %v1358 = vunpack.c.h.bf16 %v1107
        %v1359 = vunpack.c.l.bf16 %v1108
        %v1360 = vunpack.c.h.bf16 %v1108
        %v1361 = vunpack.c.l.bf16 %v1109
        %v1362 = vunpack.c.h.bf16 %v1109
        %v1363 = vunpack.c.l.bf16 %v1110
        %v1364 = vunpack.c.h.bf16 %v1110
        %v1365 = vunpack.c.l.bf16 %v1111
        %v1366 = vunpack.c.h.bf16 %v1111
        %v1367 = vunpack.c.l.bf16 %v1112
        %v1368 = vunpack.c.h.bf16 %v1112
        %v1369 = vunpack.c.l.bf16 %v1113
        %v1370 = vunpack.c.h.bf16 %v1113
        %v1371 = vunpack.c.l.bf16 %v1114
        %v1372 = vunpack.c.h.bf16 %v1114
        %v1373 = vunpack.c.l.bf16 %v1115
        %v1374 = vunpack.c.h.bf16 %v1115
        %v1375 = vunpack.c.l.bf16 %v1116
        %v1376 = vunpack.c.h.bf16 %v1116
        %v1377 = vunpack.c.l.bf16 %v1117
        %v1378 = vunpack.c.h.bf16 %v1117
        %v1379 = vunpack.c.l.bf16 %v1118
        %v1380 = vunpack.c.h.bf16 %v1118
        %v1381 = vunpack.c.l.bf16 %v1119
        %v1382 = vunpack.c.h.bf16 %v1119
        %v1383 = vunpack.c.l.bf16 %v1120
        %v1384 = vunpack.c.h.bf16 %v1120
        %v1385 = vunpack.c.l.bf16 %v1121
        %v1386 = vunpack.c.h.bf16 %v1121
        %v1387 = vunpack.c.l.bf16 %v1122
        %v1388 = vunpack.c.h.bf16 %v1122
        %v1389 = vunpack.c.l.bf16 %v1123
        %v1390 = vunpack.c.h.bf16 %v1123
        %v1391 = vunpack.c.l.bf16 %v1124
        %v1392 = vunpack.c.h.bf16 %v1124
        %v1393 = vunpack.c.l.bf16 %v1125
        %v1394 = vunpack.c.h.bf16 %v1125
        %v1395 = vunpack.c.l.bf16 %v1126
        %v1396 = vunpack.c.h.bf16 %v1126
        %v1397 = vunpack.c.l.bf16 %v1127
        %v1398 = vunpack.c.h.bf16 %v1127
        %v1399 = vunpack.c.l.bf16 %v1128
        %v1400 = vunpack.c.h.bf16 %v1128
        %v1401 = vunpack.c.l.bf16 %v1129
        %v1402 = vunpack.c.h.bf16 %v1129
        %v1403 = vunpack.c.l.bf16 %v1130
        %v1404 = vunpack.c.h.bf16 %v1130
        %v1405 = vunpack.c.l.bf16 %v1131
        %v1406 = vunpack.c.h.bf16 %v1131
        %v1407 = vunpack.c.l.bf16 %v1132
        %v1408 = vunpack.c.h.bf16 %v1132
        %v1409 = vunpack.c.l.bf16 %v1133
        %v1410 = vunpack.c.h.bf16 %v1133
        %v1411 = vunpack.c.l.bf16 %v1134
        %v1412 = vunpack.c.h.bf16 %v1134
        %v1413 = vunpack.c.l.bf16 %v1135
        %v1414 = vunpack.c.h.bf16 %v1135
        %v1415 = vunpack.c.l.bf16 %v1136
        %v1416 = vunpack.c.h.bf16 %v1136
        %v1417 = vunpack.c.l.bf16 %v1137
        %v1418 = vunpack.c.h.bf16 %v1137
        %v1419 = vunpack.c.l.bf16 %v1138
        %v1420 = vunpack.c.h.bf16 %v1138
        %v1421 = vunpack.c.l.bf16 %v1139
        %v1422 = vunpack.c.h.bf16 %v1139
        %v1423 = vunpack.c.l.bf16 %v1140
        %v1424 = vunpack.c.h.bf16 %v1140
        %v1425 = vunpack.c.l.bf16 %v1141
        %v1426 = vunpack.c.h.bf16 %v1141
        %v1427 = vunpack.c.l.bf16 %v1142
        %v1428 = vunpack.c.h.bf16 %v1142
        %v1429 = vunpack.c.l.bf16 %v1143
        %v1430 = vunpack.c.h.bf16 %v1143
        %v1431 = vunpack.c.l.bf16 %v1144
        %v1432 = vunpack.c.h.bf16 %v1144
        %1433 = vmatprep.subr.mxu0 %v1146
        %1434 = vmatpush1.msra.mxu0 %v1145
        %1435 = vmatprep.subr.mxu0 %v1152
        %1436 = vmatpush1.msra.mxu0 %v1151
        %1437 = vmatprep.subr.mxu0 %v1158
        %1438 = vmatpush1.msra.mxu0 %v1157
        %1439 = vmatprep.subr.mxu0 %v1164
        %1440 = vmatpush1.msra.mxu0 %v1163
        %1441 = vmatprep.subr.mxu0 %v1170
        %1442 = vmatpush1.msra.mxu0 %v1169
        %1443 = vmatprep.subr.mxu0 %v1176
        %1444 = vmatpush1.msra.mxu0 %v1175
        %1445 = vmatprep.subr.mxu0 %v1182
        %1446 = vmatpush1.msra.mxu0 %v1181
        %1447 = vmatprep.subr.mxu0 %v1188
        %1448 = vmatpush1.msra.mxu0 %v1187
        %1449 = vmatprep.subr.mxu0 %v1194
        %1450 = vmatpush1.msra.mxu0 %v1193
        %1451 = vmatprep.subr.mxu0 %v1200
        %1452 = vmatpush1.msra.mxu0 %v1199
        %1453 = vmatprep.subr.mxu0 %v1206
        %1454 = vmatpush1.msra.mxu0 %v1205
        %1455 = vmatprep.subr.mxu0 %v1212
        %1456 = vmatpush1.msra.mxu0 %v1211
        %1457 = vmatprep.subr.mxu0 %v1218
        %1458 = vmatpush1.msra.mxu0 %v1217
        %1459 = vmatprep.subr.mxu0 %v1224
        %1460 = vmatpush1.msra.mxu0 %v1223
        %1461 = vmatprep.subr.mxu0 %v1230
        %1462 = vmatpush1.msra.mxu0 %v1229
        %1463 = vmatprep.subr.mxu0 %v1236
        %1464 = vmatpush1.msra.mxu0 %v1235
        %1465 = vmatprep.subr.mxu0 %v1242
        %1466 = vmatpush1.msra.mxu0 %v1241
        %1467 = vmatprep.subr.mxu0 %v1248
        %1468 = vmatpush1.msra.mxu0 %v1247
        %1469 = vmatprep.subr.mxu0 %v1254
        %1470 = vmatpush1.msra.mxu0 %v1253
        %1471 = vmatprep.subr.mxu0 %v1260
        %1472 = vmatpush1.msra.mxu0 %v1259
        %1473 = vmatprep.subr.mxu0 %v1266
        %1474 = vmatpush1.msra.mxu0 %v1265
        %1475 = vmatprep.subr.mxu0 %v1272
        %1476 = vmatpush1.msra.mxu0 %v1271
        %1477 = vmatprep.subr.mxu0 %v1278
        %1478 = vmatpush1.msra.mxu0 %v1277
        %1479 = vmatprep.subr.mxu0 %v1284
        %1480 = vmatpush1.msra.mxu0 %v1283
        %1481 = vmatprep.subr.mxu0 %v1290
        %1482 = vmatpush1.msra.mxu0 %v1289
        %1483 = vmatprep.subr.mxu0 %v1296
        %1484 = vmatpush1.msra.mxu0 %v1295
        %1485 = vmatprep.subr.mxu0 %v1302
        %1486 = vmatpush1.msra.mxu0 %v1301
        %1487 = vmatprep.subr.mxu0 %v1308
        %1488 = vmatpush1.msra.mxu0 %v1307
        %1489 = vmatprep.subr.mxu0 %v1314
        %1490 = vmatpush1.msra.mxu0 %v1313
        %1491 = vmatprep.subr.mxu0 %v1320
        %1492 = vmatpush1.msra.mxu0 %v1319
        %1493 = vmatprep.subr.mxu0 %v1326
        %1494 = vmatpush1.msra.mxu0 %v1325
        %1495 = vmatprep.subr.mxu0 %v1332
        %1496 = vmatpush1.msra.mxu0 %v1331
        %1497 = vmatprep.mubr.f32.mxu0 %v999
        %1498 = vmatmul.mubr.f32.gmra.mrb[0].mxu0 %v998
        %v1499 = vpop.f32.mrb[0].mxu0
        %v1500 = vadd.f32 0.0, %v1499
        %v1501 = vpop.f32.mrb[0].mxu0
        %v1502 = vadd.f32 0.0, %v1501
        %1503 = vdwg.mxu0
        %1504 = vmatprep.subr.mxu0 %v1338
        %1505 = vmatpush1.msra.mxu0 %v1337
        %1506 = vmatprep.subr.mxu0 %v1344
        %1507 = vmatpush1.msra.mxu0 %v1343
        %1508 = vmatprep.subr.mxu0 %v1350
        %1509 = vmatpush1.msra.mxu0 %v1349
        %1510 = vmatprep.subr.mxu0 %v1356
        %1511 = vmatpush1.msra.mxu0 %v1355
        %1512 = vmatprep.subr.mxu0 %v1362
        %1513 = vmatpush1.msra.mxu0 %v1361
        %1514 = vmatprep.subr.mxu0 %v1368
        %1515 = vmatpush1.msra.mxu0 %v1367
        %1516 = vmatprep.subr.mxu0 %v1374
        %1517 = vmatpush1.msra.mxu0 %v1373
        %1518 = vmatprep.subr.mxu0 %v1380
        %1519 = vmatpush1.msra.mxu0 %v1379
        %1520 = vmatprep.subr.mxu0 %v1386
        %1521 = vmatpush1.msra.mxu0 %v1385
        %1522 = vmatprep.subr.mxu0 %v1392
        %1523 = vmatpush1.msra.mxu0 %v1391
        %1524 = vmatprep.subr.mxu0 %v1398
        %1525 = vmatpush1.msra.mxu0 %v1397
        %1526 = vmatprep.subr.mxu0 %v1404
        %1527 = vmatpush1.msra.mxu0 %v1403
        %1528 = vmatprep.subr.mxu0 %v1410
        %1529 = vmatpush1.msra.mxu0 %v1409
        %1530 = vmatprep.subr.mxu0 %v1416
        %1531 = vmatpush1.msra.mxu0 %v1415
        %1532 = vmatprep.subr.mxu0 %v1422
        %1533 = vmatpush1.msra.mxu0 %v1421
        %1534 = vmatprep.subr.mxu0 %v1428
        %1535 = vmatpush1.msra.mxu0 %v1427
        %1536 = vmatprep.subr.mxu0 0.0
        %1537 = vmatpush1.msra.mxu0 0.0
        %1538 = vmatprep.subr.mxu0 0.0
        %1539 = vmatpush1.msra.mxu0 0.0
        %1540 = vmatprep.subr.mxu0 0.0
        %1541 = vmatpush1.msra.mxu0 0.0
        %1542 = vmatprep.subr.mxu0 0.0
        %1543 = vmatpush1.msra.mxu0 0.0
        %1544 = vmatprep.subr.mxu0 0.0
        %1545 = vmatpush1.msra.mxu0 0.0
        %1546 = vmatprep.subr.mxu0 0.0
        %1547 = vmatpush1.msra.mxu0 0.0
        %1548 = vmatprep.subr.mxu0 0.0
        %1549 = vmatpush1.msra.mxu0 0.0
        %1550 = vmatprep.subr.mxu0 0.0
        %1551 = vmatpush1.msra.mxu0 0.0
        %1552 = vmatprep.subr.mxu0 0.0
        %1553 = vmatpush1.msra.mxu0 0.0
        %1554 = vmatprep.subr.mxu0 0.0
        %1555 = vmatpush1.msra.mxu0 0.0
        %1556 = vmatprep.subr.mxu0 0.0
        %1557 = vmatpush1.msra.mxu0 0.0
        %1558 = vmatprep.subr.mxu0 0.0
        %1559 = vmatpush1.msra.mxu0 0.0
        %1560 = vmatprep.subr.mxu0 0.0
        %1561 = vmatpush1.msra.mxu0 0.0
        %1562 = vmatprep.subr.mxu0 0.0
        %1563 = vmatpush1.msra.mxu0 0.0
        %1564 = vmatprep.subr.mxu0 0.0
        %1565 = vmatpush1.msra.mxu0 0.0
        %1566 = vmatprep.subr.mxu0 0.0
        %1567 = vmatpush1.msra.mxu0 0.0
        %1568 = vmatprep.mubr.f32.mxu0 0.0
        %1569 = vmatmul.mubr.f32.gmra.mrb[0].mxu0 %v1000
        %v1570 = vpop.f32.mrb[0].mxu0
        %v1571 = vadd.f32 %v1500, %v1570
        %v1572 = vpop.f32.mrb[0].mxu0
        %v1573 = vadd.f32 %v1502, %v1572
        %1574 = vdwg.mxu0
        %1575 = vmatprep.subr.mxu0 %v1148
        %1576 = vmatpush1.msra.mxu0 %v1147
        %1577 = vmatprep.subr.mxu0 %v1154
        %1578 = vmatpush1.msra.mxu0 %v1153
        %1579 = vmatprep.subr.mxu0 %v1160
        %1580 = vmatpush1.msra.mxu0 %v1159
        %1581 = vmatprep.subr.mxu0 %v1166
        %1582 = vmatpush1.msra.mxu0 %v1165
        %1583 = vmatprep.subr.mxu0 %v1172
        %1584 = vmatpush1.msra.mxu0 %v1171
        %1585 = vmatprep.subr.mxu0 %v1178
        %1586 = vmatpush1.msra.mxu0 %v1177
        %1587 = vmatprep.subr.mxu0 %v1184
        %1588 = vmatpush1.msra.mxu0 %v1183
        %1589 = vmatprep.subr.mxu0 %v1190
        %1590 = vmatpush1.msra.mxu0 %v1189
        %1591 = vmatprep.subr.mxu0 %v1196
        %1592 = vmatpush1.msra.mxu0 %v1195
        %1593 = vmatprep.subr.mxu0 %v1202
        %1594 = vmatpush1.msra.mxu0 %v1201
        %1595 = vmatprep.subr.mxu0 %v1208
        %1596 = vmatpush1.msra.mxu0 %v1207
        %1597 = vmatprep.subr.mxu0 %v1214
        %1598 = vmatpush1.msra.mxu0 %v1213
        %1599 = vmatprep.subr.mxu0 %v1220
        %1600 = vmatpush1.msra.mxu0 %v1219
        %1601 = vmatprep.subr.mxu0 %v1226
        %1602 = vmatpush1.msra.mxu0 %v1225
        %1603 = vmatprep.subr.mxu0 %v1232
        %1604 = vmatpush1.msra.mxu0 %v1231
        %1605 = vmatprep.subr.mxu0 %v1238
        %1606 = vmatpush1.msra.mxu0 %v1237
        %1607 = vmatprep.subr.mxu0 %v1244
        %1608 = vmatpush1.msra.mxu0 %v1243
        %1609 = vmatprep.subr.mxu0 %v1250
        %1610 = vmatpush1.msra.mxu0 %v1249
        %1611 = vmatprep.subr.mxu0 %v1256
        %1612 = vmatpush1.msra.mxu0 %v1255
        %1613 = vmatprep.subr.mxu0 %v1262
        %1614 = vmatpush1.msra.mxu0 %v1261
        %1615 = vmatprep.subr.mxu0 %v1268
        %1616 = vmatpush1.msra.mxu0 %v1267
        %1617 = vmatprep.subr.mxu0 %v1274
        %1618 = vmatpush1.msra.mxu0 %v1273
        %1619 = vmatprep.subr.mxu0 %v1280
        %1620 = vmatpush1.msra.mxu0 %v1279
        %1621 = vmatprep.subr.mxu0 %v1286
        %1622 = vmatpush1.msra.mxu0 %v1285
        %1623 = vmatprep.subr.mxu0 %v1292
        %1624 = vmatpush1.msra.mxu0 %v1291
        %1625 = vmatprep.subr.mxu0 %v1298
        %1626 = vmatpush1.msra.mxu0 %v1297
        %1627 = vmatprep.subr.mxu0 %v1304
        %1628 = vmatpush1.msra.mxu0 %v1303
        %1629 = vmatprep.subr.mxu0 %v1310
        %1630 = vmatpush1.msra.mxu0 %v1309
        %1631 = vmatprep.subr.mxu0 %v1316
        %1632 = vmatpush1.msra.mxu0 %v1315
        %1633 = vmatprep.subr.mxu0 %v1322
        %1634 = vmatpush1.msra.mxu0 %v1321
        %1635 = vmatprep.subr.mxu0 %v1328
        %1636 = vmatpush1.msra.mxu0 %v1327
        %1637 = vmatprep.subr.mxu0 %v1334
        %1638 = vmatpush1.msra.mxu0 %v1333
        %1639 = vmatprep.mubr.f32.mxu0 %v999
        %1640 = vmatmul.mubr.f32.gmra.mrb[0].mxu0 %v998
        %v1641 = vpop.f32.mrb[0].mxu0
        %v1642 = vadd.f32 0.0, %v1641
        %v1643 = vpop.f32.mrb[0].mxu0
        %v1644 = vadd.f32 0.0, %v1643
        %1645 = vdwg.mxu0
        %1646 = vmatprep.subr.mxu0 %v1340
        %1647 = vmatpush1.msra.mxu0 %v1339
        %1648 = vmatprep.subr.mxu0 %v1346
        %1649 = vmatpush1.msra.mxu0 %v1345
        %1650 = vmatprep.subr.mxu0 %v1352
        %1651 = vmatpush1.msra.mxu0 %v1351
        %1652 = vmatprep.subr.mxu0 %v1358
        %1653 = vmatpush1.msra.mxu0 %v1357
        %1654 = vmatprep.subr.mxu0 %v1364
        %1655 = vmatpush1.msra.mxu0 %v1363
        %1656 = vmatprep.subr.mxu0 %v1370
        %1657 = vmatpush1.msra.mxu0 %v1369
        %1658 = vmatprep.subr.mxu0 %v1376
        %1659 = vmatpush1.msra.mxu0 %v1375
        %1660 = vmatprep.subr.mxu0 %v1382
        %1661 = vmatpush1.msra.mxu0 %v1381
        %1662 = vmatprep.subr.mxu0 %v1388
        %1663 = vmatpush1.msra.mxu0 %v1387
        %1664 = vmatprep.subr.mxu0 %v1394
        %1665 = vmatpush1.msra.mxu0 %v1393
        %1666 = vmatprep.subr.mxu0 %v1400
        %1667 = vmatpush1.msra.mxu0 %v1399
        %1668 = vmatprep.subr.mxu0 %v1406
        %1669 = vmatpush1.msra.mxu0 %v1405
        %1670 = vmatprep.subr.mxu0 %v1412
        %1671 = vmatpush1.msra.mxu0 %v1411
        %1672 = vmatprep.subr.mxu0 %v1418
        %1673 = vmatpush1.msra.mxu0 %v1417
        %1674 = vmatprep.subr.mxu0 %v1424
        %1675 = vmatpush1.msra.mxu0 %v1423
        %1676 = vmatprep.subr.mxu0 %v1430
        %1677 = vmatpush1.msra.mxu0 %v1429
        %1678 = vmatprep.subr.mxu0 0.0
        %1679 = vmatpush1.msra.mxu0 0.0
        %1680 = vmatprep.subr.mxu0 0.0
        %1681 = vmatpush1.msra.mxu0 0.0
        %1682 = vmatprep.subr.mxu0 0.0
        %1683 = vmatpush1.msra.mxu0 0.0
        %1684 = vmatprep.subr.mxu0 0.0
        %1685 = vmatpush1.msra.mxu0 0.0
        %1686 = vmatprep.subr.mxu0 0.0
        %1687 = vmatpush1.msra.mxu0 0.0
        %1688 = vmatprep.subr.mxu0 0.0
        %1689 = vmatpush1.msra.mxu0 0.0
        %1690 = vmatprep.subr.mxu0 0.0
        %1691 = vmatpush1.msra.mxu0 0.0
        %1692 = vmatprep.subr.mxu0 0.0
        %1693 = vmatpush1.msra.mxu0 0.0
        %1694 = vmatprep.subr.mxu0 0.0
        %1695 = vmatpush1.msra.mxu0 0.0
        %1696 = vmatprep.subr.mxu0 0.0
        %1697 = vmatpush1.msra.mxu0 0.0
        %1698 = vmatprep.subr.mxu0 0.0
        %1699 = vmatpush1.msra.mxu0 0.0
        %1700 = vmatprep.subr.mxu0 0.0
        %1701 = vmatpush1.msra.mxu0 0.0
        %1702 = vmatprep.subr.mxu0 0.0
        %1703 = vmatpush1.msra.mxu0 0.0
        %1704 = vmatprep.subr.mxu0 0.0
        %1705 = vmatpush1.msra.mxu0 0.0
        %1706 = vmatprep.subr.mxu0 0.0
        %1707 = vmatpush1.msra.mxu0 0.0
        %1708 = vmatprep.subr.mxu0 0.0
        %1709 = vmatpush1.msra.mxu0 0.0
        %1710 = vmatprep.mubr.f32.mxu0 0.0
        %1711 = vmatmul.mubr.f32.gmra.mrb[0].mxu0 %v1000
        %v1712 = vpop.f32.mrb[0].mxu0
        %v1713 = vadd.f32 %v1642, %v1712
        %v1714 = vpop.f32.mrb[0].mxu0
        %v1715 = vadd.f32 %v1644, %v1714
        %1716 = vdwg.mxu0
        %1717 = vmatprep.subr.mxu0 %v1150
        %1718 = vmatpush1.msra.mxu0 %v1149
        %1719 = vmatprep.subr.mxu0 %v1156
        %1720 = vmatpush1.msra.mxu0 %v1155
        %1721 = vmatprep.subr.mxu0 %v1162
        %1722 = vmatpush1.msra.mxu0 %v1161
        %1723 = vmatprep.subr.mxu0 %v1168
        %1724 = vmatpush1.msra.mxu0 %v1167
        %1725 = vmatprep.subr.mxu0 %v1174
        %1726 = vmatpush1.msra.mxu0 %v1173
        %1727 = vmatprep.subr.mxu0 %v1180
        %1728 = vmatpush1.msra.mxu0 %v1179
        %1729 = vmatprep.subr.mxu0 %v1186
        %1730 = vmatpush1.msra.mxu0 %v1185
        %1731 = vmatprep.subr.mxu0 %v1192
        %1732 = vmatpush1.msra.mxu0 %v1191
        %1733 = vmatprep.subr.mxu0 %v1198
        %1734 = vmatpush1.msra.mxu0 %v1197
        %1735 = vmatprep.subr.mxu0 %v1204
        %1736 = vmatpush1.msra.mxu0 %v1203
        %1737 = vmatprep.subr.mxu0 %v1210
        %1738 = vmatpush1.msra.mxu0 %v1209
        %1739 = vmatprep.subr.mxu0 %v1216
        %1740 = vmatpush1.msra.mxu0 %v1215
        %1741 = vmatprep.subr.mxu0 %v1222
        %1742 = vmatpush1.msra.mxu0 %v1221
        %1743 = vmatprep.subr.mxu0 %v1228
        %1744 = vmatpush1.msra.mxu0 %v1227
        %1745 = vmatprep.subr.mxu0 %v1234
        %1746 = vmatpush1.msra.mxu0 %v1233
        %1747 = vmatprep.subr.mxu0 %v1240
        %1748 = vmatpush1.msra.mxu0 %v1239
        %1749 = vmatprep.subr.mxu0 %v1246
        %1750 = vmatpush1.msra.mxu0 %v1245
        %1751 = vmatprep.subr.mxu0 %v1252
        %1752 = vmatpush1.msra.mxu0 %v1251
        %1753 = vmatprep.subr.mxu0 %v1258
        %1754 = vmatpush1.msra.mxu0 %v1257
        %1755 = vmatprep.subr.mxu0 %v1264
        %1756 = vmatpush1.msra.mxu0 %v1263
        %1757 = vmatprep.subr.mxu0 %v1270
        %1758 = vmatpush1.msra.mxu0 %v1269
        %1759 = vmatprep.subr.mxu0 %v1276
        %1760 = vmatpush1.msra.mxu0 %v1275
        %1761 = vmatprep.subr.mxu0 %v1282
        %1762 = vmatpush1.msra.mxu0 %v1281
        %1763 = vmatprep.subr.mxu0 %v1288
        %1764 = vmatpush1.msra.mxu0 %v1287
        %1765 = vmatprep.subr.mxu0 %v1294
        %1766 = vmatpush1.msra.mxu0 %v1293
        %1767 = vmatprep.subr.mxu0 %v1300
        %1768 = vmatpush1.msra.mxu0 %v1299
        %1769 = vmatprep.subr.mxu0 %v1306
        %1770 = vmatpush1.msra.mxu0 %v1305
        %1771 = vmatprep.subr.mxu0 %v1312
        %1772 = vmatpush1.msra.mxu0 %v1311
        %1773 = vmatprep.subr.mxu0 %v1318
        %1774 = vmatpush1.msra.mxu0 %v1317
        %1775 = vmatprep.subr.mxu0 %v1324
        %1776 = vmatpush1.msra.mxu0 %v1323
        %1777 = vmatprep.subr.mxu0 %v1330
        %1778 = vmatpush1.msra.mxu0 %v1329
        %1779 = vmatprep.subr.mxu0 %v1336
        %1780 = vmatpush1.msra.mxu0 %v1335
        %1781 = vmatprep.mubr.f32.mxu0 %v999
        %1782 = vmatmul.mubr.f32.gmra.mrb[0].mxu0 %v998
        %v1783 = vpop.f32.mrb[0].mxu0
        %v1784 = vadd.f32 0.0, %v1783
        %v1785 = vpop.f32.mrb[0].mxu0
        %v1786 = vadd.f32 0.0, %v1785
        %1787 = vdwg.mxu0
        %1788 = vmatprep.subr.mxu0 %v1342
        %1789 = vmatpush1.msra.mxu0 %v1341
        %1790 = vmatprep.subr.mxu0 %v1348
        %1791 = vmatpush1.msra.mxu0 %v1347
        %1792 = vmatprep.subr.mxu0 %v1354
        %1793 = vmatpush1.msra.mxu0 %v1353
        %1794 = vmatprep.subr.mxu0 %v1360
        %1795 = vmatpush1.msra.mxu0 %v1359
        %1796 = vmatprep.subr.mxu0 %v1366
        %1797 = vmatpush1.msra.mxu0 %v1365
        %1798 = vmatprep.subr.mxu0 %v1372
        %1799 = vmatpush1.msra.mxu0 %v1371
        %1800 = vmatprep.subr.mxu0 %v1378
        %1801 = vmatpush1.msra.mxu0 %v1377
        %1802 = vmatprep.subr.mxu0 %v1384
        %1803 = vmatpush1.msra.mxu0 %v1383
        %1804 = vmatprep.subr.mxu0 %v1390
        %1805 = vmatpush1.msra.mxu0 %v1389
        %1806 = vmatprep.subr.mxu0 %v1396
        %1807 = vmatpush1.msra.mxu0 %v1395
        %1808 = vmatprep.subr.mxu0 %v1402
        %1809 = vmatpush1.msra.mxu0 %v1401
        %1810 = vmatprep.subr.mxu0 %v1408
        %1811 = vmatpush1.msra.mxu0 %v1407
        %1812 = vmatprep.subr.mxu0 %v1414
        %1813 = vmatpush1.msra.mxu0 %v1413
        %1814 = vmatprep.subr.mxu0 %v1420
        %1815 = vmatpush1.msra.mxu0 %v1419
        %1816 = vmatprep.subr.mxu0 %v1426
        %1817 = vmatpush1.msra.mxu0 %v1425
        %1818 = vmatprep.subr.mxu0 %v1432
        %1819 = vmatpush1.msra.mxu0 %v1431
        %1820 = vmatprep.subr.mxu0 0.0
        %1821 = vmatpush1.msra.mxu0 0.0
        %1822 = vmatprep.subr.mxu0 0.0
        %1823 = vmatpush1.msra.mxu0 0.0
        %1824 = vmatprep.subr.mxu0 0.0
        %1825 = vmatpush1.msra.mxu0 0.0
        %1826 = vmatprep.subr.mxu0 0.0
        %1827 = vmatpush1.msra.mxu0 0.0
        %1828 = vmatprep.subr.mxu0 0.0
        %1829 = vmatpush1.msra.mxu0 0.0
        %1830 = vmatprep.subr.mxu0 0.0
        %1831 = vmatpush1.msra.mxu0 0.0
        %1832 = vmatprep.subr.mxu0 0.0
        %1833 = vmatpush1.msra.mxu0 0.0
        %1834 = vmatprep.subr.mxu0 0.0
        %1835 = vmatpush1.msra.mxu0 0.0
        %1836 = vmatprep.subr.mxu0 0.0
        %1837 = vmatpush1.msra.mxu0 0.0
        %1838 = vmatprep.subr.mxu0 0.0
        %1839 = vmatpush1.msra.mxu0 0.0
        %1840 = vmatprep.subr.mxu0 0.0
        %1841 = vmatpush1.msra.mxu0 0.0
        %1842 = vmatprep.subr.mxu0 0.0
        %1843 = vmatpush1.msra.mxu0 0.0
        %1844 = vmatprep.subr.mxu0 0.0
        %1845 = vmatpush1.msra.mxu0 0.0
        %1846 = vmatprep.subr.mxu0 0.0
        %1847 = vmatpush1.msra.mxu0 0.0
        %1848 = vmatprep.subr.mxu0 0.0
        %1849 = vmatpush1.msra.mxu0 0.0
        %1850 = vmatprep.subr.mxu0 0.0
        %1851 = vmatpush1.msra.mxu0 0.0
        %1852 = vmatprep.mubr.f32.mxu0 0.0
        %1853 = vmatmul.mubr.f32.gmra.mrb[0].mxu0 %v1000
        %v1854 = vpop.f32.mrb[0].mxu0
        %v1855 = vadd.f32 %v1784, %v1854
        %v1856 = vpop.f32.mrb[0].mxu0
        %v1857 = vadd.f32 %v1786, %v1856
        %1858 = vdwg.mxu0
        %v1859 = vld [vmem:[%s4] sm:$0xff]
        %v1860 = vld [vmem:[%s4 + $0x8] sm:$0xf]
        %v1863 = vlaneseq
        %v1864 = vshrl.u32 %v1863, 7
        %v1865 = vsub.s32 1, %v1864
        %v1866 = vrot.slane %v1859, %v1865
        %v1867 = vlaneseq
        %v1868 = vshrl.u32 %v1867, 7
        %v1869 = vsub.s32 5, %v1868
        %v1870 = vrot.slane %v1859, %v1869
        %v1871 = vlaneseq
        %v1872 = vshrl.u32 %v1871, 7
        %v1873 = vsub.s32 1, %v1872
        %v1874 = vrot.slane %v1860, %v1873
        %v1878 = vlaneseq
        %v1879 = vshrl.u32 %v1878, 7
        %v1880 = vsub.s32 1, %v1879
        %v1881 = vrot.slane %v1866, %v1880
        %v1882 = vlaneseq
        %v1883 = vshrl.u32 %v1882, 7
        %v1884 = vsub.s32 1, %v1883
        %v1885 = vrot.slane %v1870, %v1884
        %v1886 = vlaneseq
        %v1887 = vshrl.u32 %v1886, 7
        %v1888 = vsub.s32 1, %v1887
        %v1889 = vrot.slane %v1874, %v1888
        %v1890 = vmul.f32 %v1881, %v1571
        %v1891 = vmul.f32 %v1885, %v1573
        %v1892 = vmul.f32 %v1889, %v1713
        %v1893 = vlaneseq
        %v1894 = vshrl.u32 %v1893, 7
        %v1895 = vsub.s32 0, %v1894
        %v1896 = vrot.slane %v1859, %v1895
        %v1897 = vlaneseq
        %v1898 = vshrl.u32 %v1897, 7
        %v1899 = vsub.s32 4, %v1898
        %v1900 = vrot.slane %v1859, %v1899
        %v1901 = vlaneseq
        %v1902 = vshrl.u32 %v1901, 7
        %v1903 = vsub.s32 0, %v1902
        %v1904 = vrot.slane %v1860, %v1903
        %v1908 = vlaneseq
        %v1909 = vshrl.u32 %v1908, 7
        %v1910 = vsub.s32 0, %v1909
        %v1911 = vrot.slane %v1896, %v1910
        %v1912 = vlaneseq
        %v1913 = vshrl.u32 %v1912, 7
        %v1914 = vsub.s32 0, %v1913
        %v1915 = vrot.slane %v1900, %v1914
        %v1916 = vlaneseq
        %v1917 = vshrl.u32 %v1916, 7
        %v1918 = vsub.s32 0, %v1917
        %v1919 = vrot.slane %v1904, %v1918
        %v1920 = vadd.f32 %v1911, %v1890
        %v1921 = vadd.f32 %v1915, %v1891
        %v1922 = vadd.f32 %v1919, %v1892
        %v1923 = vlaneseq
        %v1924 = vshrl.u32 %v1923, 7
        %v1925 = vsub.s32 2, %v1924
        %v1926 = vrot.slane %v1859, %v1925
        %v1927 = vlaneseq
        %v1928 = vshrl.u32 %v1927, 7
        %v1929 = vsub.s32 6, %v1928
        %v1930 = vrot.slane %v1859, %v1929
        %v1931 = vlaneseq
        %v1932 = vshrl.u32 %v1931, 7
        %v1933 = vsub.s32 2, %v1932
        %v1934 = vrot.slane %v1860, %v1933
        %v1938 = vlaneseq
        %v1939 = vshrl.u32 %v1938, 7
        %v1940 = vsub.s32 2, %v1939
        %v1941 = vrot.slane %v1926, %v1940
        %v1942 = vlaneseq
        %v1943 = vshrl.u32 %v1942, 7
        %v1944 = vsub.s32 2, %v1943
        %v1945 = vrot.slane %v1930, %v1944
        %v1946 = vlaneseq
        %v1947 = vshrl.u32 %v1946, 7
        %v1948 = vsub.s32 2, %v1947
        %v1949 = vrot.slane %v1934, %v1948
        %v1950 = vmul.f32 %v1941, %v1715
        %v1951 = vmul.f32 %v1945, %v1855
        %v1952 = vmul.f32 %v1949, %v1857
        %v1953 = vadd.f32 %v1920, %v1950
        %v1954 = vadd.f32 %v1921, %v1951
        %v1955 = vadd.f32 %v1922, %v1952
        %v1956 = vmul.f32 %v1571, %v1715
        %v1957 = vmul.f32 %v1573, %v1855
        %v1958 = vmul.f32 %v1713, %v1857
        %v1959 = vlaneseq
        %v1960 = vshrl.u32 %v1959, 7
        %v1961 = vsub.s32 3, %v1960
        %v1962 = vrot.slane %v1859, %v1961
        %v1963 = vlaneseq
        %v1964 = vshrl.u32 %v1963, 7
        %v1965 = vsub.s32 7, %v1964
        %v1966 = vrot.slane %v1859, %v1965
        %v1967 = vlaneseq
        %v1968 = vshrl.u32 %v1967, 7
        %v1969 = vsub.s32 3, %v1968
        %v1970 = vrot.slane %v1860, %v1969
        %v1974 = vlaneseq
        %v1975 = vshrl.u32 %v1974, 7
        %v1976 = vsub.s32 3, %v1975
        %v1977 = vrot.slane %v1962, %v1976
        %v1978 = vlaneseq
        %v1979 = vshrl.u32 %v1978, 7
        %v1980 = vsub.s32 3, %v1979
        %v1981 = vrot.slane %v1966, %v1980
        %v1982 = vlaneseq
        %v1983 = vshrl.u32 %v1982, 7
        %v1984 = vsub.s32 3, %v1983
        %v1985 = vrot.slane %v1970, %v1984
        %v1986 = vmul.f32 %v1977, %v1956
        %v1987 = vmul.f32 %v1981, %v1957
        %v1988 = vmul.f32 %v1985, %v1958
        %v1989 = vadd.f32 %v1953, %v1986
        %v1990 = vadd.f32 %v1954, %v1987
        %v1991 = vadd.f32 %v1955, %v1988
        %v1992 = vld [vmem:[#allocation10] sm:$0xff]
        %v1993 = vld [vmem:[#allocation10 + $0x8] sm:$0xff]
        %v1994 = vld [vmem:[#allocation10 + $0x10] sm:$0xff]
        %v1995 = vld [vmem:[#allocation10 + $0x18] sm:$0xff]
        %v1996 = vld [vmem:[#allocation10 + $0x20] sm:$0xff]
        %v1997 = vld [vmem:[#allocation10 + $0x28] sm:$0xff]
        %v1998 = vld [vmem:[#allocation10 + $0x30] sm:$0xff]
        %v1999 = vld [vmem:[#allocation10 + $0x38] sm:$0xff]
        %v2000 = vld [vmem:[#allocation10 + $0x40] sm:$0xff]
        %v2001 = vld [vmem:[#allocation10 + $0x48] sm:$0xff]
        %v2002 = vld [vmem:[#allocation10 + $0x50] sm:$0xff]
        %v2003 = vld [vmem:[#allocation10 + $0x58] sm:$0xff]
        %v2004 = vld [vmem:[#allocation10 + $0x60] sm:$0xff]
        %v2005 = vld [vmem:[#allocation10 + $0x68] sm:$0xff]
        %v2006 = vld [vmem:[#allocation10 + $0x70] sm:$0xff]
        %v2007 = vld [vmem:[#allocation10 + $0x78] sm:$0xff]
        %v2008 = vld [vmem:[#allocation10 + $0x80] sm:$0xff]
        %v2009 = vld [vmem:[#allocation10 + $0x88] sm:$0xff]
        %v2010 = vld [vmem:[#allocation10 + $0x90] sm:$0xff]
        %v2011 = vld [vmem:[#allocation10 + $0x98] sm:$0xff]
        %v2012 = vld [vmem:[#allocation10 + $0xa0] sm:$0xff]
        %v2013 = vld [vmem:[#allocation10 + $0xa8] sm:$0xff]
        %v2014 = vld [vmem:[#allocation10 + $0xb0] sm:$0xff]
        %v2015 = vld [vmem:[#allocation10 + $0xb8] sm:$0xff]
        %v2016 = vld [vmem:[#allocation10 + $0xc0] sm:$0xff]
        %v2017 = vld [vmem:[#allocation10 + $0xc8] sm:$0xff]
        %v2018 = vld [vmem:[#allocation10 + $0xd0] sm:$0xff]
        %v2019 = vld [vmem:[#allocation10 + $0xd8] sm:$0xff]
        %v2020 = vld [vmem:[#allocation10 + $0xe0] sm:$0xff]
        %v2021 = vld [vmem:[#allocation10 + $0xe8] sm:$0xff]
        %v2022 = vld [vmem:[#allocation10 + $0xf0] sm:$0xff]
        %v2023 = vld [vmem:[#allocation10 + $0xf8] sm:$0xff]
        %v2024 = vld [vmem:[#allocation10 + $0x100] sm:$0xff]
        %v2025 = vld [vmem:[#allocation10 + $0x108] sm:$0xff]
        %v2026 = vld [vmem:[#allocation10 + $0x110] sm:$0xff]
        %v2027 = vld [vmem:[#allocation10 + $0x118] sm:$0xff]
        %v2028 = vld [vmem:[#allocation10 + $0x120] sm:$0xff]
        %v2029 = vld [vmem:[#allocation10 + $0x128] sm:$0xff]
        %v2030 = vld [vmem:[#allocation10 + $0x130] sm:$0xff]
        %v2031 = vld [vmem:[#allocation10 + $0x138] sm:$0xff]
        %v2032 = vld [vmem:[#allocation10 + $0x140] sm:$0xff]
        %v2033 = vld [vmem:[#allocation10 + $0x148] sm:$0xff]
        %v2034 = vld [vmem:[#allocation10 + $0x150] sm:$0xff]
        %v2035 = vld [vmem:[#allocation10 + $0x158] sm:$0xff]
        %v2036 = vld [vmem:[#allocation10 + $0x160] sm:$0xff]
        %v2037 = vld [vmem:[#allocation10 + $0x168] sm:$0xff]
        %v2038 = vld [vmem:[#allocation10 + $0x170] sm:$0xff]
        %v2039 = vld [vmem:[#allocation10 + $0x178] sm:$0xff]
        %v2040 = vld [vmem:[#allocation10 + $0x180] sm:$0xff]
        %v2041 = vld [vmem:[#allocation10 + $0x188] sm:$0xff]
        %v2042 = vld [vmem:[#allocation10 + $0x190] sm:$0xff]
        %v2043 = vld [vmem:[#allocation10 + $0x198] sm:$0xff]
        %v2044 = vld [vmem:[#allocation10 + $0x1a0] sm:$0xff]
        %v2045 = vld [vmem:[#allocation10 + $0x1a8] sm:$0xff]
        %v2046 = vld [vmem:[#allocation10 + $0x1b0] sm:$0xff]
        %v2047 = vld [vmem:[#allocation10 + $0x1b8] sm:$0xff]
        %v2048 = vld [vmem:[#allocation10 + $0x1c0] sm:$0xff]
        %v2049 = vld [vmem:[#allocation10 + $0x1c8] sm:$0xff]
        %v2050 = vld [vmem:[#allocation10 + $0x1d0] sm:$0xff]
        %v2051 = vld [vmem:[#allocation10 + $0x1d8] sm:$0xff]
        %v2052 = vld [vmem:[#allocation10 + $0x1e0] sm:$0xff]
        %v2053 = vld [vmem:[#allocation10 + $0x1e8] sm:$0xff]
        %v2054 = vld [vmem:[#allocation10 + $0x1f0] sm:$0xff]
        %v2055 = vld [vmem:[#allocation10 + $0x1f8] sm:$0xff]
        %v2056 = vld [vmem:[#allocation10 + $0x200] sm:$0xff]
        %v2057 = vld [vmem:[#allocation10 + $0x208] sm:$0xff]
        %v2058 = vld [vmem:[#allocation10 + $0x210] sm:$0xff]
        %v2059 = vld [vmem:[#allocation10 + $0x218] sm:$0xff]
        %v2060 = vld [vmem:[#allocation10 + $0x220] sm:$0xff]
        %v2061 = vld [vmem:[#allocation10 + $0x228] sm:$0xff]
        %v2062 = vld [vmem:[#allocation10 + $0x230] sm:$0xff]
        %v2063 = vld [vmem:[#allocation10 + $0x238] sm:$0xff]
        %v2064 = vld [vmem:[#allocation10 + $0x240] sm:$0xff]
        %v2065 = vld [vmem:[#allocation10 + $0x248] sm:$0xff]
        %v2066 = vld [vmem:[#allocation10 + $0x250] sm:$0xff]
        %v2067 = vld [vmem:[#allocation10 + $0x258] sm:$0xff]
        %v2068 = vld [vmem:[#allocation10 + $0x260] sm:$0xff]
        %v2069 = vld [vmem:[#allocation10 + $0x268] sm:$0xff]
        %v2070 = vld [vmem:[#allocation10 + $0x270] sm:$0xff]
        %v2071 = vld [vmem:[#allocation10 + $0x278] sm:$0xff]
        %v2072 = vld [vmem:[#allocation10 + $0x280] sm:$0xff]
        %v2073 = vld [vmem:[#allocation10 + $0x288] sm:$0xff]
        %v2074 = vld [vmem:[#allocation10 + $0x290] sm:$0xff]
        %v2075 = vld [vmem:[#allocation10 + $0x298] sm:$0xff]
        %v2076 = vld [vmem:[#allocation10 + $0x2a0] sm:$0xff]
        %v2077 = vld [vmem:[#allocation10 + $0x2a8] sm:$0xff]
        %v2078 = vld [vmem:[#allocation10 + $0x2b0] sm:$0xff]
        %v2079 = vld [vmem:[#allocation10 + $0x2b8] sm:$0xff]
        %v2080 = vld [vmem:[#allocation10 + $0x2c0] sm:$0xff]
        %v2081 = vld [vmem:[#allocation10 + $0x2c8] sm:$0xff]
        %v2082 = vld [vmem:[#allocation10 + $0x2d0] sm:$0xff]
        %v2083 = vld [vmem:[#allocation10 + $0x2d8] sm:$0xff]
        %v2084 = vld [vmem:[#allocation10 + $0x2e0] sm:$0xff]
        %v2085 = vld [vmem:[#allocation10 + $0x2e8] sm:$0xff]
        %v2086 = vld [vmem:[#allocation10 + $0x2f0] sm:$0xff]
        %v2087 = vld [vmem:[#allocation10 + $0x2f8] sm:$0xff]
        %v2088 = vld [vmem:[#allocation10 + $0x300] sm:$0xff]
        %v2089 = vld [vmem:[#allocation10 + $0x308] sm:$0xff]
        %v2090 = vld [vmem:[#allocation10 + $0x310] sm:$0xff]
        %v2091 = vld [vmem:[#allocation10 + $0x318] sm:$0xff]
        %v2092 = vld [vmem:[#allocation10 + $0x320] sm:$0xff]
        %v2093 = vld [vmem:[#allocation10 + $0x328] sm:$0xff]
        %v2094 = vld [vmem:[#allocation10 + $0x330] sm:$0xff]
        %v2095 = vld [vmem:[#allocation10 + $0x338] sm:$0xff]
        %v2096 = vld [vmem:[#allocation10 + $0x340] sm:$0xff]
        %v2097 = vld [vmem:[#allocation10 + $0x348] sm:$0xff]
        %v2098 = vld [vmem:[#allocation10 + $0x350] sm:$0xff]
        %v2099 = vld [vmem:[#allocation10 + $0x358] sm:$0xff]
        %v2100 = vld [vmem:[#allocation10 + $0x360] sm:$0xff]
        %v2101 = vld [vmem:[#allocation10 + $0x368] sm:$0xff]
        %v2102 = vld [vmem:[#allocation10 + $0x370] sm:$0xff]
        %v2103 = vld [vmem:[#allocation10 + $0x378] sm:$0xff]
        %v2104 = vld [vmem:[#allocation10 + $0x380] sm:$0xff]
        %v2105 = vld [vmem:[#allocation10 + $0x388] sm:$0xff]
        %v2106 = vld [vmem:[#allocation10 + $0x390] sm:$0xff]
        %v2107 = vld [vmem:[#allocation10 + $0x398] sm:$0xff]
        %v2108 = vld [vmem:[#allocation10 + $0x3a0] sm:$0xff]
        %v2109 = vld [vmem:[#allocation10 + $0x3a8] sm:$0xff]
        %v2110 = vld [vmem:[#allocation10 + $0x3b0] sm:$0xff]
        %v2111 = vld [vmem:[#allocation10 + $0x3b8] sm:$0xff]
        %v2112 = vld [vmem:[#allocation10 + $0x3c0] sm:$0xff]
        %v2113 = vld [vmem:[#allocation10 + $0x3c8] sm:$0xff]
        %v2114 = vld [vmem:[#allocation10 + $0x3d0] sm:$0xff]
        %v2115 = vld [vmem:[#allocation10 + $0x3d8] sm:$0xff]
        %v2116 = vld [vmem:[#allocation10 + $0x3e0] sm:$0xff]
        %v2117 = vld [vmem:[#allocation10 + $0x3e8] sm:$0xff]
        %v2118 = vld [vmem:[#allocation10 + $0x3f0] sm:$0xff]
        %v2119 = vld [vmem:[#allocation10 + $0x3f8] sm:$0xff]
        %v2120 = vld [vmem:[#allocation10 + $0x400] sm:$0xff]
        %v2121 = vld [vmem:[#allocation10 + $0x408] sm:$0xff]
        %v2122 = vld [vmem:[#allocation10 + $0x410] sm:$0xff]
        %v2123 = vld [vmem:[#allocation10 + $0x418] sm:$0xff]
        %v2124 = vld [vmem:[#allocation10 + $0x420] sm:$0xff]
        %v2125 = vld [vmem:[#allocation10 + $0x428] sm:$0xff]
        %v2126 = vld [vmem:[#allocation10 + $0x430] sm:$0xff]
        %v2127 = vld [vmem:[#allocation10 + $0x438] sm:$0xff]
        %v2128 = vld [vmem:[#allocation10 + $0x440] sm:$0xff]
        %v2129 = vld [vmem:[#allocation10 + $0x448] sm:$0xff]
        %v2130 = vld [vmem:[#allocation10 + $0x450] sm:$0xff]
        %v2131 = vld [vmem:[#allocation10 + $0x458] sm:$0xff]
        %v2132 = vld [vmem:[#allocation10 + $0x460] sm:$0xff]
        %v2133 = vld [vmem:[#allocation10 + $0x468] sm:$0xff]
        %v2134 = vld [vmem:[#allocation10 + $0x470] sm:$0xff]
        %v2135 = vld [vmem:[#allocation10 + $0x478] sm:$0xff]
        %v2136 = vunpack.c.l.bf16 %v1992
        %v2137 = vunpack.c.h.bf16 %v1992
        %v2138 = vunpack.c.l.bf16 %v1993
        %v2139 = vunpack.c.h.bf16 %v1993
        %v2140 = vunpack.c.l.bf16 %v1994
        %v2141 = vunpack.c.h.bf16 %v1994
        %v2142 = vunpack.c.l.bf16 %v1995
        %v2143 = vunpack.c.h.bf16 %v1995
        %v2144 = vunpack.c.l.bf16 %v1996
        %v2145 = vunpack.c.h.bf16 %v1996
        %v2146 = vunpack.c.l.bf16 %v1997
        %v2147 = vunpack.c.h.bf16 %v1997
        %v2148 = vunpack.c.l.bf16 %v1998
        %v2149 = vunpack.c.h.bf16 %v1998
        %v2150 = vunpack.c.l.bf16 %v1999
        %v2151 = vunpack.c.h.bf16 %v1999
        %v2152 = vunpack.c.l.bf16 %v2000
        %v2153 = vunpack.c.h.bf16 %v2000
        %v2154 = vunpack.c.l.bf16 %v2001
        %v2155 = vunpack.c.h.bf16 %v2001
        %v2156 = vunpack.c.l.bf16 %v2002
        %v2157 = vunpack.c.h.bf16 %v2002
        %v2158 = vunpack.c.l.bf16 %v2003
        %v2159 = vunpack.c.h.bf16 %v2003
        %v2160 = vunpack.c.l.bf16 %v2004
        %v2161 = vunpack.c.h.bf16 %v2004
        %v2162 = vunpack.c.l.bf16 %v2005
        %v2163 = vunpack.c.h.bf16 %v2005
        %v2164 = vunpack.c.l.bf16 %v2006
        %v2165 = vunpack.c.h.bf16 %v2006
        %v2166 = vunpack.c.l.bf16 %v2007
        %v2167 = vunpack.c.h.bf16 %v2007
        %v2168 = vunpack.c.l.bf16 %v2008
        %v2169 = vunpack.c.h.bf16 %v2008
        %v2170 = vunpack.c.l.bf16 %v2009
        %v2171 = vunpack.c.h.bf16 %v2009
        %v2172 = vunpack.c.l.bf16 %v2010
        %v2173 = vunpack.c.h.bf16 %v2010
        %v2174 = vunpack.c.l.bf16 %v2011
        %v2175 = vunpack.c.h.bf16 %v2011
        %v2176 = vunpack.c.l.bf16 %v2012
        %v2177 = vunpack.c.h.bf16 %v2012
        %v2178 = vunpack.c.l.bf16 %v2013
        %v2179 = vunpack.c.h.bf16 %v2013
        %v2180 = vunpack.c.l.bf16 %v2014
        %v2181 = vunpack.c.h.bf16 %v2014
        %v2182 = vunpack.c.l.bf16 %v2015
        %v2183 = vunpack.c.h.bf16 %v2015
        %v2184 = vunpack.c.l.bf16 %v2016
        %v2185 = vunpack.c.h.bf16 %v2016
        %v2186 = vunpack.c.l.bf16 %v2017
        %v2187 = vunpack.c.h.bf16 %v2017
        %v2188 = vunpack.c.l.bf16 %v2018
        %v2189 = vunpack.c.h.bf16 %v2018
        %v2190 = vunpack.c.l.bf16 %v2019
        %v2191 = vunpack.c.h.bf16 %v2019
        %v2192 = vunpack.c.l.bf16 %v2020
        %v2193 = vunpack.c.h.bf16 %v2020
        %v2194 = vunpack.c.l.bf16 %v2021
        %v2195 = vunpack.c.h.bf16 %v2021
        %v2196 = vunpack.c.l.bf16 %v2022
        %v2197 = vunpack.c.h.bf16 %v2022
        %v2198 = vunpack.c.l.bf16 %v2023
        %v2199 = vunpack.c.h.bf16 %v2023
        %v2200 = vunpack.c.l.bf16 %v2024
        %v2201 = vunpack.c.h.bf16 %v2024
        %v2202 = vunpack.c.l.bf16 %v2025
        %v2203 = vunpack.c.h.bf16 %v2025
        %v2204 = vunpack.c.l.bf16 %v2026
        %v2205 = vunpack.c.h.bf16 %v2026
        %v2206 = vunpack.c.l.bf16 %v2027
        %v2207 = vunpack.c.h.bf16 %v2027
        %v2208 = vunpack.c.l.bf16 %v2028
        %v2209 = vunpack.c.h.bf16 %v2028
        %v2210 = vunpack.c.l.bf16 %v2029
        %v2211 = vunpack.c.h.bf16 %v2029
        %v2212 = vunpack.c.l.bf16 %v2030
        %v2213 = vunpack.c.h.bf16 %v2030
        %v2214 = vunpack.c.l.bf16 %v2031
        %v2215 = vunpack.c.h.bf16 %v2031
        %v2216 = vunpack.c.l.bf16 %v2032
        %v2217 = vunpack.c.h.bf16 %v2032
        %v2218 = vunpack.c.l.bf16 %v2033
        %v2219 = vunpack.c.h.bf16 %v2033
        %v2220 = vunpack.c.l.bf16 %v2034
        %v2221 = vunpack.c.h.bf16 %v2034
        %v2222 = vunpack.c.l.bf16 %v2035
        %v2223 = vunpack.c.h.bf16 %v2035
        %v2224 = vunpack.c.l.bf16 %v2036
        %v2225 = vunpack.c.h.bf16 %v2036
        %v2226 = vunpack.c.l.bf16 %v2037
        %v2227 = vunpack.c.h.bf16 %v2037
        %v2228 = vunpack.c.l.bf16 %v2038
        %v2229 = vunpack.c.h.bf16 %v2038
        %v2230 = vunpack.c.l.bf16 %v2039
        %v2231 = vunpack.c.h.bf16 %v2039
        %v2232 = vunpack.c.l.bf16 %v2040
        %v2233 = vunpack.c.h.bf16 %v2040
        %v2234 = vunpack.c.l.bf16 %v2041
        %v2235 = vunpack.c.h.bf16 %v2041
        %v2236 = vunpack.c.l.bf16 %v2042
        %v2237 = vunpack.c.h.bf16 %v2042
        %v2238 = vunpack.c.l.bf16 %v2043
        %v2239 = vunpack.c.h.bf16 %v2043
        %v2240 = vunpack.c.l.bf16 %v2044
        %v2241 = vunpack.c.h.bf16 %v2044
        %v2242 = vunpack.c.l.bf16 %v2045
        %v2243 = vunpack.c.h.bf16 %v2045
        %v2244 = vunpack.c.l.bf16 %v2046
        %v2245 = vunpack.c.h.bf16 %v2046
        %v2246 = vunpack.c.l.bf16 %v2047
        %v2247 = vunpack.c.h.bf16 %v2047
        %v2248 = vunpack.c.l.bf16 %v2048
        %v2249 = vunpack.c.h.bf16 %v2048
        %v2250 = vunpack.c.l.bf16 %v2049
        %v2251 = vunpack.c.h.bf16 %v2049
        %v2252 = vunpack.c.l.bf16 %v2050
        %v2253 = vunpack.c.h.bf16 %v2050
        %v2254 = vunpack.c.l.bf16 %v2051
        %v2255 = vunpack.c.h.bf16 %v2051
        %v2256 = vunpack.c.l.bf16 %v2052
        %v2257 = vunpack.c.h.bf16 %v2052
        %v2258 = vunpack.c.l.bf16 %v2053
        %v2259 = vunpack.c.h.bf16 %v2053
        %v2260 = vunpack.c.l.bf16 %v2054
        %v2261 = vunpack.c.h.bf16 %v2054
        %v2262 = vunpack.c.l.bf16 %v2055
        %v2263 = vunpack.c.h.bf16 %v2055
        %v2264 = vunpack.c.l.bf16 %v2056
        %v2265 = vunpack.c.h.bf16 %v2056
        %v2266 = vunpack.c.l.bf16 %v2057
        %v2267 = vunpack.c.h.bf16 %v2057
        %v2268 = vunpack.c.l.bf16 %v2058
        %v2269 = vunpack.c.h.bf16 %v2058
        %v2270 = vunpack.c.l.bf16 %v2059
        %v2271 = vunpack.c.h.bf16 %v2059
        %v2272 = vunpack.c.l.bf16 %v2060
        %v2273 = vunpack.c.h.bf16 %v2060
        %v2274 = vunpack.c.l.bf16 %v2061
        %v2275 = vunpack.c.h.bf16 %v2061
        %v2276 = vunpack.c.l.bf16 %v2062
        %v2277 = vunpack.c.h.bf16 %v2062
        %v2278 = vunpack.c.l.bf16 %v2063
        %v2279 = vunpack.c.h.bf16 %v2063
        %v2280 = vunpack.c.l.bf16 %v2064
        %v2281 = vunpack.c.h.bf16 %v2064
        %v2282 = vunpack.c.l.bf16 %v2065
        %v2283 = vunpack.c.h.bf16 %v2065
        %v2284 = vunpack.c.l.bf16 %v2066
        %v2285 = vunpack.c.h.bf16 %v2066
        %v2286 = vunpack.c.l.bf16 %v2067
        %v2287 = vunpack.c.h.bf16 %v2067
        %v2288 = vunpack.c.l.bf16 %v2068
        %v2289 = vunpack.c.h.bf16 %v2068
        %v2290 = vunpack.c.l.bf16 %v2069
        %v2291 = vunpack.c.h.bf16 %v2069
        %v2292 = vunpack.c.l.bf16 %v2070
        %v2293 = vunpack.c.h.bf16 %v2070
        %v2294 = vunpack.c.l.bf16 %v2071
        %v2295 = vunpack.c.h.bf16 %v2071
        %v2296 = vunpack.c.l.bf16 %v2072
        %v2297 = vunpack.c.h.bf16 %v2072
        %v2298 = vunpack.c.l.bf16 %v2073
        %v2299 = vunpack.c.h.bf16 %v2073
        %v2300 = vunpack.c.l.bf16 %v2074
        %v2301 = vunpack.c.h.bf16 %v2074
        %v2302 = vunpack.c.l.bf16 %v2075
        %v2303 = vunpack.c.h.bf16 %v2075
        %v2304 = vunpack.c.l.bf16 %v2076
        %v2305 = vunpack.c.h.bf16 %v2076
        %v2306 = vunpack.c.l.bf16 %v2077
        %v2307 = vunpack.c.h.bf16 %v2077
        %v2308 = vunpack.c.l.bf16 %v2078
        %v2309 = vunpack.c.h.bf16 %v2078
        %v2310 = vunpack.c.l.bf16 %v2079
        %v2311 = vunpack.c.h.bf16 %v2079
        %v2312 = vunpack.c.l.bf16 %v2080
        %v2313 = vunpack.c.h.bf16 %v2080
        %v2314 = vunpack.c.l.bf16 %v2081
        %v2315 = vunpack.c.h.bf16 %v2081
        %v2316 = vunpack.c.l.bf16 %v2082
        %v2317 = vunpack.c.h.bf16 %v2082
        %v2318 = vunpack.c.l.bf16 %v2083
        %v2319 = vunpack.c.h.bf16 %v2083
        %v2320 = vunpack.c.l.bf16 %v2084
        %v2321 = vunpack.c.h.bf16 %v2084
        %v2322 = vunpack.c.l.bf16 %v2085
        %v2323 = vunpack.c.h.bf16 %v2085
        %v2324 = vunpack.c.l.bf16 %v2086
        %v2325 = vunpack.c.h.bf16 %v2086
        %v2326 = vunpack.c.l.bf16 %v2087
        %v2327 = vunpack.c.h.bf16 %v2087
        %v2328 = vunpack.c.l.bf16 %v2088
        %v2329 = vunpack.c.h.bf16 %v2088
        %v2330 = vunpack.c.l.bf16 %v2089
        %v2331 = vunpack.c.h.bf16 %v2089
        %v2332 = vunpack.c.l.bf16 %v2090
        %v2333 = vunpack.c.h.bf16 %v2090
        %v2334 = vunpack.c.l.bf16 %v2091
        %v2335 = vunpack.c.h.bf16 %v2091
        %v2336 = vunpack.c.l.bf16 %v2092
        %v2337 = vunpack.c.h.bf16 %v2092
        %v2338 = vunpack.c.l.bf16 %v2093
        %v2339 = vunpack.c.h.bf16 %v2093
        %v2340 = vunpack.c.l.bf16 %v2094
        %v2341 = vunpack.c.h.bf16 %v2094
        %v2342 = vunpack.c.l.bf16 %v2095
        %v2343 = vunpack.c.h.bf16 %v2095
        %v2344 = vunpack.c.l.bf16 %v2096
        %v2345 = vunpack.c.h.bf16 %v2096
        %v2346 = vunpack.c.l.bf16 %v2097
        %v2347 = vunpack.c.h.bf16 %v2097
        %v2348 = vunpack.c.l.bf16 %v2098
        %v2349 = vunpack.c.h.bf16 %v2098
        %v2350 = vunpack.c.l.bf16 %v2099
        %v2351 = vunpack.c.h.bf16 %v2099
        %v2352 = vunpack.c.l.bf16 %v2100
        %v2353 = vunpack.c.h.bf16 %v2100
        %v2354 = vunpack.c.l.bf16 %v2101
        %v2355 = vunpack.c.h.bf16 %v2101
        %v2356 = vunpack.c.l.bf16 %v2102
        %v2357 = vunpack.c.h.bf16 %v2102
        %v2358 = vunpack.c.l.bf16 %v2103
        %v2359 = vunpack.c.h.bf16 %v2103
        %v2360 = vunpack.c.l.bf16 %v2104
        %v2361 = vunpack.c.h.bf16 %v2104
        %v2362 = vunpack.c.l.bf16 %v2105
        %v2363 = vunpack.c.h.bf16 %v2105
        %v2364 = vunpack.c.l.bf16 %v2106
        %v2365 = vunpack.c.h.bf16 %v2106
        %v2366 = vunpack.c.l.bf16 %v2107
        %v2367 = vunpack.c.h.bf16 %v2107
        %v2368 = vunpack.c.l.bf16 %v2108
        %v2369 = vunpack.c.h.bf16 %v2108
        %v2370 = vunpack.c.l.bf16 %v2109
        %v2371 = vunpack.c.h.bf16 %v2109
        %v2372 = vunpack.c.l.bf16 %v2110
        %v2373 = vunpack.c.h.bf16 %v2110
        %v2374 = vunpack.c.l.bf16 %v2111
        %v2375 = vunpack.c.h.bf16 %v2111
        %v2376 = vunpack.c.l.bf16 %v2112
        %v2377 = vunpack.c.h.bf16 %v2112
        %v2378 = vunpack.c.l.bf16 %v2113
        %v2379 = vunpack.c.h.bf16 %v2113
        %v2380 = vunpack.c.l.bf16 %v2114
        %v2381 = vunpack.c.h.bf16 %v2114
        %v2382 = vunpack.c.l.bf16 %v2115
        %v2383 = vunpack.c.h.bf16 %v2115
        %v2384 = vunpack.c.l.bf16 %v2116
        %v2385 = vunpack.c.h.bf16 %v2116
        %v2386 = vunpack.c.l.bf16 %v2117
        %v2387 = vunpack.c.h.bf16 %v2117
        %v2388 = vunpack.c.l.bf16 %v2118
        %v2389 = vunpack.c.h.bf16 %v2118
        %v2390 = vunpack.c.l.bf16 %v2119
        %v2391 = vunpack.c.h.bf16 %v2119
        %v2392 = vunpack.c.l.bf16 %v2120
        %v2393 = vunpack.c.h.bf16 %v2120
        %v2394 = vunpack.c.l.bf16 %v2121
        %v2395 = vunpack.c.h.bf16 %v2121
        %v2396 = vunpack.c.l.bf16 %v2122
        %v2397 = vunpack.c.h.bf16 %v2122
        %v2398 = vunpack.c.l.bf16 %v2123
        %v2399 = vunpack.c.h.bf16 %v2123
        %v2400 = vunpack.c.l.bf16 %v2124
        %v2401 = vunpack.c.h.bf16 %v2124
        %v2402 = vunpack.c.l.bf16 %v2125
        %v2403 = vunpack.c.h.bf16 %v2125
        %v2404 = vunpack.c.l.bf16 %v2126
        %v2405 = vunpack.c.h.bf16 %v2126
        %v2406 = vunpack.c.l.bf16 %v2127
        %v2407 = vunpack.c.h.bf16 %v2127
        %v2408 = vunpack.c.l.bf16 %v2128
        %v2409 = vunpack.c.h.bf16 %v2128
        %v2410 = vunpack.c.l.bf16 %v2129
        %v2411 = vunpack.c.h.bf16 %v2129
        %v2412 = vunpack.c.l.bf16 %v2130
        %v2413 = vunpack.c.h.bf16 %v2130
        %v2414 = vunpack.c.l.bf16 %v2131
        %v2415 = vunpack.c.h.bf16 %v2131
        %v2416 = vunpack.c.l.bf16 %v2132
        %v2417 = vunpack.c.h.bf16 %v2132
        %v2418 = vunpack.c.l.bf16 %v2133
        %v2419 = vunpack.c.h.bf16 %v2133
        %v2420 = vunpack.c.l.bf16 %v2134
        %v2421 = vunpack.c.h.bf16 %v2134
        %v2422 = vunpack.c.l.bf16 %v2135
        %v2423 = vunpack.c.h.bf16 %v2135
        %2424 = vmatprep.subr.mxu0 %v2137
        %2425 = vmatpush1.msra.mxu0 %v2136
        %2426 = vmatprep.subr.mxu0 %v2143
        %2427 = vmatpush1.msra.mxu0 %v2142
        %2428 = vmatprep.subr.mxu0 %v2149
        %2429 = vmatpush1.msra.mxu0 %v2148
        %2430 = vmatprep.subr.mxu0 %v2155
        %2431 = vmatpush1.msra.mxu0 %v2154
        %2432 = vmatprep.subr.mxu0 %v2161
        %2433 = vmatpush1.msra.mxu0 %v2160
        %2434 = vmatprep.subr.mxu0 %v2167
        %2435 = vmatpush1.msra.mxu0 %v2166
        %2436 = vmatprep.subr.mxu0 %v2173
        %2437 = vmatpush1.msra.mxu0 %v2172
        %2438 = vmatprep.subr.mxu0 %v2179
        %2439 = vmatpush1.msra.mxu0 %v2178
        %2440 = vmatprep.subr.mxu0 %v2185
        %2441 = vmatpush1.msra.mxu0 %v2184
        %2442 = vmatprep.subr.mxu0 %v2191
        %2443 = vmatpush1.msra.mxu0 %v2190
        %2444 = vmatprep.subr.mxu0 %v2197
        %2445 = vmatpush1.msra.mxu0 %v2196
        %2446 = vmatprep.subr.mxu0 %v2203
        %2447 = vmatpush1.msra.mxu0 %v2202
        %2448 = vmatprep.subr.mxu0 %v2209
        %2449 = vmatpush1.msra.mxu0 %v2208
        %2450 = vmatprep.subr.mxu0 %v2215
        %2451 = vmatpush1.msra.mxu0 %v2214
        %2452 = vmatprep.subr.mxu0 %v2221
        %2453 = vmatpush1.msra.mxu0 %v2220
        %2454 = vmatprep.subr.mxu0 %v2227
        %2455 = vmatpush1.msra.mxu0 %v2226
        %2456 = vmatprep.subr.mxu0 %v2233
        %2457 = vmatpush1.msra.mxu0 %v2232
        %2458 = vmatprep.subr.mxu0 %v2239
        %2459 = vmatpush1.msra.mxu0 %v2238
        %2460 = vmatprep.subr.mxu0 %v2245
        %2461 = vmatpush1.msra.mxu0 %v2244
        %2462 = vmatprep.subr.mxu0 %v2251
        %2463 = vmatpush1.msra.mxu0 %v2250
        %2464 = vmatprep.subr.mxu0 %v2257
        %2465 = vmatpush1.msra.mxu0 %v2256
        %2466 = vmatprep.subr.mxu0 %v2263
        %2467 = vmatpush1.msra.mxu0 %v2262
        %2468 = vmatprep.subr.mxu0 %v2269
        %2469 = vmatpush1.msra.mxu0 %v2268
        %2470 = vmatprep.subr.mxu0 %v2275
        %2471 = vmatpush1.msra.mxu0 %v2274
        %2472 = vmatprep.subr.mxu0 %v2281
        %2473 = vmatpush1.msra.mxu0 %v2280
        %2474 = vmatprep.subr.mxu0 %v2287
        %2475 = vmatpush1.msra.mxu0 %v2286
        %2476 = vmatprep.subr.mxu0 %v2293
        %2477 = vmatpush1.msra.mxu0 %v2292
        %2478 = vmatprep.subr.mxu0 %v2299
        %2479 = vmatpush1.msra.mxu0 %v2298
        %2480 = vmatprep.subr.mxu0 %v2305
        %2481 = vmatpush1.msra.mxu0 %v2304
        %2482 = vmatprep.subr.mxu0 %v2311
        %2483 = vmatpush1.msra.mxu0 %v2310
        %2484 = vmatprep.subr.mxu0 %v2317
        %2485 = vmatpush1.msra.mxu0 %v2316
        %2486 = vmatprep.subr.mxu0 %v2323
        %2487 = vmatpush1.msra.mxu0 %v2322
        %2488 = vmatprep.mubr.f32.mxu0 %v1990
        %2489 = vmatmul.mubr.f32.gmra.mrb[0].mxu0 %v1989
        %v2490 = vpop.f32.mrb[0].mxu0
        %v2491 = vadd.f32 0.0, %v2490
        %v2492 = vpop.f32.mrb[0].mxu0
        %v2493 = vadd.f32 0.0, %v2492
        %2494 = vdwg.mxu0
        %2495 = vmatprep.subr.mxu0 %v2329
        %2496 = vmatpush1.msra.mxu0 %v2328
        %2497 = vmatprep.subr.mxu0 %v2335
        %2498 = vmatpush1.msra.mxu0 %v2334
        %2499 = vmatprep.subr.mxu0 %v2341
        %2500 = vmatpush1.msra.mxu0 %v2340
        %2501 = vmatprep.subr.mxu0 %v2347
        %2502 = vmatpush1.msra.mxu0 %v2346
        %2503 = vmatprep.subr.mxu0 %v2353
        %2504 = vmatpush1.msra.mxu0 %v2352
        %2505 = vmatprep.subr.mxu0 %v2359
        %2506 = vmatpush1.msra.mxu0 %v2358
        %2507 = vmatprep.subr.mxu0 %v2365
        %2508 = vmatpush1.msra.mxu0 %v2364
        %2509 = vmatprep.subr.mxu0 %v2371
        %2510 = vmatpush1.msra.mxu0 %v2370
        %2511 = vmatprep.subr.mxu0 %v2377
        %2512 = vmatpush1.msra.mxu0 %v2376
        %2513 = vmatprep.subr.mxu0 %v2383
        %2514 = vmatpush1.msra.mxu0 %v2382
        %2515 = vmatprep.subr.mxu0 %v2389
        %2516 = vmatpush1.msra.mxu0 %v2388
        %2517 = vmatprep.subr.mxu0 %v2395
        %2518 = vmatpush1.msra.mxu0 %v2394
        %2519 = vmatprep.subr.mxu0 %v2401
        %2520 = vmatpush1.msra.mxu0 %v2400
        %2521 = vmatprep.subr.mxu0 %v2407
        %2522 = vmatpush1.msra.mxu0 %v2406
        %2523 = vmatprep.subr.mxu0 %v2413
        %2524 = vmatpush1.msra.mxu0 %v2412
        %2525 = vmatprep.subr.mxu0 %v2419
        %2526 = vmatpush1.msra.mxu0 %v2418
        %2527 = vmatprep.subr.mxu0 0.0
        %2528 = vmatpush1.msra.mxu0 0.0
        %2529 = vmatprep.subr.mxu0 0.0
        %2530 = vmatpush1.msra.mxu0 0.0
        %2531 = vmatprep.subr.mxu0 0.0
        %2532 = vmatpush1.msra.mxu0 0.0
        %2533 = vmatprep.subr.mxu0 0.0
        %2534 = vmatpush1.msra.mxu0 0.0
        %2535 = vmatprep.subr.mxu0 0.0
        %2536 = vmatpush1.msra.mxu0 0.0
        %2537 = vmatprep.subr.mxu0 0.0
        %2538 = vmatpush1.msra.mxu0 0.0
        %2539 = vmatprep.subr.mxu0 0.0
        %2540 = vmatpush1.msra.mxu0 0.0
        %2541 = vmatprep.subr.mxu0 0.0
        %2542 = vmatpush1.msra.mxu0 0.0
        %2543 = vmatprep.subr.mxu0 0.0
        %2544 = vmatpush1.msra.mxu0 0.0
        %2545 = vmatprep.subr.mxu0 0.0
        %2546 = vmatpush1.msra.mxu0 0.0
        %2547 = vmatprep.subr.mxu0 0.0
        %2548 = vmatpush1.msra.mxu0 0.0
        %2549 = vmatprep.subr.mxu0 0.0
        %2550 = vmatpush1.msra.mxu0 0.0
        %2551 = vmatprep.subr.mxu0 0.0
        %2552 = vmatpush1.msra.mxu0 0.0
        %2553 = vmatprep.subr.mxu0 0.0
        %2554 = vmatpush1.msra.mxu0 0.0
        %2555 = vmatprep.subr.mxu0 0.0
        %2556 = vmatpush1.msra.mxu0 0.0
        %2557 = vmatprep.subr.mxu0 0.0
        %2558 = vmatpush1.msra.mxu0 0.0
        %2559 = vmatprep.mubr.f32.mxu0 0.0
        %2560 = vmatmul.mubr.f32.gmra.mrb[0].mxu0 %v1991
        %v2561 = vpop.f32.mrb[0].mxu0
        %v2562 = vadd.f32 %v2491, %v2561
        %v2563 = vpop.f32.mrb[0].mxu0
        %v2564 = vadd.f32 %v2493, %v2563
        %2565 = vdwg.mxu0
        %2566 = vmatprep.subr.mxu0 %v2139
        %2567 = vmatpush1.msra.mxu0 %v2138
        %2568 = vmatprep.subr.mxu0 %v2145
        %2569 = vmatpush1.msra.mxu0 %v2144
        %2570 = vmatprep.subr.mxu0 %v2151
        %2571 = vmatpush1.msra.mxu0 %v2150
        %2572 = vmatprep.subr.mxu0 %v2157
        %2573 = vmatpush1.msra.mxu0 %v2156
        %2574 = vmatprep.subr.mxu0 %v2163
        %2575 = vmatpush1.msra.mxu0 %v2162
        %2576 = vmatprep.subr.mxu0 %v2169
        %2577 = vmatpush1.msra.mxu0 %v2168
        %2578 = vmatprep.subr.mxu0 %v2175
        %2579 = vmatpush1.msra.mxu0 %v2174
        %2580 = vmatprep.subr.mxu0 %v2181
        %2581 = vmatpush1.msra.mxu0 %v2180
        %2582 = vmatprep.subr.mxu0 %v2187
        %2583 = vmatpush1.msra.mxu0 %v2186
        %2584 = vmatprep.subr.mxu0 %v2193
        %2585 = vmatpush1.msra.mxu0 %v2192
        %2586 = vmatprep.subr.mxu0 %v2199
        %2587 = vmatpush1.msra.mxu0 %v2198
        %2588 = vmatprep.subr.mxu0 %v2205
        %2589 = vmatpush1.msra.mxu0 %v2204
        %2590 = vmatprep.subr.mxu0 %v2211
        %2591 = vmatpush1.msra.mxu0 %v2210
        %2592 = vmatprep.subr.mxu0 %v2217
        %2593 = vmatpush1.msra.mxu0 %v2216
        %2594 = vmatprep.subr.mxu0 %v2223
        %2595 = vmatpush1.msra.mxu0 %v2222
        %2596 = vmatprep.subr.mxu0 %v2229
        %2597 = vmatpush1.msra.mxu0 %v2228
        %2598 = vmatprep.subr.mxu0 %v2235
        %2599 = vmatpush1.msra.mxu0 %v2234
        %2600 = vmatprep.subr.mxu0 %v2241
        %2601 = vmatpush1.msra.mxu0 %v2240
        %2602 = vmatprep.subr.mxu0 %v2247
        %2603 = vmatpush1.msra.mxu0 %v2246
        %2604 = vmatprep.subr.mxu0 %v2253
        %2605 = vmatpush1.msra.mxu0 %v2252
        %2606 = vmatprep.subr.mxu0 %v2259
        %2607 = vmatpush1.msra.mxu0 %v2258
        %2608 = vmatprep.subr.mxu0 %v2265
        %2609 = vmatpush1.msra.mxu0 %v2264
        %2610 = vmatprep.subr.mxu0 %v2271
        %2611 = vmatpush1.msra.mxu0 %v2270
        %2612 = vmatprep.subr.mxu0 %v2277
        %2613 = vmatpush1.msra.mxu0 %v2276
        %2614 = vmatprep.subr.mxu0 %v2283
        %2615 = vmatpush1.msra.mxu0 %v2282
        %2616 = vmatprep.subr.mxu0 %v2289
        %2617 = vmatpush1.msra.mxu0 %v2288
        %2618 = vmatprep.subr.mxu0 %v2295
        %2619 = vmatpush1.msra.mxu0 %v2294
        %2620 = vmatprep.subr.mxu0 %v2301
        %2621 = vmatpush1.msra.mxu0 %v2300
        %2622 = vmatprep.subr.mxu0 %v2307
        %2623 = vmatpush1.msra.mxu0 %v2306
        %2624 = vmatprep.subr.mxu0 %v2313
        %2625 = vmatpush1.msra.mxu0 %v2312
        %2626 = vmatprep.subr.mxu0 %v2319
        %2627 = vmatpush1.msra.mxu0 %v2318
        %2628 = vmatprep.subr.mxu0 %v2325
        %2629 = vmatpush1.msra.mxu0 %v2324
        %2630 = vmatprep.mubr.f32.mxu0 %v1990
        %2631 = vmatmul.mubr.f32.gmra.mrb[0].mxu0 %v1989
        %v2632 = vpop.f32.mrb[0].mxu0
        %v2633 = vadd.f32 0.0, %v2632
        %v2634 = vpop.f32.mrb[0].mxu0
        %v2635 = vadd.f32 0.0, %v2634
        %2636 = vdwg.mxu0
        %2637 = vmatprep.subr.mxu0 %v2331
        %2638 = vmatpush1.msra.mxu0 %v2330
        %2639 = vmatprep.subr.mxu0 %v2337
        %2640 = vmatpush1.msra.mxu0 %v2336
        %2641 = vmatprep.subr.mxu0 %v2343
        %2642 = vmatpush1.msra.mxu0 %v2342
        %2643 = vmatprep.subr.mxu0 %v2349
        %2644 = vmatpush1.msra.mxu0 %v2348
        %2645 = vmatprep.subr.mxu0 %v2355
        %2646 = vmatpush1.msra.mxu0 %v2354
        %2647 = vmatprep.subr.mxu0 %v2361
        %2648 = vmatpush1.msra.mxu0 %v2360
        %2649 = vmatprep.subr.mxu0 %v2367
        %2650 = vmatpush1.msra.mxu0 %v2366
        %2651 = vmatprep.subr.mxu0 %v2373
        %2652 = vmatpush1.msra.mxu0 %v2372
        %2653 = vmatprep.subr.mxu0 %v2379
        %2654 = vmatpush1.msra.mxu0 %v2378
        %2655 = vmatprep.subr.mxu0 %v2385
        %2656 = vmatpush1.msra.mxu0 %v2384
        %2657 = vmatprep.subr.mxu0 %v2391
        %2658 = vmatpush1.msra.mxu0 %v2390
        %2659 = vmatprep.subr.mxu0 %v2397
        %2660 = vmatpush1.msra.mxu0 %v2396
        %2661 = vmatprep.subr.mxu0 %v2403
        %2662 = vmatpush1.msra.mxu0 %v2402
        %2663 = vmatprep.subr.mxu0 %v2409
        %2664 = vmatpush1.msra.mxu0 %v2408
        %2665 = vmatprep.subr.mxu0 %v2415
        %2666 = vmatpush1.msra.mxu0 %v2414
        %2667 = vmatprep.subr.mxu0 %v2421
        %2668 = vmatpush1.msra.mxu0 %v2420
        %2669 = vmatprep.subr.mxu0 0.0
        %2670 = vmatpush1.msra.mxu0 0.0
        %2671 = vmatprep.subr.mxu0 0.0
        %2672 = vmatpush1.msra.mxu0 0.0
        %2673 = vmatprep.subr.mxu0 0.0
        %2674 = vmatpush1.msra.mxu0 0.0
        %2675 = vmatprep.subr.mxu0 0.0
        %2676 = vmatpush1.msra.mxu0 0.0
        %2677 = vmatprep.subr.mxu0 0.0
        %2678 = vmatpush1.msra.mxu0 0.0
        %2679 = vmatprep.subr.mxu0 0.0
        %2680 = vmatpush1.msra.mxu0 0.0
        %2681 = vmatprep.subr.mxu0 0.0
        %2682 = vmatpush1.msra.mxu0 0.0
        %2683 = vmatprep.subr.mxu0 0.0
        %2684 = vmatpush1.msra.mxu0 0.0
        %2685 = vmatprep.subr.mxu0 0.0
        %2686 = vmatpush1.msra.mxu0 0.0
        %2687 = vmatprep.subr.mxu0 0.0
        %2688 = vmatpush1.msra.mxu0 0.0
        %2689 = vmatprep.subr.mxu0 0.0
        %2690 = vmatpush1.msra.mxu0 0.0
        %2691 = vmatprep.subr.mxu0 0.0
        %2692 = vmatpush1.msra.mxu0 0.0
        %2693 = vmatprep.subr.mxu0 0.0
        %2694 = vmatpush1.msra.mxu0 0.0
        %2695 = vmatprep.subr.mxu0 0.0
        %2696 = vmatpush1.msra.mxu0 0.0
        %2697 = vmatprep.subr.mxu0 0.0
        %2698 = vmatpush1.msra.mxu0 0.0
        %2699 = vmatprep.subr.mxu0 0.0
        %2700 = vmatpush1.msra.mxu0 0.0
        %2701 = vmatprep.mubr.f32.mxu0 0.0
        %2702 = vmatmul.mubr.f32.gmra.mrb[0].mxu0 %v1991
        %v2703 = vpop.f32.mrb[0].mxu0
        %v2704 = vadd.f32 %v2633, %v2703
        %v2705 = vpop.f32.mrb[0].mxu0
        %v2706 = vadd.f32 %v2635, %v2705
        %2707 = vdwg.mxu0
        %2708 = vmatprep.subr.mxu0 %v2141
        %2709 = vmatpush1.msra.mxu0 %v2140
        %2710 = vmatprep.subr.mxu0 %v2147
        %2711 = vmatpush1.msra.mxu0 %v2146
        %2712 = vmatprep.subr.mxu0 %v2153
        %2713 = vmatpush1.msra.mxu0 %v2152
        %2714 = vmatprep.subr.mxu0 %v2159
        %2715 = vmatpush1.msra.mxu0 %v2158
        %2716 = vmatprep.subr.mxu0 %v2165
        %2717 = vmatpush1.msra.mxu0 %v2164
        %2718 = vmatprep.subr.mxu0 %v2171
        %2719 = vmatpush1.msra.mxu0 %v2170
        %2720 = vmatprep.subr.mxu0 %v2177
        %2721 = vmatpush1.msra.mxu0 %v2176
        %2722 = vmatprep.subr.mxu0 %v2183
        %2723 = vmatpush1.msra.mxu0 %v2182
        %2724 = vmatprep.subr.mxu0 %v2189
        %2725 = vmatpush1.msra.mxu0 %v2188
        %2726 = vmatprep.subr.mxu0 %v2195
        %2727 = vmatpush1.msra.mxu0 %v2194
        %2728 = vmatprep.subr.mxu0 %v2201
        %2729 = vmatpush1.msra.mxu0 %v2200
        %2730 = vmatprep.subr.mxu0 %v2207
        %2731 = vmatpush1.msra.mxu0 %v2206
        %2732 = vmatprep.subr.mxu0 %v2213
        %2733 = vmatpush1.msra.mxu0 %v2212
        %2734 = vmatprep.subr.mxu0 %v2219
        %2735 = vmatpush1.msra.mxu0 %v2218
        %2736 = vmatprep.subr.mxu0 %v2225
        %2737 = vmatpush1.msra.mxu0 %v2224
        %2738 = vmatprep.subr.mxu0 %v2231
        %2739 = vmatpush1.msra.mxu0 %v2230
        %2740 = vmatprep.subr.mxu0 %v2237
        %2741 = vmatpush1.msra.mxu0 %v2236
        %2742 = vmatprep.subr.mxu0 %v2243
        %2743 = vmatpush1.msra.mxu0 %v2242
        %2744 = vmatprep.subr.mxu0 %v2249
        %2745 = vmatpush1.msra.mxu0 %v2248
        %2746 = vmatprep.subr.mxu0 %v2255
        %2747 = vmatpush1.msra.mxu0 %v2254
        %2748 = vmatprep.subr.mxu0 %v2261
        %2749 = vmatpush1.msra.mxu0 %v2260
        %2750 = vmatprep.subr.mxu0 %v2267
        %2751 = vmatpush1.msra.mxu0 %v2266
        %2752 = vmatprep.subr.mxu0 %v2273
        %2753 = vmatpush1.msra.mxu0 %v2272
        %2754 = vmatprep.subr.mxu0 %v2279
        %2755 = vmatpush1.msra.mxu0 %v2278
        %2756 = vmatprep.subr.mxu0 %v2285
        %2757 = vmatpush1.msra.mxu0 %v2284
        %2758 = vmatprep.subr.mxu0 %v2291
        %2759 = vmatpush1.msra.mxu0 %v2290
        %2760 = vmatprep.subr.mxu0 %v2297
        %2761 = vmatpush1.msra.mxu0 %v2296
        %2762 = vmatprep.subr.mxu0 %v2303
        %2763 = vmatpush1.msra.mxu0 %v2302
        %2764 = vmatprep.subr.mxu0 %v2309
        %2765 = vmatpush1.msra.mxu0 %v2308
        %2766 = vmatprep.subr.mxu0 %v2315
        %2767 = vmatpush1.msra.mxu0 %v2314
        %2768 = vmatprep.subr.mxu0 %v2321
        %2769 = vmatpush1.msra.mxu0 %v2320
        %2770 = vmatprep.subr.mxu0 %v2327
        %2771 = vmatpush1.msra.mxu0 %v2326
        %2772 = vmatprep.mubr.f32.mxu0 %v1990
        %2773 = vmatmul.mubr.f32.gmra.mrb[0].mxu0 %v1989
        %v2774 = vpop.f32.mrb[0].mxu0
        %v2775 = vadd.f32 0.0, %v2774
        %v2776 = vpop.f32.mrb[0].mxu0
        %v2777 = vadd.f32 0.0, %v2776
        %2778 = vdwg.mxu0
        %2779 = vmatprep.subr.mxu0 %v2333
        %2780 = vmatpush1.msra.mxu0 %v2332
        %2781 = vmatprep.subr.mxu0 %v2339
        %2782 = vmatpush1.msra.mxu0 %v2338
        %2783 = vmatprep.subr.mxu0 %v2345
        %2784 = vmatpush1.msra.mxu0 %v2344
        %2785 = vmatprep.subr.mxu0 %v2351
        %2786 = vmatpush1.msra.mxu0 %v2350
        %2787 = vmatprep.subr.mxu0 %v2357
        %2788 = vmatpush1.msra.mxu0 %v2356
        %2789 = vmatprep.subr.mxu0 %v2363
        %2790 = vmatpush1.msra.mxu0 %v2362
        %2791 = vmatprep.subr.mxu0 %v2369
        %2792 = vmatpush1.msra.mxu0 %v2368
        %2793 = vmatprep.subr.mxu0 %v2375
        %2794 = vmatpush1.msra.mxu0 %v2374
        %2795 = vmatprep.subr.mxu0 %v2381
        %2796 = vmatpush1.msra.mxu0 %v2380
        %2797 = vmatprep.subr.mxu0 %v2387
        %2798 = vmatpush1.msra.mxu0 %v2386
        %2799 = vmatprep.subr.mxu0 %v2393
        %2800 = vmatpush1.msra.mxu0 %v2392
        %2801 = vmatprep.subr.mxu0 %v2399
        %2802 = vmatpush1.msra.mxu0 %v2398
        %2803 = vmatprep.subr.mxu0 %v2405
        %2804 = vmatpush1.msra.mxu0 %v2404
        %2805 = vmatprep.subr.mxu0 %v2411
        %2806 = vmatpush1.msra.mxu0 %v2410
        %2807 = vmatprep.subr.mxu0 %v2417
        %2808 = vmatpush1.msra.mxu0 %v2416
        %2809 = vmatprep.subr.mxu0 %v2423
        %2810 = vmatpush1.msra.mxu0 %v2422
        %2811 = vmatprep.subr.mxu0 0.0
        %2812 = vmatpush1.msra.mxu0 0.0
        %2813 = vmatprep.subr.mxu0 0.0
        %2814 = vmatpush1.msra.mxu0 0.0
        %2815 = vmatprep.subr.mxu0 0.0
        %2816 = vmatpush1.msra.mxu0 0.0
        %2817 = vmatprep.subr.mxu0 0.0
        %2818 = vmatpush1.msra.mxu0 0.0
        %2819 = vmatprep.subr.mxu0 0.0
        %2820 = vmatpush1.msra.mxu0 0.0
        %2821 = vmatprep.subr.mxu0 0.0
        %2822 = vmatpush1.msra.mxu0 0.0
        %2823 = vmatprep.subr.mxu0 0.0
        %2824 = vmatpush1.msra.mxu0 0.0
        %2825 = vmatprep.subr.mxu0 0.0
        %2826 = vmatpush1.msra.mxu0 0.0
        %2827 = vmatprep.subr.mxu0 0.0
        %2828 = vmatpush1.msra.mxu0 0.0
        %2829 = vmatprep.subr.mxu0 0.0
        %2830 = vmatpush1.msra.mxu0 0.0
        %2831 = vmatprep.subr.mxu0 0.0
        %2832 = vmatpush1.msra.mxu0 0.0
        %2833 = vmatprep.subr.mxu0 0.0
        %2834 = vmatpush1.msra.mxu0 0.0
        %2835 = vmatprep.subr.mxu0 0.0
        %2836 = vmatpush1.msra.mxu0 0.0
        %2837 = vmatprep.subr.mxu0 0.0
        %2838 = vmatpush1.msra.mxu0 0.0
        %2839 = vmatprep.subr.mxu0 0.0
        %2840 = vmatpush1.msra.mxu0 0.0
        %2841 = vmatprep.subr.mxu0 0.0
        %2842 = vmatpush1.msra.mxu0 0.0
        %2843 = vmatprep.mubr.f32.mxu0 0.0
        %2844 = vmatmul.mubr.f32.gmra.mrb[0].mxu0 %v1991
        %v2845 = vpop.f32.mrb[0].mxu0
        %v2846 = vadd.f32 %v2775, %v2845
        %v2847 = vpop.f32.mrb[0].mxu0
        %v2848 = vadd.f32 %v2777, %v2847
        %2849 = vdwg.mxu0
        %v2850 = vld [vmem:[#allocation11] sm:$0xff]
        %v2851 = vld [vmem:[#allocation11 + $0x8] sm:$0xf]
        %v2854 = vlaneseq
        %v2855 = vshrl.u32 %v2854, 7
        %v2856 = vsub.s32 1, %v2855
        %v2857 = vrot.slane %v2850, %v2856
        %v2858 = vlaneseq
        %v2859 = vshrl.u32 %v2858, 7
        %v2860 = vsub.s32 5, %v2859
        %v2861 = vrot.slane %v2850, %v2860
        %v2862 = vlaneseq
        %v2863 = vshrl.u32 %v2862, 7
        %v2864 = vsub.s32 1, %v2863
        %v2865 = vrot.slane %v2851, %v2864
        %v2869 = vlaneseq
        %v2870 = vshrl.u32 %v2869, 7
        %v2871 = vsub.s32 1, %v2870
        %v2872 = vrot.slane %v2857, %v2871
        %v2873 = vlaneseq
        %v2874 = vshrl.u32 %v2873, 7
        %v2875 = vsub.s32 1, %v2874
        %v2876 = vrot.slane %v2861, %v2875
        %v2877 = vlaneseq
        %v2878 = vshrl.u32 %v2877, 7
        %v2879 = vsub.s32 1, %v2878
        %v2880 = vrot.slane %v2865, %v2879
        %v2881 = vmul.f32 %v2872, %v2562
        %v2882 = vmul.f32 %v2876, %v2564
        %v2883 = vmul.f32 %v2880, %v2704
        %v2884 = vlaneseq
        %v2885 = vshrl.u32 %v2884, 7
        %v2886 = vsub.s32 0, %v2885
        %v2887 = vrot.slane %v2850, %v2886
        %v2888 = vlaneseq
        %v2889 = vshrl.u32 %v2888, 7
        %v2890 = vsub.s32 4, %v2889
        %v2891 = vrot.slane %v2850, %v2890
        %v2892 = vlaneseq
        %v2893 = vshrl.u32 %v2892, 7
        %v2894 = vsub.s32 0, %v2893
        %v2895 = vrot.slane %v2851, %v2894
        %v2899 = vlaneseq
        %v2900 = vshrl.u32 %v2899, 7
        %v2901 = vsub.s32 0, %v2900
        %v2902 = vrot.slane %v2887, %v2901
        %v2903 = vlaneseq
        %v2904 = vshrl.u32 %v2903, 7
        %v2905 = vsub.s32 0, %v2904
        %v2906 = vrot.slane %v2891, %v2905
        %v2907 = vlaneseq
        %v2908 = vshrl.u32 %v2907, 7
        %v2909 = vsub.s32 0, %v2908
        %v2910 = vrot.slane %v2895, %v2909
        %v2911 = vadd.f32 %v2902, %v2881
        %v2912 = vadd.f32 %v2906, %v2882
        %v2913 = vadd.f32 %v2910, %v2883
        %v2914 = vlaneseq
        %v2915 = vshrl.u32 %v2914, 7
        %v2916 = vsub.s32 2, %v2915
        %v2917 = vrot.slane %v2850, %v2916
        %v2918 = vlaneseq
        %v2919 = vshrl.u32 %v2918, 7
        %v2920 = vsub.s32 6, %v2919
        %v2921 = vrot.slane %v2850, %v2920
        %v2922 = vlaneseq
        %v2923 = vshrl.u32 %v2922, 7
        %v2924 = vsub.s32 2, %v2923
        %v2925 = vrot.slane %v2851, %v2924
        %v2929 = vlaneseq
        %v2930 = vshrl.u32 %v2929, 7
        %v2931 = vsub.s32 2, %v2930
        %v2932 = vrot.slane %v2917, %v2931
        %v2933 = vlaneseq
        %v2934 = vshrl.u32 %v2933, 7
        %v2935 = vsub.s32 2, %v2934
        %v2936 = vrot.slane %v2921, %v2935
        %v2937 = vlaneseq
        %v2938 = vshrl.u32 %v2937, 7
        %v2939 = vsub.s32 2, %v2938
        %v2940 = vrot.slane %v2925, %v2939
        %v2941 = vmul.f32 %v2932, %v2706
        %v2942 = vmul.f32 %v2936, %v2846
        %v2943 = vmul.f32 %v2940, %v2848
        %v2944 = vadd.f32 %v2911, %v2941
        %v2945 = vadd.f32 %v2912, %v2942
        %v2946 = vadd.f32 %v2913, %v2943
        %v2947 = vmul.f32 %v2562, %v2706
        %v2948 = vmul.f32 %v2564, %v2846
        %v2949 = vmul.f32 %v2704, %v2848
        %v2950 = vlaneseq
        %v2951 = vshrl.u32 %v2950, 7
        %v2952 = vsub.s32 3, %v2951
        %v2953 = vrot.slane %v2850, %v2952
        %v2954 = vlaneseq
        %v2955 = vshrl.u32 %v2954, 7
        %v2956 = vsub.s32 7, %v2955
        %v2957 = vrot.slane %v2850, %v2956
        %v2958 = vlaneseq
        %v2959 = vshrl.u32 %v2958, 7
        %v2960 = vsub.s32 3, %v2959
        %v2961 = vrot.slane %v2851, %v2960
        %v2965 = vlaneseq
        %v2966 = vshrl.u32 %v2965, 7
        %v2967 = vsub.s32 3, %v2966
        %v2968 = vrot.slane %v2953, %v2967
        %v2969 = vlaneseq
        %v2970 = vshrl.u32 %v2969, 7
        %v2971 = vsub.s32 3, %v2970
        %v2972 = vrot.slane %v2957, %v2971
        %v2973 = vlaneseq
        %v2974 = vshrl.u32 %v2973, 7
        %v2975 = vsub.s32 3, %v2974
        %v2976 = vrot.slane %v2961, %v2975
        %v2977 = vmul.f32 %v2968, %v2947
        %v2978 = vmul.f32 %v2972, %v2948
        %v2979 = vmul.f32 %v2976, %v2949
        %v2980 = vadd.f32 %v2944, %v2977
        %v2981 = vadd.f32 %v2945, %v2978
        %v2982 = vadd.f32 %v2946, %v2979
        %v2983 = vld [vmem:[#allocation13] sm:$0xff]
        %v2984 = vld [vmem:[#allocation13 + $0x8] sm:$0xff]
        %v2985 = vld [vmem:[#allocation13 + $0x10] sm:$0xff]
        %v2986 = vld [vmem:[#allocation13 + $0x18] sm:$0xff]
        %v2987 = vld [vmem:[#allocation13 + $0x20] sm:$0xff]
        %v2988 = vld [vmem:[#allocation13 + $0x28] sm:$0xff]
        %v2989 = vld [vmem:[#allocation13 + $0x30] sm:$0xff]
        %v2990 = vld [vmem:[#allocation13 + $0x38] sm:$0xff]
        %v2991 = vld [vmem:[#allocation13 + $0x40] sm:$0xff]
        %v2992 = vld [vmem:[#allocation13 + $0x48] sm:$0xff]
        %v2993 = vld [vmem:[#allocation13 + $0x50] sm:$0xff]
        %v2994 = vld [vmem:[#allocation13 + $0x58] sm:$0xff]
        %v2995 = vld [vmem:[#allocation13 + $0x60] sm:$0xff]
        %v2996 = vld [vmem:[#allocation13 + $0x68] sm:$0xff]
        %v2997 = vld [vmem:[#allocation13 + $0x70] sm:$0xff]
        %v2998 = vld [vmem:[#allocation13 + $0x78] sm:$0xff]
        %v2999 = vld [vmem:[#allocation13 + $0x80] sm:$0xff]
        %v3000 = vld [vmem:[#allocation13 + $0x88] sm:$0xff]
        %v3001 = vld [vmem:[#allocation13 + $0x90] sm:$0xff]
        %v3002 = vld [vmem:[#allocation13 + $0x98] sm:$0xff]
        %v3003 = vld [vmem:[#allocation13 + $0xa0] sm:$0xff]
        %v3004 = vld [vmem:[#allocation13 + $0xa8] sm:$0xff]
        %v3005 = vld [vmem:[#allocation13 + $0xb0] sm:$0xff]
        %v3006 = vld [vmem:[#allocation13 + $0xb8] sm:$0xff]
        %v3007 = vld [vmem:[#allocation13 + $0xc0] sm:$0xff]
        %v3008 = vld [vmem:[#allocation13 + $0xc8] sm:$0xff]
        %v3009 = vld [vmem:[#allocation13 + $0xd0] sm:$0xff]
        %v3010 = vld [vmem:[#allocation13 + $0xd8] sm:$0xff]
        %v3011 = vld [vmem:[#allocation13 + $0xe0] sm:$0xff]
        %v3012 = vld [vmem:[#allocation13 + $0xe8] sm:$0xff]
        %v3013 = vld [vmem:[#allocation13 + $0xf0] sm:$0xff]
        %v3014 = vld [vmem:[#allocation13 + $0xf8] sm:$0xff]
        %v3015 = vld [vmem:[#allocation13 + $0x100] sm:$0xff]
        %v3016 = vld [vmem:[#allocation13 + $0x108] sm:$0xff]
        %v3017 = vld [vmem:[#allocation13 + $0x110] sm:$0xff]
        %v3018 = vld [vmem:[#allocation13 + $0x118] sm:$0xff]
        %v3019 = vld [vmem:[#allocation13 + $0x120] sm:$0xff]
        %v3020 = vld [vmem:[#allocation13 + $0x128] sm:$0xff]
        %v3021 = vld [vmem:[#allocation13 + $0x130] sm:$0xff]
        %v3022 = vld [vmem:[#allocation13 + $0x138] sm:$0xff]
        %v3023 = vld [vmem:[#allocation13 + $0x140] sm:$0xff]
        %v3024 = vld [vmem:[#allocation13 + $0x148] sm:$0xff]
        %v3025 = vld [vmem:[#allocation13 + $0x150] sm:$0xff]
        %v3026 = vld [vmem:[#allocation13 + $0x158] sm:$0xff]
        %v3027 = vld [vmem:[#allocation13 + $0x160] sm:$0xff]
        %v3028 = vld [vmem:[#allocation13 + $0x168] sm:$0xff]
        %v3029 = vld [vmem:[#allocation13 + $0x170] sm:$0xff]
        %v3030 = vld [vmem:[#allocation13 + $0x178] sm:$0xff]
        %3031 = vmatprep.subr.mxu0 0.0
        %3032 = vmatpush1.msra.mxu0 %v2983
        %3033 = vmatprep.subr.mxu0 0.0
        %3034 = vmatpush1.msra.mxu0 %v2984
        %3035 = vmatprep.subr.mxu0 0.0
        %3036 = vmatpush1.msra.mxu0 %v2985
        %3037 = vmatprep.subr.mxu0 0.0
        %3038 = vmatpush1.msra.mxu0 %v2986
        %3039 = vmatprep.subr.mxu0 0.0
        %3040 = vmatpush1.msra.mxu0 %v2987
        %3041 = vmatprep.subr.mxu0 0.0
        %3042 = vmatpush1.msra.mxu0 %v2988
        %3043 = vmatprep.subr.mxu0 0.0
        %3044 = vmatpush1.msra.mxu0 %v2989
        %3045 = vmatprep.subr.mxu0 0.0
        %3046 = vmatpush1.msra.mxu0 %v2990
        %3047 = vmatprep.subr.mxu0 0.0
        %3048 = vmatpush1.msra.mxu0 %v2991
        %3049 = vmatprep.subr.mxu0 0.0
        %3050 = vmatpush1.msra.mxu0 %v2992
        %3051 = vmatprep.subr.mxu0 0.0
        %3052 = vmatpush1.msra.mxu0 %v2993
        %3053 = vmatprep.subr.mxu0 0.0
        %3054 = vmatpush1.msra.mxu0 %v2994
        %3055 = vmatprep.subr.mxu0 0.0
        %3056 = vmatpush1.msra.mxu0 %v2995
        %3057 = vmatprep.subr.mxu0 0.0
        %3058 = vmatpush1.msra.mxu0 %v2996
        %3059 = vmatprep.subr.mxu0 0.0
        %3060 = vmatpush1.msra.mxu0 %v2997
        %3061 = vmatprep.subr.mxu0 0.0
        %3062 = vmatpush1.msra.mxu0 %v2998
        %3063 = vmatprep.subr.mxu0 0.0
        %3064 = vmatpush1.msra.mxu0 %v2999
        %3065 = vmatprep.subr.mxu0 0.0
        %3066 = vmatpush1.msra.mxu0 %v3000
        %3067 = vmatprep.subr.mxu0 0.0
        %3068 = vmatpush1.msra.mxu0 %v3001
        %3069 = vmatprep.subr.mxu0 0.0
        %3070 = vmatpush1.msra.mxu0 %v3002
        %3071 = vmatprep.subr.mxu0 0.0
        %3072 = vmatpush1.msra.mxu0 %v3003
        %3073 = vmatprep.subr.mxu0 0.0
        %3074 = vmatpush1.msra.mxu0 %v3004
        %3075 = vmatprep.subr.mxu0 0.0
        %3076 = vmatpush1.msra.mxu0 %v3005
        %3077 = vmatprep.subr.mxu0 0.0
        %3078 = vmatpush1.msra.mxu0 %v3006
        %3079 = vmatprep.subr.mxu0 0.0
        %3080 = vmatpush1.msra.mxu0 %v3007
        %3081 = vmatprep.subr.mxu0 0.0
        %3082 = vmatpush1.msra.mxu0 %v3008
        %3083 = vmatprep.subr.mxu0 0.0
        %3084 = vmatpush1.msra.mxu0 %v3009
        %3085 = vmatprep.subr.mxu0 0.0
        %3086 = vmatpush1.msra.mxu0 %v3010
        %3087 = vmatprep.subr.mxu0 0.0
        %3088 = vmatpush1.msra.mxu0 %v3011
        %3089 = vmatprep.subr.mxu0 0.0
        %3090 = vmatpush1.msra.mxu0 %v3012
        %3091 = vmatprep.subr.mxu0 0.0
        %3092 = vmatpush1.msra.mxu0 %v3013
        %3093 = vmatprep.subr.mxu0 0.0
        %3094 = vmatpush1.msra.mxu0 %v3014
        %3095 = vmatprep.mubr.f32.mxu0 %v2981
        %3096 = vmatmul.mubr.f32.gmra.mrb[0].mxu0 %v2980
        %v3097 = vpop.f32.mrb[0].mxu0
        %v3098 = vadd.f32 0.0, %v3097
        %v3099 = vpop.f32.mrb[0].mxu0
        %3100 = vdwg.mxu0
        %3101 = vmatprep.subr.mxu0 0.0
        %3102 = vmatpush1.msra.mxu0 %v3015
        %3103 = vmatprep.subr.mxu0 0.0
        %3104 = vmatpush1.msra.mxu0 %v3016
        %3105 = vmatprep.subr.mxu0 0.0
        %3106 = vmatpush1.msra.mxu0 %v3017
        %3107 = vmatprep.subr.mxu0 0.0
        %3108 = vmatpush1.msra.mxu0 %v3018
        %3109 = vmatprep.subr.mxu0 0.0
        %3110 = vmatpush1.msra.mxu0 %v3019
        %3111 = vmatprep.subr.mxu0 0.0
        %3112 = vmatpush1.msra.mxu0 %v3020
        %3113 = vmatprep.subr.mxu0 0.0
        %3114 = vmatpush1.msra.mxu0 %v3021
        %3115 = vmatprep.subr.mxu0 0.0
        %3116 = vmatpush1.msra.mxu0 %v3022
        %3117 = vmatprep.subr.mxu0 0.0
        %3118 = vmatpush1.msra.mxu0 %v3023
        %3119 = vmatprep.subr.mxu0 0.0
        %3120 = vmatpush1.msra.mxu0 %v3024
        %3121 = vmatprep.subr.mxu0 0.0
        %3122 = vmatpush1.msra.mxu0 %v3025
        %3123 = vmatprep.subr.mxu0 0.0
        %3124 = vmatpush1.msra.mxu0 %v3026
        %3125 = vmatprep.subr.mxu0 0.0
        %3126 = vmatpush1.msra.mxu0 %v3027
        %3127 = vmatprep.subr.mxu0 0.0
        %3128 = vmatpush1.msra.mxu0 %v3028
        %3129 = vmatprep.subr.mxu0 0.0
        %3130 = vmatpush1.msra.mxu0 %v3029
        %3131 = vmatprep.subr.mxu0 0.0
        %3132 = vmatpush1.msra.mxu0 %v3030
        %3133 = vmatprep.subr.mxu0 0.0
        %3134 = vmatpush1.msra.mxu0 0.0
        %3135 = vmatprep.subr.mxu0 0.0
        %3136 = vmatpush1.msra.mxu0 0.0
        %3137 = vmatprep.subr.mxu0 0.0
        %3138 = vmatpush1.msra.mxu0 0.0
        %3139 = vmatprep.subr.mxu0 0.0
        %3140 = vmatpush1.msra.mxu0 0.0
        %3141 = vmatprep.subr.mxu0 0.0
        %3142 = vmatpush1.msra.mxu0 0.0
        %3143 = vmatprep.subr.mxu0 0.0
        %3144 = vmatpush1.msra.mxu0 0.0
        %3145 = vmatprep.subr.mxu0 0.0
        %3146 = vmatpush1.msra.mxu0 0.0
        %3147 = vmatprep.subr.mxu0 0.0
        %3148 = vmatpush1.msra.mxu0 0.0
        %3149 = vmatprep.subr.mxu0 0.0
        %3150 = vmatpush1.msra.mxu0 0.0
        %3151 = vmatprep.subr.mxu0 0.0
        %3152 = vmatpush1.msra.mxu0 0.0
        %3153 = vmatprep.subr.mxu0 0.0
        %3154 = vmatpush1.msra.mxu0 0.0
        %3155 = vmatprep.subr.mxu0 0.0
        %3156 = vmatpush1.msra.mxu0 0.0
        %3157 = vmatprep.subr.mxu0 0.0
        %3158 = vmatpush1.msra.mxu0 0.0
        %3159 = vmatprep.subr.mxu0 0.0
        %3160 = vmatpush1.msra.mxu0 0.0
        %3161 = vmatprep.subr.mxu0 0.0
        %3162 = vmatpush1.msra.mxu0 0.0
        %3163 = vmatprep.subr.mxu0 0.0
        %3164 = vmatpush1.msra.mxu0 0.0
        %3165 = vmatprep.mubr.f32.mxu0 0.0
        %3166 = vmatmul.mubr.f32.gmra.mrb[0].mxu0 %v2982
        %v3167 = vpop.f32.mrb[0].mxu0
        %v3168 = vadd.f32 %v3098, %v3167
        %v3169 = vpop.f32.mrb[0].mxu0
        %3170 = vdwg.mxu0
        %3171 = vst [vmem:[%s404] sm:$0xff] %v3168
        %s3172 = sand.u32 %s209, 1
        %s3173 = scalar_lea.sflag [#allocation4], %s3172
        %s3174 = sand.u32 %s209, 1
        %s3175 = smul.addr %s3174, 8
        %s3176 = scalar_lea.vmem [#allocation14], %s3175
        // Predicated region
        $region81: #{tpu_custom_call.1} parent=51 // pred_check
          %p3177 = pneg %p219
        $region82: #{tpu_custom_call.1} parent=51 // pred_check_branch
          %3179 = sbr.rel (%p3177) target = $region84
        $region83: #{tpu_custom_call.1} parent=51 // pred_region
          %s3181 = ssub.s32 128, 128
          %3182 = vsyncadd %s3173, %s3181
          %s3183 = smul.addr %s28, 128
          %s3184 = scalar_lea.hbm %s8, %s3183
          %s3186 = sshll.u32 %s3176, 4
          %s3187 = int_to_ptr.vmem [resolvable:$true] %s3186
          %3189 = dma.vmem_to_hbm [thread:$0]  %s3187, 128, %s3184, %s3173
        $region84: #{tpu_custom_call.1} parent=51 // pred_fallthru
          _
      $region52: #{tpu_custom_call.1} parent=5 // pred_fallthru
        _
      %p3190 = scmp.le.s32.totalorder 2, %s23
      // Predicated region
      $region85: #{tpu_custom_call.1} parent=5 // pred_check
        %p3191 = pneg %p3190
      $region86: #{tpu_custom_call.1} parent=5 // pred_check_branch
        %3193 = sbr.rel (%p3191) target = $region88
      $region87: #{tpu_custom_call.1} parent=5 // pred_region
        %s3194 = ssub.s32 %s23, 2
        // Predicated region
        $region89: #{tpu_custom_call.1} parent=87 // pred_check
          %p3195 = pneg %p225
        $region90: #{tpu_custom_call.1} parent=87 // pred_check_branch
          %3197 = sbr.rel (%p3195) target = $region92
        $region91: #{tpu_custom_call.1} parent=87 // pred_region
          %s3198 = sand.u32 %s210, 1
          %s3199 = scalar_lea.sflag [#allocation4], %s3198
          %s3200 = sand.u32 %s210, 1
          %s3201 = smul.addr %s3200, 8
          %s3202 = scalar_lea.vmem [#allocation14], %s3201
          %3203 = dma.done %s3199, 128
        $region92: #{tpu_custom_call.1} parent=87 // pred_fallthru
          _
      $region88: #{tpu_custom_call.1} parent=5 // pred_fallthru
        _
    $region6: #{tpu_custom_call.1} parent=1 // loop_footer
      %s27 = sadd.s32 1, %s23
    $region7: #{tpu_custom_call.1} parent=1 // loop_footer_branch
      %22 = sbr.rel target = $region3
    $region8: #{tpu_custom_call.1} parent=1 // loop_exit
      _
    %3204 = vsyncpa [#allocation3], 1
    %s3205 = scalar_lea.sflag [#allocation3], 1
    %3206 = vsyncpa %s3205, 1
    %3207 = vsyncpa [#allocation6], 1
    %3208 = vsyncpa [#allocation9], 1
    %3209 = vsyncpa [#allocation12], 1
    %3210 = vsyncpa [#allocation4], 1
    %s3211 = scalar_lea.sflag [#allocation4], 1
    %3212 = vsyncpa %s3211, 1

</llo_original>
